<compile_context>
chip_gen: v7x
topology: tpu7x:2x2x1
jax: 0.10.0
libtpu: 0.0.40
codegen_flags: <defaults>
</compile_context>

<pallas_src>
import functools
import math

import jax
import jax.numpy as jnp
from jax.experimental import pallas as pl
from jax.experimental.pallas import tpu as pltpu

# ----------------------------- model config (small) ------------------------
B = 2            # batch
S_TXT = 8        # text sequence length
S_EMO = 8        # sentiment text sequence length
H = 64           # hidden size ("768" in the real model)
NH = 2           # attention heads
HEAD_D = H // NH
INTER = 128      # FFN intermediate size
LAYERS = 2       # encoder layers per model
VOCAB = 100
MAXPOS = 32
C_IMG = 3
IMG = 16
PATCH = 8
N_PATCH = (IMG // PATCH) ** 2          # 4 patches
S_VIT = 8                              # N_PATCH + 1 = 5 tokens, padded to 8
N_CLASSES = 3                          # opt['label_type'] == '3_way'
LN_EPS = 1e-12
BN_EPS = 1e-5
NEG_INF = -1e9


# ----------------------------- Pallas kernels ------------------------------


def _encoder_kernel(bias_ref, x_ref, embg_ref, embb_ref,
                    qkvw_ref, qkvb_ref, ow_ref, ob_ref,
                    ln1g_ref, ln1b_ref, f1w_ref, f1b_ref,
                    f2w_ref, f2b_ref, ln2g_ref, ln2b_ref,
                    o_ref, *, nh, batch, seq, pre_ln, emb_ln, eps):
    """One grid step == one full transformer encoder layer.

    The layer axis is an "arbitrary" grid dimension and the output block index
    is constant across it, so `o_ref` stays resident in VMEM and serves as the
    carried activation (accumulator pattern).  Per-layer weights arrive as one
    (1, ...) block of the stacked [LAYERS, ...] HBM arrays.
    """
    l = pl.program_id(0)
    h = o_ref.shape[-1]
    d = h // nh
    scale = 1.0 / math.sqrt(d)

    def layer_norm(z, g, bb):
        mu = jnp.mean(z, axis=-1, keepdims=True)
        var = jnp.mean((z - mu) ** 2, axis=-1, keepdims=True)
        return (z - mu) * jax.lax.rsqrt(var + eps) * g + bb

    @pl.when(l == 0)
    def _():
        x0 = x_ref[...]
        if emb_ln:  # BERT / RoBERTa embedding LayerNorm fused into layer 0
            x0 = layer_norm(x0, embg_ref[...], embb_ref[...])
        o_ref[...] = x0

    x = o_ref[...]                 # [batch*seq, h], carried in VMEM
    bias = bias_ref[...]           # [batch, seq] additive key mask

    def mm(a, w):                  # bf16 MXU matmul with f32 accumulation
        return jnp.dot(a.astype(w.dtype), w, preferred_element_type=jnp.float32)

    def attention(xin):
        # Fused QKV projection -> lane-dense [batch*seq, 3h] output.
        qkv = mm(xin, qkvw_ref[0]) + qkvb_ref[0]
        head_ctx = []
        for hd in range(nh):                       # static unroll over heads
            q = qkv[:, hd * d:(hd + 1) * d]
            k = qkv[:, h + hd * d:h + (hd + 1) * d]
            v = qkv[:, 2 * h + hd * d:2 * h + (hd + 1) * d]
            rows = []
            for bi in range(batch):                # static unroll over batch
                qb = q[bi * seq:(bi + 1) * seq]    # [seq, d]
                kb = k[bi * seq:(bi + 1) * seq]
                vb = v[bi * seq:(bi + 1) * seq]
                sc = jax.lax.dot_general(
                    qb, kb, (((1,), (1,)), ((), ())),
                    preferred_element_type=jnp.float32) * scale
                sc = sc + bias[bi:bi + 1, :]       # broadcast over query rows
                m = jnp.max(sc, axis=-1, keepdims=True)
                p = jnp.exp(sc - m)
                p = p * pl.reciprocal(jnp.sum(p, axis=-1, keepdims=True),
                                      approx=True)
                rows.append(jnp.dot(p, vb, preferred_element_type=jnp.float32))
            head_ctx.append(jnp.concatenate(rows, axis=0))   # [batch*seq, d]
        ctx = jnp.concatenate(head_ctx, axis=-1)             # [batch*seq, h]
        return mm(ctx, ow_ref[0]) + ob_ref[0]

    def ffn(z):
        hid = mm(z, f1w_ref[0]) + f1b_ref[0]
        # TODO(synk): HF BERT/ViT use exact erf GELU; tanh approximation here.
        hid = jax.nn.gelu(hid, approximate=True)
        return mm(hid, f2w_ref[0]) + f2b_ref[0]

    if pre_ln:                                     # ViT-style pre-LN
        x = x + attention(layer_norm(x, ln1g_ref[0], ln1b_ref[0]))
        x = x + ffn(layer_norm(x, ln2g_ref[0], ln2b_ref[0]))
    else:                                          # BERT / RoBERTa post-LN
        x = layer_norm(x + attention(x), ln1g_ref[0], ln1b_ref[0])
        x = layer_norm(x + ffn(x), ln2g_ref[0], ln2b_ref[0])

    o_ref[...] = x


def _heads_kernel(bert_cls_ref, vit_cls_ref, vs_cls_ref,
                  bpw_ref, bpb_ref,
                  vlng_ref, vlnb_ref, vpw_ref, vpb_ref,
                  cew_ref, ceb_ref, ceg_ref, cebeta_ref,
                  clw_ref, clb_ref,
                  logits_ref, text_ref, img_ref, vis_ref,
                  *, n_cat, eps_ln, eps_bn):
    """All tiny per-example tails fused into one launch."""
    # BERT pooler: tanh(cls @ W + b)  -> text_embeds
    text = jnp.tanh(
        jnp.dot(bert_cls_ref[...], bpw_ref[...],
                preferred_element_type=jnp.float32) + bpb_ref[...])

    # ViT: final LayerNorm (per-row, so applying it to the cls row only is
    # equivalent) followed by tanh pooler -> img_embeds
    z = vit_cls_ref[...]
    mu = jnp.mean(z, axis=-1, keepdims=True)
    var = jnp.mean((z - mu) ** 2, axis=-1, keepdims=True)
    z = (z - mu) * jax.lax.rsqrt(var + eps_ln) * vlng_ref[...] + vlnb_ref[...]
    img = jnp.tanh(
        jnp.dot(z, vpw_ref[...], preferred_element_type=jnp.float32)
        + vpb_ref[...])

    # VisualSentimentModel.category_encoder: 3x (Linear -> BatchNorm1d -> ReLU).
    # TODO(synk): training-mode batch statistics; a pretrained model in eval()
    # would use running statistics.
    hcat = vs_cls_ref[...]
    for i in range(n_cat):
        hcat = (jnp.dot(hcat, cew_ref[i], preferred_element_type=jnp.float32)
                + ceb_ref[i])
        mu = jnp.mean(hcat, axis=0, keepdims=True)
        var = jnp.mean((hcat - mu) ** 2, axis=0, keepdims=True)
        hcat = (hcat - mu) * jax.lax.rsqrt(var + eps_bn) * ceg_ref[i] \
            + cebeta_ref[i]
        hcat = jnp.maximum(hcat, 0.0)

    # Category classifier on concat(text_embeds, img_embeds).
    combined = jnp.concatenate([text, img], axis=-1)
    logits_ref[...] = (jnp.dot(combined, clw_ref[...],
                               preferred_element_type=jnp.float32)
                       + clb_ref[...])
    text_ref[...] = text
    img_ref[...] = img
    vis_ref[...] = hcat


# ----------------------------- kernel wrappers ------------------------------


def encoder_stack(x, mask_bias, enc, emb_g, emb_b, *, nh, pre_ln, emb_ln,
                  eps=LN_EPS):
    """Run all encoder layers of one tower in a single pallas_call."""
    b, s, h = x.shape
    x2 = x.reshape(b * s, h).astype(jnp.float32)
    bias = mask_bias.astype(jnp.float32)
    layers = enc["qkv_w"].shape[0]

    def full(arr):
        shp = arr.shape
        return pl.BlockSpec(shp, lambda l, _shp=shp: (0,) * len(_shp))

    def per_layer(arr):
        shp = arr.shape
        return pl.BlockSpec((1,) + shp[1:],
                            lambda l, _r=len(shp) - 1: (l,) + (0,) * _r)

    weight_names = ["qkv_w", "qkv_b", "o_w", "o_b", "ln1_g", "ln1_b",
                    "fc1_w", "fc1_b", "fc2_w", "fc2_b", "ln2_g", "ln2_b"]
    weights = [enc[n] for n in weight_names]

    emb_g2 = emb_g.reshape(1, h).astype(jnp.float32)
    emb_b2 = emb_b.reshape(1, h).astype(jnp.float32)
    in_arrays = [bias, x2, emb_g2, emb_b2] + weights
    in_specs = ([full(bias), full(x2), full(emb_g2), full(emb_b2)]
                + [per_layer(w) for w in weights])

    out = pl.pallas_call(
        functools.partial(_encoder_kernel, nh=nh, batch=b, seq=s,
                          pre_ln=pre_ln, emb_ln=emb_ln, eps=eps),
        grid=(layers,),
        in_specs=in_specs,
        out_specs=pl.BlockSpec((b * s, h), lambda l: (0, 0)),
        out_shape=jax.ShapeDtypeStruct((b * s, h), jnp.float32),
        compiler_params=pltpu.CompilerParams(
            dimension_semantics=("arbitrary",)),
    )(*in_arrays)
    return out.reshape(b, s, h)


def heads(bert_cls, vit_cls, vs_cls, params):
    """Fused poolers + category_encoder + classifier in one launch."""
    b, h = bert_cls.shape
    te = params["text_encoder"]
    ie = params["img_encoder"]
    vs = params["visual_sentiment"]
    cc = params["category_classifier"]
    n_classes = cc["w"].shape[-1]
    n_cat = vs["ce_w"].shape[0]

    return pl.pallas_call(
        functools.partial(_heads_kernel, n_cat=n_cat,
                          eps_ln=LN_EPS, eps_bn=BN_EPS),
        out_shape=(
            jax.ShapeDtypeStruct((b, n_classes), jnp.float32),  # logits
            jax.ShapeDtypeStruct((b, h), jnp.float32),          # text_embeds
            jax.ShapeDtypeStruct((b, h), jnp.float32),          # img_embeds
            jax.ShapeDtypeStruct((b, h), jnp.float32),          # vis_emo_embeds
        ),
    )(bert_cls.astype(jnp.float32), vit_cls.astype(jnp.float32),
      vs_cls.astype(jnp.float32),
      te["pool_w"], te["pool_b"],
      ie["ln_g"], ie["ln_b"], ie["pool_w"], ie["pool_b"],
      vs["ce_w"], vs["ce_b"], vs["ce_g"], vs["ce_beta"],
      cc["w"], cc["b"])


# ----------------------------- glue (embeddings) ----------------------------


def vit_embed(p, pixel_values, patch, s_pad):
    """Patchify + project + [CLS] + positions (tiny; left to XLA glue)."""
    b, c, hi, wi = pixel_values.shape
    hp, wp = hi // patch, wi // patch
    patches = pixel_values.reshape(b, c, hp, patch, wp, patch)
    patches = patches.transpose(0, 2, 4, 1, 3, 5).reshape(
        b, hp * wp, c * patch * patch)
    x = jnp.dot(patches, p["patch_w"]) + p["patch_b"]       # conv as matmul
    cls = jnp.broadcast_to(p["cls"], (b, 1, x.shape[-1]))
    x = jnp.concatenate([cls, x], axis=1) + p["pos"][None]
    n = x.shape[1]
    pad = s_pad - n
    x = jnp.pad(x, ((0, 0), (0, pad), (0, 0)))
    bias = jnp.concatenate(
        [jnp.zeros((b, n), jnp.float32),
         jnp.full((b, pad), NEG_INF, jnp.float32)], axis=1)
    return x, bias


# ----------------------------- full forward ---------------------------------


def bert_vit_forward(params, ids, mask, token_type_ids, pixel_values,
                     pixel_values_emo, emo_ids, emo_mask, labels):
    del labels  # unused in the PyTorch forward as well

    # ---- BERT text encoder ----
    te = params["text_encoder"]
    s = ids.shape[1]
    emb = (te["word"][ids] + te["pos"][jnp.arange(s)][None]
           + te["type"][token_type_ids])
    bias = (1.0 - mask.astype(jnp.float32)) * NEG_INF
    bert_seq = encoder_stack(emb, bias, te["enc"], te["emb_ln_g"],
                             te["emb_ln_b"], nh=NH, pre_ln=False, emb_ln=True)
    bert_cls = bert_seq[:, 0, :]

    # ---- RoBERTa sentiment encoder ----
    rs = params["text_sentiment"]
    s2 = emo_ids.shape[1]
    # TODO(synk): real RoBERTa offsets position ids by padding_idx + 1.
    emb2 = rs["word"][emo_ids] + rs["pos"][jnp.arange(s2)][None]
    bias2 = (1.0 - emo_mask.astype(jnp.float32)) * NEG_INF
    rob_seq = encoder_stack(emb2, bias2, rs["enc"], rs["emb_ln_g"],
                            rs["emb_ln_b"], nh=NH, pre_ln=False, emb_ln=True)
    txt_emo_embeds = rob_seq[:, 0, :]          # hidden_states[-1][:, 0, :]

    # ---- ViT image encoder ----
    ie = params["img_encoder"]
    x_img, bias_img = vit_embed(ie, pixel_values, PATCH, S_VIT)
    vit_seq = encoder_stack(x_img, bias_img, ie["enc"], ie["ln_g"], ie["ln_b"],
                            nh=NH, pre_ln=True, emb_ln=False)
    vit_cls = vit_seq[:, 0, :]                 # pre final-LN (LN fused in heads)

    # ---- Visual sentiment ViT ----
    vsp = params["visual_sentiment"]
    x_vs, bias_vs = vit_embed(vsp["vit"], pixel_values_emo, PATCH, S_VIT)
    vs_seq = encoder_stack(x_vs, bias_vs, vsp["vit"]["enc"],
                           vsp["vit"]["ln_g"], vsp["vit"]["ln_b"],
                           nh=NH, pre_ln=True, emb_ln=False)
    vs_cls = vs_seq[:, 0, :]                   # hidden_states[-1][:, 0, :]

    # ---- fused tails: poolers, category encoder, classifier ----
    logits, text_embeds, img_embeds, vis_emo_embeds = heads(
        bert_cls, vit_cls, vs_cls, params)
    return logits, text_embeds, img_embeds, txt_emo_embeds, vis_emo_embeds


# ----------------------------- parameter init -------------------------------


class KeyGen:
    def __init__(self, key):
        self.key = key

    def __call__(self):
        self.key, sub = jax.random.split(self.key)
        return sub


def _normal(kg, shape, scale=0.02):
    return scale * jax.random.normal(kg(), shape, jnp.float32)


def encoder_stack_p(kg, h, inter, layers):
    # Weight matrices stored bf16 (MXU operands); biases / LN params f32.
    return {
        "qkv_w": _normal(kg, (layers, h, 3 * h)).astype(jnp.bfloat16),
        "qkv_b": jnp.zeros((layers, 1, 3 * h), jnp.float32),
        "o_w": _normal(kg, (layers, h, h)).astype(jnp.bfloat16),
        "o_b": jnp.zeros((layers, 1, h), jnp.float32),
        "ln1_g": jnp.ones((layers, 1, h), jnp.float32),
        "ln1_b": jnp.zeros((layers, 1, h), jnp.float32),
        "fc1_w": _normal(kg, (layers, h, inter)).astype(jnp.bfloat16),
        "fc1_b": jnp.zeros((layers, 1, inter), jnp.float32),
        "fc2_w": _normal(kg, (layers, inter, h)).astype(jnp.bfloat16),
        "fc2_b": jnp.zeros((layers, 1, h), jnp.float32),
        "ln2_g": jnp.ones((layers, 1, h), jnp.float32),
        "ln2_b": jnp.zeros((layers, 1, h), jnp.float32),
    }


def bert_p(kg, vocab, maxpos, h, inter, layers):
    return {"word": _normal(kg, (vocab, h)),
            "pos": _normal(kg, (maxpos, h)),
            "type": _normal(kg, (2, h)),
            "emb_ln_g": jnp.ones((1, h), jnp.float32),
            "emb_ln_b": jnp.zeros((1, h), jnp.float32),
            "enc": encoder_stack_p(kg, h, inter, layers),
            "pool_w": _normal(kg, (h, h)),
            "pool_b": jnp.zeros((1, h), jnp.float32)}


def roberta_p(kg, vocab, maxpos, h, inter, layers):
    return {"word": _normal(kg, (vocab, h)),
            "pos": _normal(kg, (maxpos, h)),
            "emb_ln_g": jnp.ones((1, h), jnp.float32),
            "emb_ln_b": jnp.zeros((1, h), jnp.float32),
            "enc": encoder_stack_p(kg, h, inter, layers)}


def vit_p(kg, c, patch, npatch, h, inter, layers):
    return {"patch_w": _normal(kg, (c * patch * patch, h)),
            "patch_b": jnp.zeros((h,), jnp.float32),
            "cls": _normal(kg, (1, 1, h)),
            "pos": _normal(kg, (npatch + 1, h)),
            "enc": encoder_stack_p(kg, h, inter, layers),
            "ln_g": jnp.ones((1, h), jnp.float32),
            "ln_b": jnp.zeros((1, h), jnp.float32),
            "pool_w": _normal(kg, (h, h)),
            "pool_b": jnp.zeros((1, h), jnp.float32)}


def visual_sentiment_p(kg, c, patch, npatch, h, inter, layers):
    # The VisualSentimentModel.classifier head is discarded by Bert_VitClass.
    return {"vit": vit_p(kg, c, patch, npatch, h, inter, layers),
            "ce_w": _normal(kg, (3, h, h)),
            "ce_b": jnp.zeros((3, 1, h), jnp.float32),
            "ce_g": jnp.ones((3, 1, h), jnp.float32),
            "ce_beta": jnp.zeros((3, 1, h), jnp.float32)}


def build_params(key):
    kg = KeyGen(key)
    return {
        "text_encoder": bert_p(kg, VOCAB, MAXPOS, H, INTER, LAYERS),
        "img_encoder": vit_p(kg, C_IMG, PATCH, N_PATCH, H, INTER, LAYERS),
        "text_sentiment": roberta_p(kg, VOCAB, MAXPOS, H, INTER, LAYERS),
        "visual_sentiment": visual_sentiment_p(kg, C_IMG, PATCH, N_PATCH, H,
                                               INTER, LAYERS),
        # emotion_layer is defined in the PyTorch module but unused in forward.
        "emotion_layer": {"w": _normal(kg, (H, H // 2)),
                          "b": jnp.zeros((1, H // 2), jnp.float32)},
        "category_classifier": {"w": _normal(kg, (2 * H, N_CLASSES)),
                                "b": jnp.zeros((1, N_CLASSES), jnp.float32)},
    }
    # TODO(synk): pretrained HF checkpoints / torch.load(checkpoint_SA_model.pth)
    # are replaced by deterministic synthetic weights (no file I/O allowed here).


# ----------------------------------- main ------------------------------------

if __name__ == "__main__":
    root = jax.random.PRNGKey(0)
    k_params, k_ids, k_px, k_pxe, k_eids = jax.random.split(root, 5)

    params = build_params(k_params)

    ids = jax.random.randint(k_ids, (B, S_TXT), 0, VOCAB, dtype=jnp.int32)
    mask = jnp.ones((B, S_TXT), jnp.int32)
    token_type_ids = jnp.zeros((B, S_TXT), jnp.int32)
    pixel_values = jax.random.normal(k_px, (B, C_IMG, IMG, IMG), jnp.float32)
    pixel_values_emo = jax.random.normal(k_pxe, (B, C_IMG, IMG, IMG), jnp.float32)
    emo_ids = jax.random.randint(k_eids, (B, S_EMO), 0, VOCAB, dtype=jnp.int32)
    emo_mask = jnp.ones((B, S_EMO), jnp.int32)
    labels = jnp.zeros((B,), jnp.int32)   # unused

    fwd = jax.jit(bert_vit_forward)
    out = fwd(params, ids, mask, token_type_ids, pixel_values,
              pixel_values_emo, emo_ids, emo_mask, labels)
    out = jax.tree_util.tree_map(jax.block_until_ready, out)

    output, text_embeds, img_embeds, txt_emo_embeds, vis_emo_embeds = out
    assert output.shape == (B, N_CLASSES)
    assert text_embeds.shape == (B, H)
    assert img_embeds.shape == (B, H)
    assert txt_emo_embeds.shape == (B, H)
    assert vis_emo_embeds.shape == (B, H)
    assert bool(jnp.all(jnp.isfinite(output)))
    print("KERNEL_OK")
</pallas_src>

<mosaic_0001>
module attributes {stable_mosaic.version = 11 : i64} {
  func.func @_encoder_kernel(%arg0: i32, %arg1: memref<2x8xf32, #tpu.memory_space<vmem>>, %arg2: memref<16x64xf32, #tpu.memory_space<vmem>>, %arg3: memref<1x64xf32, #tpu.memory_space<vmem>>, %arg4: memref<1x64xf32, #tpu.memory_space<vmem>>, %arg5: memref<1x64x192xbf16, #tpu.memory_space<vmem>>, %arg6: memref<1x1x192xf32, #tpu.memory_space<vmem>>, %arg7: memref<1x64x64xbf16, #tpu.memory_space<vmem>>, %arg8: memref<1x1x64xf32, #tpu.memory_space<vmem>>, %arg9: memref<1x1x64xf32, #tpu.memory_space<vmem>>, %arg10: memref<1x1x64xf32, #tpu.memory_space<vmem>>, %arg11: memref<1x64x128xbf16, #tpu.memory_space<vmem>>, %arg12: memref<1x1x128xf32, #tpu.memory_space<vmem>>, %arg13: memref<1x128x64xbf16, #tpu.memory_space<vmem>>, %arg14: memref<1x1x64xf32, #tpu.memory_space<vmem>>, %arg15: memref<1x1x64xf32, #tpu.memory_space<vmem>>, %arg16: memref<1x1x64xf32, #tpu.memory_space<vmem>>, %arg17: memref<16x64xf32, #tpu.memory_space<vmem>>) attributes {dimension_semantics = [#tpu.dimension_semantics<arbitrary>], iteration_bounds = array<i64: 2>, scalar_prefetch = 0 : i64, scratch_operands = 0 : i64, tpu.core_type = #tpu.core_type<tc>, window_params = [{pipeline_mode = #tpu.pipeline_mode<synchronous>, transform_indices = @transform_0, window_bounds = array<i64: 2, 8>}, {pipeline_mode = #tpu.pipeline_mode<synchronous>, transform_indices = @transform_1, window_bounds = array<i64: 16, 64>}, {pipeline_mode = #tpu.pipeline_mode<synchronous>, transform_indices = @transform_2, window_bounds = array<i64: 1, 64>}, {pipeline_mode = #tpu.pipeline_mode<synchronous>, transform_indices = @transform_3, window_bounds = array<i64: 1, 64>}, {transform_indices = @transform_4, window_bounds = array<i64: 1, 64, 192>}, {transform_indices = @transform_5, window_bounds = array<i64: 1, 1, 192>}, {transform_indices = @transform_6, window_bounds = array<i64: 1, 64, 64>}, {transform_indices = @transform_7, window_bounds = array<i64: 1, 1, 64>}, {transform_indices = @transform_8, window_bounds = array<i64: 1, 1, 64>}, {transform_indices = @transform_9, window_bounds = array<i64: 1, 1, 64>}, {transform_indices = @transform_10, window_bounds = array<i64: 1, 64, 128>}, {transform_indices = @transform_11, window_bounds = array<i64: 1, 1, 128>}, {transform_indices = @transform_12, window_bounds = array<i64: 1, 128, 64>}, {transform_indices = @transform_13, window_bounds = array<i64: 1, 1, 64>}, {transform_indices = @transform_14, window_bounds = array<i64: 1, 1, 64>}, {transform_indices = @transform_15, window_bounds = array<i64: 1, 1, 64>}, {pipeline_mode = #tpu.pipeline_mode<synchronous>, transform_indices = @transform_16, window_bounds = array<i64: 16, 64>}]} {
    %c0_i32 = arith.constant 0 : i32
    %0 = arith.cmpi eq, %arg0, %c0_i32 : i32
    %1 = arith.extui %0 : i1 to i32
    %c0_i32_0 = arith.constant 0 : i32
    %2 = arith.cmpi ne, %1, %c0_i32_0 : i32
    scf.if %2 {
      %c0_79 = arith.constant 0 : index
      %c0_80 = arith.constant 0 : index
      %194 = vector.load %arg2[%c0_79, %c0_80] : memref<16x64xf32, #tpu.memory_space<vmem>>, vector<16x64xf32>
      %c0_81 = arith.constant 0 : index
      %c0_82 = arith.constant 0 : index
      %195 = vector.load %arg3[%c0_81, %c0_82] : memref<1x64xf32, #tpu.memory_space<vmem>>, vector<1x64xf32>
      %c0_83 = arith.constant 0 : index
      %c0_84 = arith.constant 0 : index
      %196 = vector.load %arg4[%c0_83, %c0_84] : memref<1x64xf32, #tpu.memory_space<vmem>>, vector<1x64xf32>
      %cst_85 = arith.constant dense<0.000000e+00> : vector<16xf32>
      %197 = vector.multi_reduction <add>, %194, %cst_85 [1] : vector<16x64xf32> to vector<16xf32>
      %198 = vector.shape_cast %197 : vector<16xf32> to vector<16x1xf32>
      %cst_86 = arith.constant 6.400000e+01 : f32
      %199 = vector.broadcast %cst_86 : f32 to vector<16x1xf32>
      %200 = arith.divf %198, %199 : vector<16x1xf32>
      %201 = vector.broadcast %200 : vector<16x1xf32> to vector<16x64xf32>
      %202 = arith.subf %194, %201 : vector<16x64xf32>
      %203 = arith.mulf %202, %202 : vector<16x64xf32>
      %cst_87 = arith.constant dense<0.000000e+00> : vector<16xf32>
      %204 = vector.multi_reduction <add>, %203, %cst_87 [1] : vector<16x64xf32> to vector<16xf32>
      %205 = vector.shape_cast %204 : vector<16xf32> to vector<16x1xf32>
      %cst_88 = arith.constant 6.400000e+01 : f32
      %206 = vector.broadcast %cst_88 : f32 to vector<16x1xf32>
      %207 = arith.divf %205, %206 : vector<16x1xf32>
      %208 = vector.broadcast %200 : vector<16x1xf32> to vector<16x64xf32>
      %209 = arith.subf %194, %208 : vector<16x64xf32>
      %cst_89 = arith.constant 9.99999996E-13 : f32
      %210 = vector.broadcast %cst_89 : f32 to vector<16x1xf32>
      %211 = arith.addf %207, %210 : vector<16x1xf32>
      %212 = math.rsqrt %211 : vector<16x1xf32>
      %213 = vector.broadcast %212 : vector<16x1xf32> to vector<16x64xf32>
      %214 = arith.mulf %209, %213 : vector<16x64xf32>
      %215 = vector.broadcast %195 : vector<1x64xf32> to vector<16x64xf32>
      %216 = arith.mulf %214, %215 : vector<16x64xf32>
      %217 = vector.broadcast %196 : vector<1x64xf32> to vector<16x64xf32>
      %218 = arith.addf %216, %217 : vector<16x64xf32>
      %c0_90 = arith.constant 0 : index
      %c0_91 = arith.constant 0 : index
      %219 = vector.load %arg17[%c0_90, %c0_91] : memref<16x64xf32, #tpu.memory_space<vmem>>, vector<16x64xf32>
      tpu.vector_store %arg17[%c0_90, %c0_91], %218 {strides = array<i32>} : memref<16x64xf32, #tpu.memory_space<vmem>>, vector<16x64xf32>,
    } else {
    }
    %c0 = arith.constant 0 : index
    %c0_1 = arith.constant 0 : index
    %3 = vector.load %arg17[%c0, %c0_1] : memref<16x64xf32, #tpu.memory_space<vmem>>, vector<16x64xf32>
    %c0_2 = arith.constant 0 : index
    %c0_3 = arith.constant 0 : index
    %4 = vector.load %arg1[%c0_2, %c0_3] : memref<2x8xf32, #tpu.memory_space<vmem>>, vector<2x8xf32>
    %c0_4 = arith.constant 0 : index
    %c0_5 = arith.constant 0 : index
    %c0_6 = arith.constant 0 : index
    %5 = vector.load %arg5[%c0_4, %c0_5, %c0_6] : memref<1x64x192xbf16, #tpu.memory_space<vmem>>, vector<1x64x192xbf16>
    %6 = vector.shape_cast %5 : vector<1x64x192xbf16> to vector<64x192xbf16>
    %7 = arith.truncf %3 : vector<16x64xf32> to vector<16x64xbf16>
    %cst = arith.constant dense<0.000000e+00> : vector<16x192xf32>
    %8 = tpu.matmul %7, %6, %cst {dimension_numbers = #tpu.dot_dimension_numbers<[1], [0], [0], [1], [0, 0, 1, 1], [], []>} : vector<16x64xbf16>, vector<64x192xbf16>, vector<16x192xf32> -> vector<16x192xf32>
    %c0_7 = arith.constant 0 : index
    %c0_8 = arith.constant 0 : index
    %c0_9 = arith.constant 0 : index
    %9 = vector.load %arg6[%c0_7, %c0_8, %c0_9] : memref<1x1x192xf32, #tpu.memory_space<vmem>>, vector<1x1x192xf32>
    %10 = vector.shape_cast %9 : vector<1x1x192xf32> to vector<1x192xf32>
    %11 = vector.broadcast %10 : vector<1x192xf32> to vector<16x192xf32>
    %12 = arith.addf %8, %11 : vector<16x192xf32>
    %13 = vector.extract_strided_slice %12 {offsets = [0, 0], sizes = [16, 32], strides = [1, 1]} : vector<16x192xf32> to vector<16x32xf32>
    %14 = vector.extract_strided_slice %12 {offsets = [0, 64], sizes = [16, 32], strides = [1, 1]} : vector<16x192xf32> to vector<16x32xf32>
    %15 = vector.extract_strided_slice %12 {offsets = [0, 128], sizes = [16, 32], strides = [1, 1]} : vector<16x192xf32> to vector<16x32xf32>
    %16 = vector.extract_strided_slice %13 {offsets = [0, 0], sizes = [8, 32], strides = [1, 1]} : vector<16x32xf32> to vector<8x32xf32>
    %17 = vector.extract_strided_slice %14 {offsets = [0, 0], sizes = [8, 32], strides = [1, 1]} : vector<16x32xf32> to vector<8x32xf32>
    %18 = vector.extract_strided_slice %15 {offsets = [0, 0], sizes = [8, 32], strides = [1, 1]} : vector<16x32xf32> to vector<8x32xf32>
    %cst_10 = arith.constant dense<0.000000e+00> : vector<8x8xf32>
    %19 = tpu.matmul %16, %17, %cst_10 {dimension_numbers = #tpu.dot_dimension_numbers<[1], [1], [0], [0], [0, 0, 1, 0], [], []>} : vector<8x32xf32>, vector<8x32xf32>, vector<8x8xf32> -> vector<8x8xf32>
    %cst_11 = arith.constant 0.176776692 : f32
    %20 = vector.broadcast %cst_11 : f32 to vector<8x8xf32>
    %21 = arith.mulf %19, %20 : vector<8x8xf32>
    %22 = vector.extract_strided_slice %4 {offsets = [0, 0], sizes = [1, 8], strides = [1, 1]} : vector<2x8xf32> to vector<1x8xf32>
    %23 = vector.broadcast %22 : vector<1x8xf32> to vector<8x8xf32>
    %24 = arith.addf %21, %23 : vector<8x8xf32>
    %cst_12 = arith.constant dense<0xFF800000> : vector<8xf32>
    %25 = vector.multi_reduction <maximumf>, %24, %cst_12 [1] : vector<8x8xf32> to vector<8xf32>
    %26 = vector.shape_cast %25 : vector<8xf32> to vector<8x1xf32>
    %27 = vector.broadcast %26 : vector<8x1xf32> to vector<8x8xf32>
    %28 = arith.subf %24, %27 : vector<8x8xf32>
    %29 = math.exp %28 : vector<8x8xf32>
    %cst_13 = arith.constant dense<0.000000e+00> : vector<8xf32>
    %30 = vector.multi_reduction <add>, %29, %cst_13 [1] : vector<8x8xf32> to vector<8xf32>
    %31 = vector.shape_cast %30 : vector<8xf32> to vector<8x1xf32>
    %32 = tpu.reciprocal %31 {approx = true} : vector<8x1xf32> -> vector<8x1xf32>
    %33 = vector.broadcast %32 : vector<8x1xf32> to vector<8x8xf32>
    %34 = arith.mulf %29, %33 : vector<8x8xf32>
    %cst_14 = arith.constant dense<0.000000e+00> : vector<8x32xf32>
    %35 = tpu.matmul %34, %18, %cst_14 {dimension_numbers = #tpu.dot_dimension_numbers<[1], [0], [0], [1], [0, 0, 1, 1], [], []>} : vector<8x8xf32>, vector<8x32xf32>, vector<8x32xf32> -> vector<8x32xf32>
    %36 = vector.extract_strided_slice %13 {offsets = [8, 0], sizes = [8, 32], strides = [1, 1]} : vector<16x32xf32> to vector<8x32xf32>
    %37 = vector.extract_strided_slice %14 {offsets = [8, 0], sizes = [8, 32], strides = [1, 1]} : vector<16x32xf32> to vector<8x32xf32>
    %38 = vector.extract_strided_slice %15 {offsets = [8, 0], sizes = [8, 32], strides = [1, 1]} : vector<16x32xf32> to vector<8x32xf32>
    %cst_15 = arith.constant dense<0.000000e+00> : vector<8x8xf32>
    %39 = tpu.matmul %36, %37, %cst_15 {dimension_numbers = #tpu.dot_dimension_numbers<[1], [1], [0], [0], [0, 0, 1, 0], [], []>} : vector<8x32xf32>, vector<8x32xf32>, vector<8x8xf32> -> vector<8x8xf32>
    %cst_16 = arith.constant 0.176776692 : f32
    %40 = vector.broadcast %cst_16 : f32 to vector<8x8xf32>
    %41 = arith.mulf %39, %40 : vector<8x8xf32>
    %42 = vector.extract_strided_slice %4 {offsets = [1, 0], sizes = [1, 8], strides = [1, 1]} : vector<2x8xf32> to vector<1x8xf32>
    %43 = vector.broadcast %42 : vector<1x8xf32> to vector<8x8xf32>
    %44 = arith.addf %41, %43 : vector<8x8xf32>
    %cst_17 = arith.constant dense<0xFF800000> : vector<8xf32>
    %45 = vector.multi_reduction <maximumf>, %44, %cst_17 [1] : vector<8x8xf32> to vector<8xf32>
    %46 = vector.shape_cast %45 : vector<8xf32> to vector<8x1xf32>
    %47 = vector.broadcast %46 : vector<8x1xf32> to vector<8x8xf32>
    %48 = arith.subf %44, %47 : vector<8x8xf32>
    %49 = math.exp %48 : vector<8x8xf32>
    %cst_18 = arith.constant dense<0.000000e+00> : vector<8xf32>
    %50 = vector.multi_reduction <add>, %49, %cst_18 [1] : vector<8x8xf32> to vector<8xf32>
    %51 = vector.shape_cast %50 : vector<8xf32> to vector<8x1xf32>
    %52 = tpu.reciprocal %51 {approx = true} : vector<8x1xf32> -> vector<8x1xf32>
    %53 = vector.broadcast %52 : vector<8x1xf32> to vector<8x8xf32>
    %54 = arith.mulf %49, %53 : vector<8x8xf32>
    %cst_19 = arith.constant dense<0.000000e+00> : vector<8x32xf32>
    %55 = tpu.matmul %54, %38, %cst_19 {dimension_numbers = #tpu.dot_dimension_numbers<[1], [0], [0], [1], [0, 0, 1, 1], [], []>} : vector<8x8xf32>, vector<8x32xf32>, vector<8x32xf32> -> vector<8x32xf32>
    %56 = tpu.concatenate %35, %55 in 0 : vector<8x32xf32>, vector<8x32xf32> -> vector<16x32xf32>
    %57 = vector.extract_strided_slice %12 {offsets = [0, 32], sizes = [16, 32], strides = [1, 1]} : vector<16x192xf32> to vector<16x32xf32>
    %58 = vector.extract_strided_slice %12 {offsets = [0, 96], sizes = [16, 32], strides = [1, 1]} : vector<16x192xf32> to vector<16x32xf32>
    %59 = vector.extract_strided_slice %12 {offsets = [0, 160], sizes = [16, 32], strides = [1, 1]} : vector<16x192xf32> to vector<16x32xf32>
    %60 = vector.extract_strided_slice %57 {offsets = [0, 0], sizes = [8, 32], strides = [1, 1]} : vector<16x32xf32> to vector<8x32xf32>
    %61 = vector.extract_strided_slice %58 {offsets = [0, 0], sizes = [8, 32], strides = [1, 1]} : vector<16x32xf32> to vector<8x32xf32>
    %62 = vector.extract_strided_slice %59 {offsets = [0, 0], sizes = [8, 32], strides = [1, 1]} : vector<16x32xf32> to vector<8x32xf32>
    %cst_20 = arith.constant dense<0.000000e+00> : vector<8x8xf32>
    %63 = tpu.matmul %60, %61, %cst_20 {dimension_numbers = #tpu.dot_dimension_numbers<[1], [1], [0], [0], [0, 0, 1, 0], [], []>} : vector<8x32xf32>, vector<8x32xf32>, vector<8x8xf32> -> vector<8x8xf32>
    %cst_21 = arith.constant 0.176776692 : f32
    %64 = vector.broadcast %cst_21 : f32 to vector<8x8xf32>
    %65 = arith.mulf %63, %64 : vector<8x8xf32>
    %66 = vector.extract_strided_slice %4 {offsets = [0, 0], sizes = [1, 8], strides = [1, 1]} : vector<2x8xf32> to vector<1x8xf32>
    %67 = vector.broadcast %66 : vector<1x8xf32> to vector<8x8xf32>
    %68 = arith.addf %65, %67 : vector<8x8xf32>
    %cst_22 = arith.constant dense<0xFF800000> : vector<8xf32>
    %69 = vector.multi_reduction <maximumf>, %68, %cst_22 [1] : vector<8x8xf32> to vector<8xf32>
    %70 = vector.shape_cast %69 : vector<8xf32> to vector<8x1xf32>
    %71 = vector.broadcast %70 : vector<8x1xf32> to vector<8x8xf32>
    %72 = arith.subf %68, %71 : vector<8x8xf32>
    %73 = math.exp %72 : vector<8x8xf32>
    %cst_23 = arith.constant dense<0.000000e+00> : vector<8xf32>
    %74 = vector.multi_reduction <add>, %73, %cst_23 [1] : vector<8x8xf32> to vector<8xf32>
    %75 = vector.shape_cast %74 : vector<8xf32> to vector<8x1xf32>
    %76 = tpu.reciprocal %75 {approx = true} : vector<8x1xf32> -> vector<8x1xf32>
    %77 = vector.broadcast %76 : vector<8x1xf32> to vector<8x8xf32>
    %78 = arith.mulf %73, %77 : vector<8x8xf32>
    %cst_24 = arith.constant dense<0.000000e+00> : vector<8x32xf32>
    %79 = tpu.matmul %78, %62, %cst_24 {dimension_numbers = #tpu.dot_dimension_numbers<[1], [0], [0], [1], [0, 0, 1, 1], [], []>} : vector<8x8xf32>, vector<8x32xf32>, vector<8x32xf32> -> vector<8x32xf32>
    %80 = vector.extract_strided_slice %57 {offsets = [8, 0], sizes = [8, 32], strides = [1, 1]} : vector<16x32xf32> to vector<8x32xf32>
    %81 = vector.extract_strided_slice %58 {offsets = [8, 0], sizes = [8, 32], strides = [1, 1]} : vector<16x32xf32> to vector<8x32xf32>
    %82 = vector.extract_strided_slice %59 {offsets = [8, 0], sizes = [8, 32], strides = [1, 1]} : vector<16x32xf32> to vector<8x32xf32>
    %cst_25 = arith.constant dense<0.000000e+00> : vector<8x8xf32>
    %83 = tpu.matmul %80, %81, %cst_25 {dimension_numbers = #tpu.dot_dimension_numbers<[1], [1], [0], [0], [0, 0, 1, 0], [], []>} : vector<8x32xf32>, vector<8x32xf32>, vector<8x8xf32> -> vector<8x8xf32>
    %cst_26 = arith.constant 0.176776692 : f32
    %84 = vector.broadcast %cst_26 : f32 to vector<8x8xf32>
    %85 = arith.mulf %83, %84 : vector<8x8xf32>
    %86 = vector.extract_strided_slice %4 {offsets = [1, 0], sizes = [1, 8], strides = [1, 1]} : vector<2x8xf32> to vector<1x8xf32>
    %87 = vector.broadcast %86 : vector<1x8xf32> to vector<8x8xf32>
    %88 = arith.addf %85, %87 : vector<8x8xf32>
    %cst_27 = arith.constant dense<0xFF800000> : vector<8xf32>
    %89 = vector.multi_reduction <maximumf>, %88, %cst_27 [1] : vector<8x8xf32> to vector<8xf32>
    %90 = vector.shape_cast %89 : vector<8xf32> to vector<8x1xf32>
    %91 = vector.broadcast %90 : vector<8x1xf32> to vector<8x8xf32>
    %92 = arith.subf %88, %91 : vector<8x8xf32>
    %93 = math.exp %92 : vector<8x8xf32>
    %cst_28 = arith.constant dense<0.000000e+00> : vector<8xf32>
    %94 = vector.multi_reduction <add>, %93, %cst_28 [1] : vector<8x8xf32> to vector<8xf32>
    %95 = vector.shape_cast %94 : vector<8xf32> to vector<8x1xf32>
    %96 = tpu.reciprocal %95 {approx = true} : vector<8x1xf32> -> vector<8x1xf32>
    %97 = vector.broadcast %96 : vector<8x1xf32> to vector<8x8xf32>
    %98 = arith.mulf %93, %97 : vector<8x8xf32>
    %cst_29 = arith.constant dense<0.000000e+00> : vector<8x32xf32>
    %99 = tpu.matmul %98, %82, %cst_29 {dimension_numbers = #tpu.dot_dimension_numbers<[1], [0], [0], [1], [0, 0, 1, 1], [], []>} : vector<8x8xf32>, vector<8x32xf32>, vector<8x32xf32> -> vector<8x32xf32>
    %100 = tpu.concatenate %79, %99 in 0 : vector<8x32xf32>, vector<8x32xf32> -> vector<16x32xf32>
    %101 = tpu.concatenate %56, %100 in 1 : vector<16x32xf32>, vector<16x32xf32> -> vector<16x64xf32>
    %c0_30 = arith.constant 0 : index
    %c0_31 = arith.constant 0 : index
    %c0_32 = arith.constant 0 : index
    %102 = vector.load %arg7[%c0_30, %c0_31, %c0_32] : memref<1x64x64xbf16, #tpu.memory_space<vmem>>, vector<1x64x64xbf16>
    %103 = vector.shape_cast %102 : vector<1x64x64xbf16> to vector<64x64xbf16>
    %104 = arith.truncf %101 : vector<16x64xf32> to vector<16x64xbf16>
    %cst_33 = arith.constant dense<0.000000e+00> : vector<16x64xf32>
    %105 = tpu.matmul %104, %103, %cst_33 {dimension_numbers = #tpu.dot_dimension_numbers<[1], [0], [0], [1], [0, 0, 1, 1], [], []>} : vector<16x64xbf16>, vector<64x64xbf16>, vector<16x64xf32> -> vector<16x64xf32>
    %c0_34 = arith.constant 0 : index
    %c0_35 = arith.constant 0 : index
    %c0_36 = arith.constant 0 : index
    %106 = vector.load %arg8[%c0_34, %c0_35, %c0_36] : memref<1x1x64xf32, #tpu.memory_space<vmem>>, vector<1x1x64xf32>
    %107 = vector.shape_cast %106 : vector<1x1x64xf32> to vector<1x64xf32>
    %108 = vector.broadcast %107 : vector<1x64xf32> to vector<16x64xf32>
    %109 = arith.addf %105, %108 : vector<16x64xf32>
    %110 = arith.addf %3, %109 : vector<16x64xf32>
    %c0_37 = arith.constant 0 : index
    %c0_38 = arith.constant 0 : index
    %c0_39 = arith.constant 0 : index
    %111 = vector.load %arg9[%c0_37, %c0_38, %c0_39] : memref<1x1x64xf32, #tpu.memory_space<vmem>>, vector<1x1x64xf32>
    %112 = vector.shape_cast %111 : vector<1x1x64xf32> to vector<1x64xf32>
    %c0_40 = arith.constant 0 : index
    %c0_41 = arith.constant 0 : index
    %c0_42 = arith.constant 0 : index
    %113 = vector.load %arg10[%c0_40, %c0_41, %c0_42] : memref<1x1x64xf32, #tpu.memory_space<vmem>>, vector<1x1x64xf32>
    %114 = vector.shape_cast %113 : vector<1x1x64xf32> to vector<1x64xf32>
    %cst_43 = arith.constant dense<0.000000e+00> : vector<16xf32>
    %115 = vector.multi_reduction <add>, %110, %cst_43 [1] : vector<16x64xf32> to vector<16xf32>
    %116 = vector.shape_cast %115 : vector<16xf32> to vector<16x1xf32>
    %cst_44 = arith.constant 6.400000e+01 : f32
    %117 = vector.broadcast %cst_44 : f32 to vector<16x1xf32>
    %118 = arith.divf %116, %117 : vector<16x1xf32>
    %119 = vector.broadcast %118 : vector<16x1xf32> to vector<16x64xf32>
    %120 = arith.subf %110, %119 : vector<16x64xf32>
    %121 = arith.mulf %120, %120 : vector<16x64xf32>
    %cst_45 = arith.constant dense<0.000000e+00> : vector<16xf32>
    %122 = vector.multi_reduction <add>, %121, %cst_45 [1] : vector<16x64xf32> to vector<16xf32>
    %123 = vector.shape_cast %122 : vector<16xf32> to vector<16x1xf32>
    %cst_46 = arith.constant 6.400000e+01 : f32
    %124 = vector.broadcast %cst_46 : f32 to vector<16x1xf32>
    %125 = arith.divf %123, %124 : vector<16x1xf32>
    %126 = vector.broadcast %118 : vector<16x1xf32> to vector<16x64xf32>
    %127 = arith.subf %110, %126 : vector<16x64xf32>
    %cst_47 = arith.constant 9.99999996E-13 : f32
    %128 = vector.broadcast %cst_47 : f32 to vector<16x1xf32>
    %129 = arith.addf %125, %128 : vector<16x1xf32>
    %130 = math.rsqrt %129 : vector<16x1xf32>
    %131 = vector.broadcast %130 : vector<16x1xf32> to vector<16x64xf32>
    %132 = arith.mulf %127, %131 : vector<16x64xf32>
    %133 = vector.broadcast %112 : vector<1x64xf32> to vector<16x64xf32>
    %134 = arith.mulf %132, %133 : vector<16x64xf32>
    %135 = vector.broadcast %114 : vector<1x64xf32> to vector<16x64xf32>
    %136 = arith.addf %134, %135 : vector<16x64xf32>
    %c0_48 = arith.constant 0 : index
    %c0_49 = arith.constant 0 : index
    %c0_50 = arith.constant 0 : index
    %137 = vector.load %arg11[%c0_48, %c0_49, %c0_50] : memref<1x64x128xbf16, #tpu.memory_space<vmem>>, vector<1x64x128xbf16>
    %138 = vector.shape_cast %137 : vector<1x64x128xbf16> to vector<64x128xbf16>
    %139 = arith.truncf %136 : vector<16x64xf32> to vector<16x64xbf16>
    %cst_51 = arith.constant dense<0.000000e+00> : vector<16x128xf32>
    %140 = tpu.matmul %139, %138, %cst_51 {dimension_numbers = #tpu.dot_dimension_numbers<[1], [0], [0], [1], [0, 0, 1, 1], [], []>} : vector<16x64xbf16>, vector<64x128xbf16>, vector<16x128xf32> -> vector<16x128xf32>
    %c0_52 = arith.constant 0 : index
    %c0_53 = arith.constant 0 : index
    %c0_54 = arith.constant 0 : index
    %141 = vector.load %arg12[%c0_52, %c0_53, %c0_54] : memref<1x1x128xf32, #tpu.memory_space<vmem>>, vector<1x1x128xf32>
    %142 = vector.shape_cast %141 : vector<1x1x128xf32> to vector<1x128xf32>
    %143 = vector.broadcast %142 : vector<1x128xf32> to vector<16x128xf32>
    %144 = arith.addf %140, %143 : vector<16x128xf32>
    %145 = arith.mulf %144, %144 : vector<16x128xf32>
    %146 = arith.mulf %144, %145 : vector<16x128xf32>
    %cst_55 = arith.constant 4.471500e-02 : f32
    %147 = vector.broadcast %cst_55 : f32 to vector<16x128xf32>
    %148 = arith.mulf %147, %146 : vector<16x128xf32>
    %149 = arith.addf %144, %148 : vector<16x128xf32>
    %cst_56 = arith.constant 0.797884583 : f32
    %150 = vector.broadcast %cst_56 : f32 to vector<16x128xf32>
    %151 = arith.mulf %150, %149 : vector<16x128xf32>
    %152 = math.tanh %151 : vector<16x128xf32>
    %cst_57 = arith.constant 1.000000e+00 : f32
    %153 = vector.broadcast %cst_57 : f32 to vector<16x128xf32>
    %154 = arith.addf %153, %152 : vector<16x128xf32>
    %cst_58 = arith.constant 5.000000e-01 : f32
    %155 = vector.broadcast %cst_58 : f32 to vector<16x128xf32>
    %156 = arith.mulf %155, %154 : vector<16x128xf32>
    %157 = arith.mulf %144, %156 : vector<16x128xf32>
    %c0_59 = arith.constant 0 : index
    %c0_60 = arith.constant 0 : index
    %c0_61 = arith.constant 0 : index
    %158 = vector.load %arg13[%c0_59, %c0_60, %c0_61] : memref<1x128x64xbf16, #tpu.memory_space<vmem>>, vector<1x128x64xbf16>
    %159 = vector.shape_cast %158 : vector<1x128x64xbf16> to vector<128x64xbf16>
    %160 = arith.truncf %157 : vector<16x128xf32> to vector<16x128xbf16>
    %cst_62 = arith.constant dense<0.000000e+00> : vector<16x64xf32>
    %161 = tpu.matmul %160, %159, %cst_62 {dimension_numbers = #tpu.dot_dimension_numbers<[1], [0], [0], [1], [0, 0, 1, 1], [], []>} : vector<16x128xbf16>, vector<128x64xbf16>, vector<16x64xf32> -> vector<16x64xf32>
    %c0_63 = arith.constant 0 : index
    %c0_64 = arith.constant 0 : index
    %c0_65 = arith.constant 0 : index
    %162 = vector.load %arg14[%c0_63, %c0_64, %c0_65] : memref<1x1x64xf32, #tpu.memory_space<vmem>>, vector<1x1x64xf32>
    %163 = vector.shape_cast %162 : vector<1x1x64xf32> to vector<1x64xf32>
    %164 = vector.broadcast %163 : vector<1x64xf32> to vector<16x64xf32>
    %165 = arith.addf %161, %164 : vector<16x64xf32>
    %166 = arith.addf %136, %165 : vector<16x64xf32>
    %c0_66 = arith.constant 0 : index
    %c0_67 = arith.constant 0 : index
    %c0_68 = arith.constant 0 : index
    %167 = vector.load %arg15[%c0_66, %c0_67, %c0_68] : memref<1x1x64xf32, #tpu.memory_space<vmem>>, vector<1x1x64xf32>
    %168 = vector.shape_cast %167 : vector<1x1x64xf32> to vector<1x64xf32>
    %c0_69 = arith.constant 0 : index
    %c0_70 = arith.constant 0 : index
    %c0_71 = arith.constant 0 : index
    %169 = vector.load %arg16[%c0_69, %c0_70, %c0_71] : memref<1x1x64xf32, #tpu.memory_space<vmem>>, vector<1x1x64xf32>
    %170 = vector.shape_cast %169 : vector<1x1x64xf32> to vector<1x64xf32>
    %cst_72 = arith.constant dense<0.000000e+00> : vector<16xf32>
    %171 = vector.multi_reduction <add>, %166, %cst_72 [1] : vector<16x64xf32> to vector<16xf32>
    %172 = vector.shape_cast %171 : vector<16xf32> to vector<16x1xf32>
    %cst_73 = arith.constant 6.400000e+01 : f32
    %173 = vector.broadcast %cst_73 : f32 to vector<16x1xf32>
    %174 = arith.divf %172, %173 : vector<16x1xf32>
    %175 = vector.broadcast %174 : vector<16x1xf32> to vector<16x64xf32>
    %176 = arith.subf %166, %175 : vector<16x64xf32>
    %177 = arith.mulf %176, %176 : vector<16x64xf32>
    %cst_74 = arith.constant dense<0.000000e+00> : vector<16xf32>
    %178 = vector.multi_reduction <add>, %177, %cst_74 [1] : vector<16x64xf32> to vector<16xf32>
    %179 = vector.shape_cast %178 : vector<16xf32> to vector<16x1xf32>
    %cst_75 = arith.constant 6.400000e+01 : f32
    %180 = vector.broadcast %cst_75 : f32 to vector<16x1xf32>
    %181 = arith.divf %179, %180 : vector<16x1xf32>
    %182 = vector.broadcast %174 : vector<16x1xf32> to vector<16x64xf32>
    %183 = arith.subf %166, %182 : vector<16x64xf32>
    %cst_76 = arith.constant 9.99999996E-13 : f32
    %184 = vector.broadcast %cst_76 : f32 to vector<16x1xf32>
    %185 = arith.addf %181, %184 : vector<16x1xf32>
    %186 = math.rsqrt %185 : vector<16x1xf32>
    %187 = vector.broadcast %186 : vector<16x1xf32> to vector<16x64xf32>
    %188 = arith.mulf %183, %187 : vector<16x64xf32>
    %189 = vector.broadcast %168 : vector<1x64xf32> to vector<16x64xf32>
    %190 = arith.mulf %188, %189 : vector<16x64xf32>
    %191 = vector.broadcast %170 : vector<1x64xf32> to vector<16x64xf32>
    %192 = arith.addf %190, %191 : vector<16x64xf32>
    %c0_77 = arith.constant 0 : index
    %c0_78 = arith.constant 0 : index
    %193 = vector.load %arg17[%c0_77, %c0_78] : memref<16x64xf32, #tpu.memory_space<vmem>>, vector<16x64xf32>
    tpu.vector_store %arg17[%c0_77, %c0_78], %192 {strides = array<i32>} : memref<16x64xf32, #tpu.memory_space<vmem>>, vector<16x64xf32>,
    return
  }
  func.func @transform_0(%arg0: i32) -> (i32, i32) {
    %c0_i32 = arith.constant 0 : i32
    %c0_i32_0 = arith.constant 0 : i32
    %c0_i32_1 = arith.constant 0 : i32
    return %c0_i32, %c0_i32_0 : i32, i32
  }
  func.func @transform_1(%arg0: i32) -> (i32, i32) {
    %c0_i32 = arith.constant 0 : i32
    %c0_i32_0 = arith.constant 0 : i32
    %c0_i32_1 = arith.constant 0 : i32
    return %c0_i32, %c0_i32_0 : i32, i32
  }
  func.func @transform_2(%arg0: i32) -> (i32, i32) {
    %c0_i32 = arith.constant 0 : i32
    %c0_i32_0 = arith.constant 0 : i32
    %c0_i32_1 = arith.constant 0 : i32
    return %c0_i32, %c0_i32_0 : i32, i32
  }
  func.func @transform_3(%arg0: i32) -> (i32, i32) {
    %c0_i32 = arith.constant 0 : i32
    %c0_i32_0 = arith.constant 0 : i32
    %c0_i32_1 = arith.constant 0 : i32
    return %c0_i32, %c0_i32_0 : i32, i32
  }
  func.func @transform_4(%arg0: i32) -> (i32, i32, i32) {
    %c0_i32 = arith.constant 0 : i32
    %c0_i32_0 = arith.constant 0 : i32
    %c0_i32_1 = arith.constant 0 : i32
    return %arg0, %c0_i32, %c0_i32_0 : i32, i32, i32
  }
  func.func @transform_5(%arg0: i32) -> (i32, i32, i32) {
    %c0_i32 = arith.constant 0 : i32
    %c0_i32_0 = arith.constant 0 : i32
    %c0_i32_1 = arith.constant 0 : i32
    return %arg0, %c0_i32, %c0_i32_0 : i32, i32, i32
  }
  func.func @transform_6(%arg0: i32) -> (i32, i32, i32) {
    %c0_i32 = arith.constant 0 : i32
    %c0_i32_0 = arith.constant 0 : i32
    %c0_i32_1 = arith.constant 0 : i32
    return %arg0, %c0_i32, %c0_i32_0 : i32, i32, i32
  }
  func.func @transform_7(%arg0: i32) -> (i32, i32, i32) {
    %c0_i32 = arith.constant 0 : i32
    %c0_i32_0 = arith.constant 0 : i32
    %c0_i32_1 = arith.constant 0 : i32
    return %arg0, %c0_i32, %c0_i32_0 : i32, i32, i32
  }
  func.func @transform_8(%arg0: i32) -> (i32, i32, i32) {
    %c0_i32 = arith.constant 0 : i32
    %c0_i32_0 = arith.constant 0 : i32
    %c0_i32_1 = arith.constant 0 : i32
    return %arg0, %c0_i32, %c0_i32_0 : i32, i32, i32
  }
  func.func @transform_9(%arg0: i32) -> (i32, i32, i32) {
    %c0_i32 = arith.constant 0 : i32
    %c0_i32_0 = arith.constant 0 : i32
    %c0_i32_1 = arith.constant 0 : i32
    return %arg0, %c0_i32, %c0_i32_0 : i32, i32, i32
  }
  func.func @transform_10(%arg0: i32) -> (i32, i32, i32) {
    %c0_i32 = arith.constant 0 : i32
    %c0_i32_0 = arith.constant 0 : i32
    %c0_i32_1 = arith.constant 0 : i32
    return %arg0, %c0_i32, %c0_i32_0 : i32, i32, i32
  }
  func.func @transform_11(%arg0: i32) -> (i32, i32, i32) {
    %c0_i32 = arith.constant 0 : i32
    %c0_i32_0 = arith.constant 0 : i32
    %c0_i32_1 = arith.constant 0 : i32
    return %arg0, %c0_i32, %c0_i32_0 : i32, i32, i32
  }
  func.func @transform_12(%arg0: i32) -> (i32, i32, i32) {
    %c0_i32 = arith.constant 0 : i32
    %c0_i32_0 = arith.constant 0 : i32
    %c0_i32_1 = arith.constant 0 : i32
    return %arg0, %c0_i32, %c0_i32_0 : i32, i32, i32
  }
  func.func @transform_13(%arg0: i32) -> (i32, i32, i32) {
    %c0_i32 = arith.constant 0 : i32
    %c0_i32_0 = arith.constant 0 : i32
    %c0_i32_1 = arith.constant 0 : i32
    return %arg0, %c0_i32, %c0_i32_0 : i32, i32, i32
  }
  func.func @transform_14(%arg0: i32) -> (i32, i32, i32) {
    %c0_i32 = arith.constant 0 : i32
    %c0_i32_0 = arith.constant 0 : i32
    %c0_i32_1 = arith.constant 0 : i32
    return %arg0, %c0_i32, %c0_i32_0 : i32, i32, i32
  }
  func.func @transform_15(%arg0: i32) -> (i32, i32, i32) {
    %c0_i32 = arith.constant 0 : i32
    %c0_i32_0 = arith.constant 0 : i32
    %c0_i32_1 = arith.constant 0 : i32
    return %arg0, %c0_i32, %c0_i32_0 : i32, i32, i32
  }
  func.func @transform_16(%arg0: i32) -> (i32, i32) {
    %c0_i32 = arith.constant 0 : i32
    %c0_i32_0 = arith.constant 0 : i32
    %c0_i32_1 = arith.constant 0 : i32
    return %c0_i32, %c0_i32_0 : i32, i32
  }
}

module attributes {stable_mosaic.version = 11 : i64} {
  func.func @_heads_kernel(%arg0: memref<2x64xf32, #tpu.memory_space<vmem>>, %arg1: memref<2x64xf32, #tpu.memory_space<vmem>>, %arg2: memref<2x64xf32, #tpu.memory_space<vmem>>, %arg3: memref<64x64xf32, #tpu.memory_space<vmem>>, %arg4: memref<1x64xf32, #tpu.memory_space<vmem>>, %arg5: memref<1x64xf32, #tpu.memory_space<vmem>>, %arg6: memref<1x64xf32, #tpu.memory_space<vmem>>, %arg7: memref<64x64xf32, #tpu.memory_space<vmem>>, %arg8: memref<1x64xf32, #tpu.memory_space<vmem>>, %arg9: memref<3x64x64xf32, #tpu.memory_space<vmem>>, %arg10: memref<3x1x64xf32, #tpu.memory_space<vmem>>, %arg11: memref<3x1x64xf32, #tpu.memory_space<vmem>>, %arg12: memref<3x1x64xf32, #tpu.memory_space<vmem>>, %arg13: memref<128x3xf32, #tpu.memory_space<vmem>>, %arg14: memref<1x3xf32, #tpu.memory_space<vmem>>, %arg15: memref<2x3xf32, #tpu.memory_space<vmem>>, %arg16: memref<2x64xf32, #tpu.memory_space<vmem>>, %arg17: memref<2x64xf32, #tpu.memory_space<vmem>>, %arg18: memref<2x64xf32, #tpu.memory_space<vmem>>) attributes {dimension_semantics = [], scalar_prefetch = 0 : i64, scratch_operands = 0 : i64, tpu.core_type = #tpu.core_type<tc>} {
    %c0 = arith.constant 0 : index
    %c0_0 = arith.constant 0 : index
    %0 = vector.load %arg0[%c0, %c0_0] : memref<2x64xf32, #tpu.memory_space<vmem>>, vector<2x64xf32>
    %c0_1 = arith.constant 0 : index
    %c0_2 = arith.constant 0 : index
    %1 = vector.load %arg3[%c0_1, %c0_2] : memref<64x64xf32, #tpu.memory_space<vmem>>, vector<64x64xf32>
    %cst = arith.constant dense<0.000000e+00> : vector<2x64xf32>
    %2 = tpu.matmul %0, %1, %cst {dimension_numbers = #tpu.dot_dimension_numbers<[1], [0], [0], [1], [0, 0, 1, 1], [], []>} : vector<2x64xf32>, vector<64x64xf32>, vector<2x64xf32> -> vector<2x64xf32>
    %c0_3 = arith.constant 0 : index
    %c0_4 = arith.constant 0 : index
    %3 = vector.load %arg4[%c0_3, %c0_4] : memref<1x64xf32, #tpu.memory_space<vmem>>, vector<1x64xf32>
    %4 = vector.broadcast %3 : vector<1x64xf32> to vector<2x64xf32>
    %5 = arith.addf %2, %4 : vector<2x64xf32>
    %6 = math.tanh %5 : vector<2x64xf32>
    %c0_5 = arith.constant 0 : index
    %c0_6 = arith.constant 0 : index
    %7 = vector.load %arg1[%c0_5, %c0_6] : memref<2x64xf32, #tpu.memory_space<vmem>>, vector<2x64xf32>
    %cst_7 = arith.constant dense<0.000000e+00> : vector<2xf32>
    %8 = vector.multi_reduction <add>, %7, %cst_7 [1] : vector<2x64xf32> to vector<2xf32>
    %9 = vector.shape_cast %8 : vector<2xf32> to vector<2x1xf32>
    %cst_8 = arith.constant 6.400000e+01 : f32
    %10 = vector.broadcast %cst_8 : f32 to vector<2x1xf32>
    %11 = arith.divf %9, %10 : vector<2x1xf32>
    %12 = vector.broadcast %11 : vector<2x1xf32> to vector<2x64xf32>
    %13 = arith.subf %7, %12 : vector<2x64xf32>
    %14 = arith.mulf %13, %13 : vector<2x64xf32>
    %cst_9 = arith.constant dense<0.000000e+00> : vector<2xf32>
    %15 = vector.multi_reduction <add>, %14, %cst_9 [1] : vector<2x64xf32> to vector<2xf32>
    %16 = vector.shape_cast %15 : vector<2xf32> to vector<2x1xf32>
    %cst_10 = arith.constant 6.400000e+01 : f32
    %17 = vector.broadcast %cst_10 : f32 to vector<2x1xf32>
    %18 = arith.divf %16, %17 : vector<2x1xf32>
    %19 = vector.broadcast %11 : vector<2x1xf32> to vector<2x64xf32>
    %20 = arith.subf %7, %19 : vector<2x64xf32>
    %cst_11 = arith.constant 9.99999996E-13 : f32
    %21 = vector.broadcast %cst_11 : f32 to vector<2x1xf32>
    %22 = arith.addf %18, %21 : vector<2x1xf32>
    %23 = math.rsqrt %22 : vector<2x1xf32>
    %24 = vector.broadcast %23 : vector<2x1xf32> to vector<2x64xf32>
    %25 = arith.mulf %20, %24 : vector<2x64xf32>
    %c0_12 = arith.constant 0 : index
    %c0_13 = arith.constant 0 : index
    %26 = vector.load %arg5[%c0_12, %c0_13] : memref<1x64xf32, #tpu.memory_space<vmem>>, vector<1x64xf32>
    %27 = vector.broadcast %26 : vector<1x64xf32> to vector<2x64xf32>
    %28 = arith.mulf %25, %27 : vector<2x64xf32>
    %c0_14 = arith.constant 0 : index
    %c0_15 = arith.constant 0 : index
    %29 = vector.load %arg6[%c0_14, %c0_15] : memref<1x64xf32, #tpu.memory_space<vmem>>, vector<1x64xf32>
    %30 = vector.broadcast %29 : vector<1x64xf32> to vector<2x64xf32>
    %31 = arith.addf %28, %30 : vector<2x64xf32>
    %c0_16 = arith.constant 0 : index
    %c0_17 = arith.constant 0 : index
    %32 = vector.load %arg7[%c0_16, %c0_17] : memref<64x64xf32, #tpu.memory_space<vmem>>, vector<64x64xf32>
    %cst_18 = arith.constant dense<0.000000e+00> : vector<2x64xf32>
    %33 = tpu.matmul %31, %32, %cst_18 {dimension_numbers = #tpu.dot_dimension_numbers<[1], [0], [0], [1], [0, 0, 1, 1], [], []>} : vector<2x64xf32>, vector<64x64xf32>, vector<2x64xf32> -> vector<2x64xf32>
    %c0_19 = arith.constant 0 : index
    %c0_20 = arith.constant 0 : index
    %34 = vector.load %arg8[%c0_19, %c0_20] : memref<1x64xf32, #tpu.memory_space<vmem>>, vector<1x64xf32>
    %35 = vector.broadcast %34 : vector<1x64xf32> to vector<2x64xf32>
    %36 = arith.addf %33, %35 : vector<2x64xf32>
    %37 = math.tanh %36 : vector<2x64xf32>
    %c0_21 = arith.constant 0 : index
    %c0_22 = arith.constant 0 : index
    %38 = vector.load %arg2[%c0_21, %c0_22] : memref<2x64xf32, #tpu.memory_space<vmem>>, vector<2x64xf32>
    %c0_23 = arith.constant 0 : index
    %c0_24 = arith.constant 0 : index
    %c0_25 = arith.constant 0 : index
    %39 = vector.load %arg9[%c0_23, %c0_24, %c0_25] : memref<3x64x64xf32, #tpu.memory_space<vmem>>, vector<1x64x64xf32>
    %40 = vector.shape_cast %39 : vector<1x64x64xf32> to vector<64x64xf32>
    %cst_26 = arith.constant dense<0.000000e+00> : vector<2x64xf32>
    %41 = tpu.matmul %38, %40, %cst_26 {dimension_numbers = #tpu.dot_dimension_numbers<[1], [0], [0], [1], [0, 0, 1, 1], [], []>} : vector<2x64xf32>, vector<64x64xf32>, vector<2x64xf32> -> vector<2x64xf32>
    %c0_27 = arith.constant 0 : index
    %c0_28 = arith.constant 0 : index
    %c0_29 = arith.constant 0 : index
    %42 = vector.load %arg10[%c0_27, %c0_28, %c0_29] : memref<3x1x64xf32, #tpu.memory_space<vmem>>, vector<1x1x64xf32>
    %43 = vector.shape_cast %42 : vector<1x1x64xf32> to vector<1x64xf32>
    %44 = vector.broadcast %43 : vector<1x64xf32> to vector<2x64xf32>
    %45 = arith.addf %41, %44 : vector<2x64xf32>
    %cst_30 = arith.constant dense<0.000000e+00> : vector<64xf32>
    %46 = vector.multi_reduction <add>, %45, %cst_30 [0] : vector<2x64xf32> to vector<64xf32>
    %47 = vector.shape_cast %46 : vector<64xf32> to vector<1x64xf32>
    %cst_31 = arith.constant 2.000000e+00 : f32
    %48 = vector.broadcast %cst_31 : f32 to vector<1x64xf32>
    %49 = arith.divf %47, %48 : vector<1x64xf32>
    %50 = vector.broadcast %49 : vector<1x64xf32> to vector<2x64xf32>
    %51 = arith.subf %45, %50 : vector<2x64xf32>
    %52 = arith.mulf %51, %51 : vector<2x64xf32>
    %cst_32 = arith.constant dense<0.000000e+00> : vector<64xf32>
    %53 = vector.multi_reduction <add>, %52, %cst_32 [0] : vector<2x64xf32> to vector<64xf32>
    %54 = vector.shape_cast %53 : vector<64xf32> to vector<1x64xf32>
    %cst_33 = arith.constant 2.000000e+00 : f32
    %55 = vector.broadcast %cst_33 : f32 to vector<1x64xf32>
    %56 = arith.divf %54, %55 : vector<1x64xf32>
    %57 = vector.broadcast %49 : vector<1x64xf32> to vector<2x64xf32>
    %58 = arith.subf %45, %57 : vector<2x64xf32>
    %cst_34 = arith.constant 9.99999974E-6 : f32
    %59 = vector.broadcast %cst_34 : f32 to vector<1x64xf32>
    %60 = arith.addf %56, %59 : vector<1x64xf32>
    %61 = math.rsqrt %60 : vector<1x64xf32>
    %62 = vector.broadcast %61 : vector<1x64xf32> to vector<2x64xf32>
    %63 = arith.mulf %58, %62 : vector<2x64xf32>
    %c0_35 = arith.constant 0 : index
    %c0_36 = arith.constant 0 : index
    %c0_37 = arith.constant 0 : index
    %64 = vector.load %arg11[%c0_35, %c0_36, %c0_37] : memref<3x1x64xf32, #tpu.memory_space<vmem>>, vector<1x1x64xf32>
    %65 = vector.shape_cast %64 : vector<1x1x64xf32> to vector<1x64xf32>
    %66 = vector.broadcast %65 : vector<1x64xf32> to vector<2x64xf32>
    %67 = arith.mulf %63, %66 : vector<2x64xf32>
    %c0_38 = arith.constant 0 : index
    %c0_39 = arith.constant 0 : index
    %c0_40 = arith.constant 0 : index
    %68 = vector.load %arg12[%c0_38, %c0_39, %c0_40] : memref<3x1x64xf32, #tpu.memory_space<vmem>>, vector<1x1x64xf32>
    %69 = vector.shape_cast %68 : vector<1x1x64xf32> to vector<1x64xf32>
    %70 = vector.broadcast %69 : vector<1x64xf32> to vector<2x64xf32>
    %71 = arith.addf %67, %70 : vector<2x64xf32>
    %cst_41 = arith.constant 0.000000e+00 : f32
    %72 = vector.broadcast %cst_41 : f32 to vector<2x64xf32>
    %73 = arith.maximumf %71, %72 : vector<2x64xf32>
    %c1 = arith.constant 1 : index
    %c0_42 = arith.constant 0 : index
    %c0_43 = arith.constant 0 : index
    %74 = vector.load %arg9[%c1, %c0_42, %c0_43] : memref<3x64x64xf32, #tpu.memory_space<vmem>>, vector<1x64x64xf32>
    %75 = vector.shape_cast %74 : vector<1x64x64xf32> to vector<64x64xf32>
    %cst_44 = arith.constant dense<0.000000e+00> : vector<2x64xf32>
    %76 = tpu.matmul %73, %75, %cst_44 {dimension_numbers = #tpu.dot_dimension_numbers<[1], [0], [0], [1], [0, 0, 1, 1], [], []>} : vector<2x64xf32>, vector<64x64xf32>, vector<2x64xf32> -> vector<2x64xf32>
    %c1_45 = arith.constant 1 : index
    %c0_46 = arith.constant 0 : index
    %c0_47 = arith.constant 0 : index
    %77 = vector.load %arg10[%c1_45, %c0_46, %c0_47] : memref<3x1x64xf32, #tpu.memory_space<vmem>>, vector<1x1x64xf32>
    %78 = vector.shape_cast %77 : vector<1x1x64xf32> to vector<1x64xf32>
    %79 = vector.broadcast %78 : vector<1x64xf32> to vector<2x64xf32>
    %80 = arith.addf %76, %79 : vector<2x64xf32>
    %cst_48 = arith.constant dense<0.000000e+00> : vector<64xf32>
    %81 = vector.multi_reduction <add>, %80, %cst_48 [0] : vector<2x64xf32> to vector<64xf32>
    %82 = vector.shape_cast %81 : vector<64xf32> to vector<1x64xf32>
    %cst_49 = arith.constant 2.000000e+00 : f32
    %83 = vector.broadcast %cst_49 : f32 to vector<1x64xf32>
    %84 = arith.divf %82, %83 : vector<1x64xf32>
    %85 = vector.broadcast %84 : vector<1x64xf32> to vector<2x64xf32>
    %86 = arith.subf %80, %85 : vector<2x64xf32>
    %87 = arith.mulf %86, %86 : vector<2x64xf32>
    %cst_50 = arith.constant dense<0.000000e+00> : vector<64xf32>
    %88 = vector.multi_reduction <add>, %87, %cst_50 [0] : vector<2x64xf32> to vector<64xf32>
    %89 = vector.shape_cast %88 : vector<64xf32> to vector<1x64xf32>
    %cst_51 = arith.constant 2.000000e+00 : f32
    %90 = vector.broadcast %cst_51 : f32 to vector<1x64xf32>
    %91 = arith.divf %89, %90 : vector<1x64xf32>
    %92 = vector.broadcast %84 : vector<1x64xf32> to vector<2x64xf32>
    %93 = arith.subf %80, %92 : vector<2x64xf32>
    %cst_52 = arith.constant 9.99999974E-6 : f32
    %94 = vector.broadcast %cst_52 : f32 to vector<1x64xf32>
    %95 = arith.addf %91, %94 : vector<1x64xf32>
    %96 = math.rsqrt %95 : vector<1x64xf32>
    %97 = vector.broadcast %96 : vector<1x64xf32> to vector<2x64xf32>
    %98 = arith.mulf %93, %97 : vector<2x64xf32>
    %c1_53 = arith.constant 1 : index
    %c0_54 = arith.constant 0 : index
    %c0_55 = arith.constant 0 : index
    %99 = vector.load %arg11[%c1_53, %c0_54, %c0_55] : memref<3x1x64xf32, #tpu.memory_space<vmem>>, vector<1x1x64xf32>
    %100 = vector.shape_cast %99 : vector<1x1x64xf32> to vector<1x64xf32>
    %101 = vector.broadcast %100 : vector<1x64xf32> to vector<2x64xf32>
    %102 = arith.mulf %98, %101 : vector<2x64xf32>
    %c1_56 = arith.constant 1 : index
    %c0_57 = arith.constant 0 : index
    %c0_58 = arith.constant 0 : index
    %103 = vector.load %arg12[%c1_56, %c0_57, %c0_58] : memref<3x1x64xf32, #tpu.memory_space<vmem>>, vector<1x1x64xf32>
    %104 = vector.shape_cast %103 : vector<1x1x64xf32> to vector<1x64xf32>
    %105 = vector.broadcast %104 : vector<1x64xf32> to vector<2x64xf32>
    %106 = arith.addf %102, %105 : vector<2x64xf32>
    %cst_59 = arith.constant 0.000000e+00 : f32
    %107 = vector.broadcast %cst_59 : f32 to vector<2x64xf32>
    %108 = arith.maximumf %106, %107 : vector<2x64xf32>
    %c2 = arith.constant 2 : index
    %c0_60 = arith.constant 0 : index
    %c0_61 = arith.constant 0 : index
    %109 = vector.load %arg9[%c2, %c0_60, %c0_61] : memref<3x64x64xf32, #tpu.memory_space<vmem>>, vector<1x64x64xf32>
    %110 = vector.shape_cast %109 : vector<1x64x64xf32> to vector<64x64xf32>
    %cst_62 = arith.constant dense<0.000000e+00> : vector<2x64xf32>
    %111 = tpu.matmul %108, %110, %cst_62 {dimension_numbers = #tpu.dot_dimension_numbers<[1], [0], [0], [1], [0, 0, 1, 1], [], []>} : vector<2x64xf32>, vector<64x64xf32>, vector<2x64xf32> -> vector<2x64xf32>
    %c2_63 = arith.constant 2 : index
    %c0_64 = arith.constant 0 : index
    %c0_65 = arith.constant 0 : index
    %112 = vector.load %arg10[%c2_63, %c0_64, %c0_65] : memref<3x1x64xf32, #tpu.memory_space<vmem>>, vector<1x1x64xf32>
    %113 = vector.shape_cast %112 : vector<1x1x64xf32> to vector<1x64xf32>
    %114 = vector.broadcast %113 : vector<1x64xf32> to vector<2x64xf32>
    %115 = arith.addf %111, %114 : vector<2x64xf32>
    %cst_66 = arith.constant dense<0.000000e+00> : vector<64xf32>
    %116 = vector.multi_reduction <add>, %115, %cst_66 [0] : vector<2x64xf32> to vector<64xf32>
    %117 = vector.shape_cast %116 : vector<64xf32> to vector<1x64xf32>
    %cst_67 = arith.constant 2.000000e+00 : f32
    %118 = vector.broadcast %cst_67 : f32 to vector<1x64xf32>
    %119 = arith.divf %117, %118 : vector<1x64xf32>
    %120 = vector.broadcast %119 : vector<1x64xf32> to vector<2x64xf32>
    %121 = arith.subf %115, %120 : vector<2x64xf32>
    %122 = arith.mulf %121, %121 : vector<2x64xf32>
    %cst_68 = arith.constant dense<0.000000e+00> : vector<64xf32>
    %123 = vector.multi_reduction <add>, %122, %cst_68 [0] : vector<2x64xf32> to vector<64xf32>
    %124 = vector.shape_cast %123 : vector<64xf32> to vector<1x64xf32>
    %cst_69 = arith.constant 2.000000e+00 : f32
    %125 = vector.broadcast %cst_69 : f32 to vector<1x64xf32>
    %126 = arith.divf %124, %125 : vector<1x64xf32>
    %127 = vector.broadcast %119 : vector<1x64xf32> to vector<2x64xf32>
    %128 = arith.subf %115, %127 : vector<2x64xf32>
    %cst_70 = arith.constant 9.99999974E-6 : f32
    %129 = vector.broadcast %cst_70 : f32 to vector<1x64xf32>
    %130 = arith.addf %126, %129 : vector<1x64xf32>
    %131 = math.rsqrt %130 : vector<1x64xf32>
    %132 = vector.broadcast %131 : vector<1x64xf32> to vector<2x64xf32>
    %133 = arith.mulf %128, %132 : vector<2x64xf32>
    %c2_71 = arith.constant 2 : index
    %c0_72 = arith.constant 0 : index
    %c0_73 = arith.constant 0 : index
    %134 = vector.load %arg11[%c2_71, %c0_72, %c0_73] : memref<3x1x64xf32, #tpu.memory_space<vmem>>, vector<1x1x64xf32>
    %135 = vector.shape_cast %134 : vector<1x1x64xf32> to vector<1x64xf32>
    %136 = vector.broadcast %135 : vector<1x64xf32> to vector<2x64xf32>
    %137 = arith.mulf %133, %136 : vector<2x64xf32>
    %c2_74 = arith.constant 2 : index
    %c0_75 = arith.constant 0 : index
    %c0_76 = arith.constant 0 : index
    %138 = vector.load %arg12[%c2_74, %c0_75, %c0_76] : memref<3x1x64xf32, #tpu.memory_space<vmem>>, vector<1x1x64xf32>
    %139 = vector.shape_cast %138 : vector<1x1x64xf32> to vector<1x64xf32>
    %140 = vector.broadcast %139 : vector<1x64xf32> to vector<2x64xf32>
    %141 = arith.addf %137, %140 : vector<2x64xf32>
    %cst_77 = arith.constant 0.000000e+00 : f32
    %142 = vector.broadcast %cst_77 : f32 to vector<2x64xf32>
    %143 = arith.maximumf %141, %142 : vector<2x64xf32>
    %144 = tpu.concatenate %6, %37 in 1 : vector<2x64xf32>, vector<2x64xf32> -> vector<2x128xf32>
    %c0_78 = arith.constant 0 : index
    %c0_79 = arith.constant 0 : index
    %145 = vector.load %arg13[%c0_78, %c0_79] : memref<128x3xf32, #tpu.memory_space<vmem>>, vector<128x3xf32>
    %cst_80 = arith.constant dense<0.000000e+00> : vector<2x3xf32>
    %146 = tpu.matmul %144, %145, %cst_80 {dimension_numbers = #tpu.dot_dimension_numbers<[1], [0], [0], [1], [0, 0, 1, 1], [], []>} : vector<2x128xf32>, vector<128x3xf32>, vector<2x3xf32> -> vector<2x3xf32>
    %c0_81 = arith.constant 0 : index
    %c0_82 = arith.constant 0 : index
    %147 = vector.load %arg14[%c0_81, %c0_82] : memref<1x3xf32, #tpu.memory_space<vmem>>, vector<1x3xf32>
    %148 = vector.broadcast %147 : vector<1x3xf32> to vector<2x3xf32>
    %149 = arith.addf %146, %148 : vector<2x3xf32>
    %c0_83 = arith.constant 0 : index
    %c0_84 = arith.constant 0 : index
    %150 = vector.load %arg15[%c0_83, %c0_84] : memref<2x3xf32, #tpu.memory_space<vmem>>, vector<2x3xf32>
    tpu.vector_store %arg15[%c0_83, %c0_84], %149 {strides = array<i32>} : memref<2x3xf32, #tpu.memory_space<vmem>>, vector<2x3xf32>,
    %c0_85 = arith.constant 0 : index
    %c0_86 = arith.constant 0 : index
    %151 = vector.load %arg16[%c0_85, %c0_86] : memref<2x64xf32, #tpu.memory_space<vmem>>, vector<2x64xf32>
    tpu.vector_store %arg16[%c0_85, %c0_86], %6 {strides = array<i32>} : memref<2x64xf32, #tpu.memory_space<vmem>>, vector<2x64xf32>,
    %c0_87 = arith.constant 0 : index
    %c0_88 = arith.constant 0 : index
    %152 = vector.load %arg17[%c0_87, %c0_88] : memref<2x64xf32, #tpu.memory_space<vmem>>, vector<2x64xf32>
    tpu.vector_store %arg17[%c0_87, %c0_88], %37 {strides = array<i32>} : memref<2x64xf32, #tpu.memory_space<vmem>>, vector<2x64xf32>,
    %c0_89 = arith.constant 0 : index
    %c0_90 = arith.constant 0 : index
    %153 = vector.load %arg18[%c0_89, %c0_90] : memref<2x64xf32, #tpu.memory_space<vmem>>, vector<2x64xf32>
    tpu.vector_store %arg18[%c0_89, %c0_90], %143 {strides = array<i32>} : memref<2x64xf32, #tpu.memory_space<vmem>>, vector<2x64xf32>,
    return
  }
}

module attributes {stable_mosaic.version = 11 : i64} {
  func.func @_encoder_kernel(%arg0: i32, %arg1: memref<2x8xf32, #tpu.memory_space<vmem>>, %arg2: memref<16x64xf32, #tpu.memory_space<vmem>>, %arg3: memref<1x64xf32, #tpu.memory_space<vmem>>, %arg4: memref<1x64xf32, #tpu.memory_space<vmem>>, %arg5: memref<1x64x192xbf16, #tpu.memory_space<vmem>>, %arg6: memref<1x1x192xf32, #tpu.memory_space<vmem>>, %arg7: memref<1x64x64xbf16, #tpu.memory_space<vmem>>, %arg8: memref<1x1x64xf32, #tpu.memory_space<vmem>>, %arg9: memref<1x1x64xf32, #tpu.memory_space<vmem>>, %arg10: memref<1x1x64xf32, #tpu.memory_space<vmem>>, %arg11: memref<1x64x128xbf16, #tpu.memory_space<vmem>>, %arg12: memref<1x1x128xf32, #tpu.memory_space<vmem>>, %arg13: memref<1x128x64xbf16, #tpu.memory_space<vmem>>, %arg14: memref<1x1x64xf32, #tpu.memory_space<vmem>>, %arg15: memref<1x1x64xf32, #tpu.memory_space<vmem>>, %arg16: memref<1x1x64xf32, #tpu.memory_space<vmem>>, %arg17: memref<16x64xf32, #tpu.memory_space<vmem>>) attributes {dimension_semantics = [#tpu.dimension_semantics<arbitrary>], iteration_bounds = array<i64: 2>, scalar_prefetch = 0 : i64, scratch_operands = 0 : i64, tpu.core_type = #tpu.core_type<tc>, window_params = [{pipeline_mode = #tpu.pipeline_mode<synchronous>, transform_indices = @transform_0, window_bounds = array<i64: 2, 8>}, {pipeline_mode = #tpu.pipeline_mode<synchronous>, transform_indices = @transform_1, window_bounds = array<i64: 16, 64>}, {pipeline_mode = #tpu.pipeline_mode<synchronous>, transform_indices = @transform_2, window_bounds = array<i64: 1, 64>}, {pipeline_mode = #tpu.pipeline_mode<synchronous>, transform_indices = @transform_3, window_bounds = array<i64: 1, 64>}, {transform_indices = @transform_4, window_bounds = array<i64: 1, 64, 192>}, {transform_indices = @transform_5, window_bounds = array<i64: 1, 1, 192>}, {transform_indices = @transform_6, window_bounds = array<i64: 1, 64, 64>}, {transform_indices = @transform_7, window_bounds = array<i64: 1, 1, 64>}, {transform_indices = @transform_8, window_bounds = array<i64: 1, 1, 64>}, {transform_indices = @transform_9, window_bounds = array<i64: 1, 1, 64>}, {transform_indices = @transform_10, window_bounds = array<i64: 1, 64, 128>}, {transform_indices = @transform_11, window_bounds = array<i64: 1, 1, 128>}, {transform_indices = @transform_12, window_bounds = array<i64: 1, 128, 64>}, {transform_indices = @transform_13, window_bounds = array<i64: 1, 1, 64>}, {transform_indices = @transform_14, window_bounds = array<i64: 1, 1, 64>}, {transform_indices = @transform_15, window_bounds = array<i64: 1, 1, 64>}, {pipeline_mode = #tpu.pipeline_mode<synchronous>, transform_indices = @transform_16, window_bounds = array<i64: 16, 64>}]} {
    %c0_i32 = arith.constant 0 : i32
    %0 = arith.cmpi eq, %arg0, %c0_i32 : i32
    %1 = arith.extui %0 : i1 to i32
    %c0_i32_0 = arith.constant 0 : i32
    %2 = arith.cmpi ne, %1, %c0_i32_0 : i32
    scf.if %2 {
      %c0_79 = arith.constant 0 : index
      %c0_80 = arith.constant 0 : index
      %194 = vector.load %arg2[%c0_79, %c0_80] : memref<16x64xf32, #tpu.memory_space<vmem>>, vector<16x64xf32>
      %c0_81 = arith.constant 0 : index
      %c0_82 = arith.constant 0 : index
      %195 = vector.load %arg17[%c0_81, %c0_82] : memref<16x64xf32, #tpu.memory_space<vmem>>, vector<16x64xf32>
      tpu.vector_store %arg17[%c0_81, %c0_82], %194 {strides = array<i32>} : memref<16x64xf32, #tpu.memory_space<vmem>>, vector<16x64xf32>,
    } else {
    }
    %c0 = arith.constant 0 : index
    %c0_1 = arith.constant 0 : index
    %3 = vector.load %arg17[%c0, %c0_1] : memref<16x64xf32, #tpu.memory_space<vmem>>, vector<16x64xf32>
    %c0_2 = arith.constant 0 : index
    %c0_3 = arith.constant 0 : index
    %4 = vector.load %arg1[%c0_2, %c0_3] : memref<2x8xf32, #tpu.memory_space<vmem>>, vector<2x8xf32>
    %c0_4 = arith.constant 0 : index
    %c0_5 = arith.constant 0 : index
    %c0_6 = arith.constant 0 : index
    %5 = vector.load %arg9[%c0_4, %c0_5, %c0_6] : memref<1x1x64xf32, #tpu.memory_space<vmem>>, vector<1x1x64xf32>
    %6 = vector.shape_cast %5 : vector<1x1x64xf32> to vector<1x64xf32>
    %c0_7 = arith.constant 0 : index
    %c0_8 = arith.constant 0 : index
    %c0_9 = arith.constant 0 : index
    %7 = vector.load %arg10[%c0_7, %c0_8, %c0_9] : memref<1x1x64xf32, #tpu.memory_space<vmem>>, vector<1x1x64xf32>
    %8 = vector.shape_cast %7 : vector<1x1x64xf32> to vector<1x64xf32>
    %cst = arith.constant dense<0.000000e+00> : vector<16xf32>
    %9 = vector.multi_reduction <add>, %3, %cst [1] : vector<16x64xf32> to vector<16xf32>
    %10 = vector.shape_cast %9 : vector<16xf32> to vector<16x1xf32>
    %cst_10 = arith.constant 6.400000e+01 : f32
    %11 = vector.broadcast %cst_10 : f32 to vector<16x1xf32>
    %12 = arith.divf %10, %11 : vector<16x1xf32>
    %13 = vector.broadcast %12 : vector<16x1xf32> to vector<16x64xf32>
    %14 = arith.subf %3, %13 : vector<16x64xf32>
    %15 = arith.mulf %14, %14 : vector<16x64xf32>
    %cst_11 = arith.constant dense<0.000000e+00> : vector<16xf32>
    %16 = vector.multi_reduction <add>, %15, %cst_11 [1] : vector<16x64xf32> to vector<16xf32>
    %17 = vector.shape_cast %16 : vector<16xf32> to vector<16x1xf32>
    %cst_12 = arith.constant 6.400000e+01 : f32
    %18 = vector.broadcast %cst_12 : f32 to vector<16x1xf32>
    %19 = arith.divf %17, %18 : vector<16x1xf32>
    %20 = vector.broadcast %12 : vector<16x1xf32> to vector<16x64xf32>
    %21 = arith.subf %3, %20 : vector<16x64xf32>
    %cst_13 = arith.constant 9.99999996E-13 : f32
    %22 = vector.broadcast %cst_13 : f32 to vector<16x1xf32>
    %23 = arith.addf %19, %22 : vector<16x1xf32>
    %24 = math.rsqrt %23 : vector<16x1xf32>
    %25 = vector.broadcast %24 : vector<16x1xf32> to vector<16x64xf32>
    %26 = arith.mulf %21, %25 : vector<16x64xf32>
    %27 = vector.broadcast %6 : vector<1x64xf32> to vector<16x64xf32>
    %28 = arith.mulf %26, %27 : vector<16x64xf32>
    %29 = vector.broadcast %8 : vector<1x64xf32> to vector<16x64xf32>
    %30 = arith.addf %28, %29 : vector<16x64xf32>
    %c0_14 = arith.constant 0 : index
    %c0_15 = arith.constant 0 : index
    %c0_16 = arith.constant 0 : index
    %31 = vector.load %arg5[%c0_14, %c0_15, %c0_16] : memref<1x64x192xbf16, #tpu.memory_space<vmem>>, vector<1x64x192xbf16>
    %32 = vector.shape_cast %31 : vector<1x64x192xbf16> to vector<64x192xbf16>
    %33 = arith.truncf %30 : vector<16x64xf32> to vector<16x64xbf16>
    %cst_17 = arith.constant dense<0.000000e+00> : vector<16x192xf32>
    %34 = tpu.matmul %33, %32, %cst_17 {dimension_numbers = #tpu.dot_dimension_numbers<[1], [0], [0], [1], [0, 0, 1, 1], [], []>} : vector<16x64xbf16>, vector<64x192xbf16>, vector<16x192xf32> -> vector<16x192xf32>
    %c0_18 = arith.constant 0 : index
    %c0_19 = arith.constant 0 : index
    %c0_20 = arith.constant 0 : index
    %35 = vector.load %arg6[%c0_18, %c0_19, %c0_20] : memref<1x1x192xf32, #tpu.memory_space<vmem>>, vector<1x1x192xf32>
    %36 = vector.shape_cast %35 : vector<1x1x192xf32> to vector<1x192xf32>
    %37 = vector.broadcast %36 : vector<1x192xf32> to vector<16x192xf32>
    %38 = arith.addf %34, %37 : vector<16x192xf32>
    %39 = vector.extract_strided_slice %38 {offsets = [0, 0], sizes = [16, 32], strides = [1, 1]} : vector<16x192xf32> to vector<16x32xf32>
    %40 = vector.extract_strided_slice %38 {offsets = [0, 64], sizes = [16, 32], strides = [1, 1]} : vector<16x192xf32> to vector<16x32xf32>
    %41 = vector.extract_strided_slice %38 {offsets = [0, 128], sizes = [16, 32], strides = [1, 1]} : vector<16x192xf32> to vector<16x32xf32>
    %42 = vector.extract_strided_slice %39 {offsets = [0, 0], sizes = [8, 32], strides = [1, 1]} : vector<16x32xf32> to vector<8x32xf32>
    %43 = vector.extract_strided_slice %40 {offsets = [0, 0], sizes = [8, 32], strides = [1, 1]} : vector<16x32xf32> to vector<8x32xf32>
    %44 = vector.extract_strided_slice %41 {offsets = [0, 0], sizes = [8, 32], strides = [1, 1]} : vector<16x32xf32> to vector<8x32xf32>
    %cst_21 = arith.constant dense<0.000000e+00> : vector<8x8xf32>
    %45 = tpu.matmul %42, %43, %cst_21 {dimension_numbers = #tpu.dot_dimension_numbers<[1], [1], [0], [0], [0, 0, 1, 0], [], []>} : vector<8x32xf32>, vector<8x32xf32>, vector<8x8xf32> -> vector<8x8xf32>
    %cst_22 = arith.constant 0.176776692 : f32
    %46 = vector.broadcast %cst_22 : f32 to vector<8x8xf32>
    %47 = arith.mulf %45, %46 : vector<8x8xf32>
    %48 = vector.extract_strided_slice %4 {offsets = [0, 0], sizes = [1, 8], strides = [1, 1]} : vector<2x8xf32> to vector<1x8xf32>
    %49 = vector.broadcast %48 : vector<1x8xf32> to vector<8x8xf32>
    %50 = arith.addf %47, %49 : vector<8x8xf32>
    %cst_23 = arith.constant dense<0xFF800000> : vector<8xf32>
    %51 = vector.multi_reduction <maximumf>, %50, %cst_23 [1] : vector<8x8xf32> to vector<8xf32>
    %52 = vector.shape_cast %51 : vector<8xf32> to vector<8x1xf32>
    %53 = vector.broadcast %52 : vector<8x1xf32> to vector<8x8xf32>
    %54 = arith.subf %50, %53 : vector<8x8xf32>
    %55 = math.exp %54 : vector<8x8xf32>
    %cst_24 = arith.constant dense<0.000000e+00> : vector<8xf32>
    %56 = vector.multi_reduction <add>, %55, %cst_24 [1] : vector<8x8xf32> to vector<8xf32>
    %57 = vector.shape_cast %56 : vector<8xf32> to vector<8x1xf32>
    %58 = tpu.reciprocal %57 {approx = true} : vector<8x1xf32> -> vector<8x1xf32>
    %59 = vector.broadcast %58 : vector<8x1xf32> to vector<8x8xf32>
    %60 = arith.mulf %55, %59 : vector<8x8xf32>
    %cst_25 = arith.constant dense<0.000000e+00> : vector<8x32xf32>
    %61 = tpu.matmul %60, %44, %cst_25 {dimension_numbers = #tpu.dot_dimension_numbers<[1], [0], [0], [1], [0, 0, 1, 1], [], []>} : vector<8x8xf32>, vector<8x32xf32>, vector<8x32xf32> -> vector<8x32xf32>
    %62 = vector.extract_strided_slice %39 {offsets = [8, 0], sizes = [8, 32], strides = [1, 1]} : vector<16x32xf32> to vector<8x32xf32>
    %63 = vector.extract_strided_slice %40 {offsets = [8, 0], sizes = [8, 32], strides = [1, 1]} : vector<16x32xf32> to vector<8x32xf32>
    %64 = vector.extract_strided_slice %41 {offsets = [8, 0], sizes = [8, 32], strides = [1, 1]} : vector<16x32xf32> to vector<8x32xf32>
    %cst_26 = arith.constant dense<0.000000e+00> : vector<8x8xf32>
    %65 = tpu.matmul %62, %63, %cst_26 {dimension_numbers = #tpu.dot_dimension_numbers<[1], [1], [0], [0], [0, 0, 1, 0], [], []>} : vector<8x32xf32>, vector<8x32xf32>, vector<8x8xf32> -> vector<8x8xf32>
    %cst_27 = arith.constant 0.176776692 : f32
    %66 = vector.broadcast %cst_27 : f32 to vector<8x8xf32>
    %67 = arith.mulf %65, %66 : vector<8x8xf32>
    %68 = vector.extract_strided_slice %4 {offsets = [1, 0], sizes = [1, 8], strides = [1, 1]} : vector<2x8xf32> to vector<1x8xf32>
    %69 = vector.broadcast %68 : vector<1x8xf32> to vector<8x8xf32>
    %70 = arith.addf %67, %69 : vector<8x8xf32>
    %cst_28 = arith.constant dense<0xFF800000> : vector<8xf32>
    %71 = vector.multi_reduction <maximumf>, %70, %cst_28 [1] : vector<8x8xf32> to vector<8xf32>
    %72 = vector.shape_cast %71 : vector<8xf32> to vector<8x1xf32>
    %73 = vector.broadcast %72 : vector<8x1xf32> to vector<8x8xf32>
    %74 = arith.subf %70, %73 : vector<8x8xf32>
    %75 = math.exp %74 : vector<8x8xf32>
    %cst_29 = arith.constant dense<0.000000e+00> : vector<8xf32>
    %76 = vector.multi_reduction <add>, %75, %cst_29 [1] : vector<8x8xf32> to vector<8xf32>
    %77 = vector.shape_cast %76 : vector<8xf32> to vector<8x1xf32>
    %78 = tpu.reciprocal %77 {approx = true} : vector<8x1xf32> -> vector<8x1xf32>
    %79 = vector.broadcast %78 : vector<8x1xf32> to vector<8x8xf32>
    %80 = arith.mulf %75, %79 : vector<8x8xf32>
    %cst_30 = arith.constant dense<0.000000e+00> : vector<8x32xf32>
    %81 = tpu.matmul %80, %64, %cst_30 {dimension_numbers = #tpu.dot_dimension_numbers<[1], [0], [0], [1], [0, 0, 1, 1], [], []>} : vector<8x8xf32>, vector<8x32xf32>, vector<8x32xf32> -> vector<8x32xf32>
    %82 = tpu.concatenate %61, %81 in 0 : vector<8x32xf32>, vector<8x32xf32> -> vector<16x32xf32>
    %83 = vector.extract_strided_slice %38 {offsets = [0, 32], sizes = [16, 32], strides = [1, 1]} : vector<16x192xf32> to vector<16x32xf32>
    %84 = vector.extract_strided_slice %38 {offsets = [0, 96], sizes = [16, 32], strides = [1, 1]} : vector<16x192xf32> to vector<16x32xf32>
    %85 = vector.extract_strided_slice %38 {offsets = [0, 160], sizes = [16, 32], strides = [1, 1]} : vector<16x192xf32> to vector<16x32xf32>
    %86 = vector.extract_strided_slice %83 {offsets = [0, 0], sizes = [8, 32], strides = [1, 1]} : vector<16x32xf32> to vector<8x32xf32>
    %87 = vector.extract_strided_slice %84 {offsets = [0, 0], sizes = [8, 32], strides = [1, 1]} : vector<16x32xf32> to vector<8x32xf32>
    %88 = vector.extract_strided_slice %85 {offsets = [0, 0], sizes = [8, 32], strides = [1, 1]} : vector<16x32xf32> to vector<8x32xf32>
    %cst_31 = arith.constant dense<0.000000e+00> : vector<8x8xf32>
    %89 = tpu.matmul %86, %87, %cst_31 {dimension_numbers = #tpu.dot_dimension_numbers<[1], [1], [0], [0], [0, 0, 1, 0], [], []>} : vector<8x32xf32>, vector<8x32xf32>, vector<8x8xf32> -> vector<8x8xf32>
    %cst_32 = arith.constant 0.176776692 : f32
    %90 = vector.broadcast %cst_32 : f32 to vector<8x8xf32>
    %91 = arith.mulf %89, %90 : vector<8x8xf32>
    %92 = vector.extract_strided_slice %4 {offsets = [0, 0], sizes = [1, 8], strides = [1, 1]} : vector<2x8xf32> to vector<1x8xf32>
    %93 = vector.broadcast %92 : vector<1x8xf32> to vector<8x8xf32>
    %94 = arith.addf %91, %93 : vector<8x8xf32>
    %cst_33 = arith.constant dense<0xFF800000> : vector<8xf32>
    %95 = vector.multi_reduction <maximumf>, %94, %cst_33 [1] : vector<8x8xf32> to vector<8xf32>
    %96 = vector.shape_cast %95 : vector<8xf32> to vector<8x1xf32>
    %97 = vector.broadcast %96 : vector<8x1xf32> to vector<8x8xf32>
    %98 = arith.subf %94, %97 : vector<8x8xf32>
    %99 = math.exp %98 : vector<8x8xf32>
    %cst_34 = arith.constant dense<0.000000e+00> : vector<8xf32>
    %100 = vector.multi_reduction <add>, %99, %cst_34 [1] : vector<8x8xf32> to vector<8xf32>
    %101 = vector.shape_cast %100 : vector<8xf32> to vector<8x1xf32>
    %102 = tpu.reciprocal %101 {approx = true} : vector<8x1xf32> -> vector<8x1xf32>
    %103 = vector.broadcast %102 : vector<8x1xf32> to vector<8x8xf32>
    %104 = arith.mulf %99, %103 : vector<8x8xf32>
    %cst_35 = arith.constant dense<0.000000e+00> : vector<8x32xf32>
    %105 = tpu.matmul %104, %88, %cst_35 {dimension_numbers = #tpu.dot_dimension_numbers<[1], [0], [0], [1], [0, 0, 1, 1], [], []>} : vector<8x8xf32>, vector<8x32xf32>, vector<8x32xf32> -> vector<8x32xf32>
    %106 = vector.extract_strided_slice %83 {offsets = [8, 0], sizes = [8, 32], strides = [1, 1]} : vector<16x32xf32> to vector<8x32xf32>
    %107 = vector.extract_strided_slice %84 {offsets = [8, 0], sizes = [8, 32], strides = [1, 1]} : vector<16x32xf32> to vector<8x32xf32>
    %108 = vector.extract_strided_slice %85 {offsets = [8, 0], sizes = [8, 32], strides = [1, 1]} : vector<16x32xf32> to vector<8x32xf32>
    %cst_36 = arith.constant dense<0.000000e+00> : vector<8x8xf32>
    %109 = tpu.matmul %106, %107, %cst_36 {dimension_numbers = #tpu.dot_dimension_numbers<[1], [1], [0], [0], [0, 0, 1, 0], [], []>} : vector<8x32xf32>, vector<8x32xf32>, vector<8x8xf32> -> vector<8x8xf32>
    %cst_37 = arith.constant 0.176776692 : f32
    %110 = vector.broadcast %cst_37 : f32 to vector<8x8xf32>
    %111 = arith.mulf %109, %110 : vector<8x8xf32>
    %112 = vector.extract_strided_slice %4 {offsets = [1, 0], sizes = [1, 8], strides = [1, 1]} : vector<2x8xf32> to vector<1x8xf32>
    %113 = vector.broadcast %112 : vector<1x8xf32> to vector<8x8xf32>
    %114 = arith.addf %111, %113 : vector<8x8xf32>
    %cst_38 = arith.constant dense<0xFF800000> : vector<8xf32>
    %115 = vector.multi_reduction <maximumf>, %114, %cst_38 [1] : vector<8x8xf32> to vector<8xf32>
    %116 = vector.shape_cast %115 : vector<8xf32> to vector<8x1xf32>
    %117 = vector.broadcast %116 : vector<8x1xf32> to vector<8x8xf32>
    %118 = arith.subf %114, %117 : vector<8x8xf32>
    %119 = math.exp %118 : vector<8x8xf32>
    %cst_39 = arith.constant dense<0.000000e+00> : vector<8xf32>
    %120 = vector.multi_reduction <add>, %119, %cst_39 [1] : vector<8x8xf32> to vector<8xf32>
    %121 = vector.shape_cast %120 : vector<8xf32> to vector<8x1xf32>
    %122 = tpu.reciprocal %121 {approx = true} : vector<8x1xf32> -> vector<8x1xf32>
    %123 = vector.broadcast %122 : vector<8x1xf32> to vector<8x8xf32>
    %124 = arith.mulf %119, %123 : vector<8x8xf32>
    %cst_40 = arith.constant dense<0.000000e+00> : vector<8x32xf32>
    %125 = tpu.matmul %124, %108, %cst_40 {dimension_numbers = #tpu.dot_dimension_numbers<[1], [0], [0], [1], [0, 0, 1, 1], [], []>} : vector<8x8xf32>, vector<8x32xf32>, vector<8x32xf32> -> vector<8x32xf32>
    %126 = tpu.concatenate %105, %125 in 0 : vector<8x32xf32>, vector<8x32xf32> -> vector<16x32xf32>
    %127 = tpu.concatenate %82, %126 in 1 : vector<16x32xf32>, vector<16x32xf32> -> vector<16x64xf32>
    %c0_41 = arith.constant 0 : index
    %c0_42 = arith.constant 0 : index
    %c0_43 = arith.constant 0 : index
    %128 = vector.load %arg7[%c0_41, %c0_42, %c0_43] : memref<1x64x64xbf16, #tpu.memory_space<vmem>>, vector<1x64x64xbf16>
    %129 = vector.shape_cast %128 : vector<1x64x64xbf16> to vector<64x64xbf16>
    %130 = arith.truncf %127 : vector<16x64xf32> to vector<16x64xbf16>
    %cst_44 = arith.constant dense<0.000000e+00> : vector<16x64xf32>
    %131 = tpu.matmul %130, %129, %cst_44 {dimension_numbers = #tpu.dot_dimension_numbers<[1], [0], [0], [1], [0, 0, 1, 1], [], []>} : vector<16x64xbf16>, vector<64x64xbf16>, vector<16x64xf32> -> vector<16x64xf32>
    %c0_45 = arith.constant 0 : index
    %c0_46 = arith.constant 0 : index
    %c0_47 = arith.constant 0 : index
    %132 = vector.load %arg8[%c0_45, %c0_46, %c0_47] : memref<1x1x64xf32, #tpu.memory_space<vmem>>, vector<1x1x64xf32>
    %133 = vector.shape_cast %132 : vector<1x1x64xf32> to vector<1x64xf32>
    %134 = vector.broadcast %133 : vector<1x64xf32> to vector<16x64xf32>
    %135 = arith.addf %131, %134 : vector<16x64xf32>
    %136 = arith.addf %3, %135 : vector<16x64xf32>
    %c0_48 = arith.constant 0 : index
    %c0_49 = arith.constant 0 : index
    %c0_50 = arith.constant 0 : index
    %137 = vector.load %arg15[%c0_48, %c0_49, %c0_50] : memref<1x1x64xf32, #tpu.memory_space<vmem>>, vector<1x1x64xf32>
    %138 = vector.shape_cast %137 : vector<1x1x64xf32> to vector<1x64xf32>
    %c0_51 = arith.constant 0 : index
    %c0_52 = arith.constant 0 : index
    %c0_53 = arith.constant 0 : index
    %139 = vector.load %arg16[%c0_51, %c0_52, %c0_53] : memref<1x1x64xf32, #tpu.memory_space<vmem>>, vector<1x1x64xf32>
    %140 = vector.shape_cast %139 : vector<1x1x64xf32> to vector<1x64xf32>
    %cst_54 = arith.constant dense<0.000000e+00> : vector<16xf32>
    %141 = vector.multi_reduction <add>, %136, %cst_54 [1] : vector<16x64xf32> to vector<16xf32>
    %142 = vector.shape_cast %141 : vector<16xf32> to vector<16x1xf32>
    %cst_55 = arith.constant 6.400000e+01 : f32
    %143 = vector.broadcast %cst_55 : f32 to vector<16x1xf32>
    %144 = arith.divf %142, %143 : vector<16x1xf32>
    %145 = vector.broadcast %144 : vector<16x1xf32> to vector<16x64xf32>
    %146 = arith.subf %136, %145 : vector<16x64xf32>
    %147 = arith.mulf %146, %146 : vector<16x64xf32>
    %cst_56 = arith.constant dense<0.000000e+00> : vector<16xf32>
    %148 = vector.multi_reduction <add>, %147, %cst_56 [1] : vector<16x64xf32> to vector<16xf32>
    %149 = vector.shape_cast %148 : vector<16xf32> to vector<16x1xf32>
    %cst_57 = arith.constant 6.400000e+01 : f32
    %150 = vector.broadcast %cst_57 : f32 to vector<16x1xf32>
    %151 = arith.divf %149, %150 : vector<16x1xf32>
    %152 = vector.broadcast %144 : vector<16x1xf32> to vector<16x64xf32>
    %153 = arith.subf %136, %152 : vector<16x64xf32>
    %cst_58 = arith.constant 9.99999996E-13 : f32
    %154 = vector.broadcast %cst_58 : f32 to vector<16x1xf32>
    %155 = arith.addf %151, %154 : vector<16x1xf32>
    %156 = math.rsqrt %155 : vector<16x1xf32>
    %157 = vector.broadcast %156 : vector<16x1xf32> to vector<16x64xf32>
    %158 = arith.mulf %153, %157 : vector<16x64xf32>
    %159 = vector.broadcast %138 : vector<1x64xf32> to vector<16x64xf32>
    %160 = arith.mulf %158, %159 : vector<16x64xf32>
    %161 = vector.broadcast %140 : vector<1x64xf32> to vector<16x64xf32>
    %162 = arith.addf %160, %161 : vector<16x64xf32>
    %c0_59 = arith.constant 0 : index
    %c0_60 = arith.constant 0 : index
    %c0_61 = arith.constant 0 : index
    %163 = vector.load %arg11[%c0_59, %c0_60, %c0_61] : memref<1x64x128xbf16, #tpu.memory_space<vmem>>, vector<1x64x128xbf16>
    %164 = vector.shape_cast %163 : vector<1x64x128xbf16> to vector<64x128xbf16>
    %165 = arith.truncf %162 : vector<16x64xf32> to vector<16x64xbf16>
    %cst_62 = arith.constant dense<0.000000e+00> : vector<16x128xf32>
    %166 = tpu.matmul %165, %164, %cst_62 {dimension_numbers = #tpu.dot_dimension_numbers<[1], [0], [0], [1], [0, 0, 1, 1], [], []>} : vector<16x64xbf16>, vector<64x128xbf16>, vector<16x128xf32> -> vector<16x128xf32>
    %c0_63 = arith.constant 0 : index
    %c0_64 = arith.constant 0 : index
    %c0_65 = arith.constant 0 : index
    %167 = vector.load %arg12[%c0_63, %c0_64, %c0_65] : memref<1x1x128xf32, #tpu.memory_space<vmem>>, vector<1x1x128xf32>
    %168 = vector.shape_cast %167 : vector<1x1x128xf32> to vector<1x128xf32>
    %169 = vector.broadcast %168 : vector<1x128xf32> to vector<16x128xf32>
    %170 = arith.addf %166, %169 : vector<16x128xf32>
    %171 = arith.mulf %170, %170 : vector<16x128xf32>
    %172 = arith.mulf %170, %171 : vector<16x128xf32>
    %cst_66 = arith.constant 4.471500e-02 : f32
    %173 = vector.broadcast %cst_66 : f32 to vector<16x128xf32>
    %174 = arith.mulf %173, %172 : vector<16x128xf32>
    %175 = arith.addf %170, %174 : vector<16x128xf32>
    %cst_67 = arith.constant 0.797884583 : f32
    %176 = vector.broadcast %cst_67 : f32 to vector<16x128xf32>
    %177 = arith.mulf %176, %175 : vector<16x128xf32>
    %178 = math.tanh %177 : vector<16x128xf32>
    %cst_68 = arith.constant 1.000000e+00 : f32
    %179 = vector.broadcast %cst_68 : f32 to vector<16x128xf32>
    %180 = arith.addf %179, %178 : vector<16x128xf32>
    %cst_69 = arith.constant 5.000000e-01 : f32
    %181 = vector.broadcast %cst_69 : f32 to vector<16x128xf32>
    %182 = arith.mulf %181, %180 : vector<16x128xf32>
    %183 = arith.mulf %170, %182 : vector<16x128xf32>
    %c0_70 = arith.constant 0 : index
    %c0_71 = arith.constant 0 : index
    %c0_72 = arith.constant 0 : index
    %184 = vector.load %arg13[%c0_70, %c0_71, %c0_72] : memref<1x128x64xbf16, #tpu.memory_space<vmem>>, vector<1x128x64xbf16>
    %185 = vector.shape_cast %184 : vector<1x128x64xbf16> to vector<128x64xbf16>
    %186 = arith.truncf %183 : vector<16x128xf32> to vector<16x128xbf16>
    %cst_73 = arith.constant dense<0.000000e+00> : vector<16x64xf32>
    %187 = tpu.matmul %186, %185, %cst_73 {dimension_numbers = #tpu.dot_dimension_numbers<[1], [0], [0], [1], [0, 0, 1, 1], [], []>} : vector<16x128xbf16>, vector<128x64xbf16>, vector<16x64xf32> -> vector<16x64xf32>
    %c0_74 = arith.constant 0 : index
    %c0_75 = arith.constant 0 : index
    %c0_76 = arith.constant 0 : index
    %188 = vector.load %arg14[%c0_74, %c0_75, %c0_76] : memref<1x1x64xf32, #tpu.memory_space<vmem>>, vector<1x1x64xf32>
    %189 = vector.shape_cast %188 : vector<1x1x64xf32> to vector<1x64xf32>
    %190 = vector.broadcast %189 : vector<1x64xf32> to vector<16x64xf32>
    %191 = arith.addf %187, %190 : vector<16x64xf32>
    %192 = arith.addf %136, %191 : vector<16x64xf32>
    %c0_77 = arith.constant 0 : index
    %c0_78 = arith.constant 0 : index
    %193 = vector.load %arg17[%c0_77, %c0_78] : memref<16x64xf32, #tpu.memory_space<vmem>>, vector<16x64xf32>
    tpu.vector_store %arg17[%c0_77, %c0_78], %192 {strides = array<i32>} : memref<16x64xf32, #tpu.memory_space<vmem>>, vector<16x64xf32>,
    return
  }
  func.func @transform_0(%arg0: i32) -> (i32, i32) {
    %c0_i32 = arith.constant 0 : i32
    %c0_i32_0 = arith.constant 0 : i32
    %c0_i32_1 = arith.constant 0 : i32
    return %c0_i32, %c0_i32_0 : i32, i32
  }
  func.func @transform_1(%arg0: i32) -> (i32, i32) {
    %c0_i32 = arith.constant 0 : i32
    %c0_i32_0 = arith.constant 0 : i32
    %c0_i32_1 = arith.constant 0 : i32
    return %c0_i32, %c0_i32_0 : i32, i32
  }
  func.func @transform_2(%arg0: i32) -> (i32, i32) {
    %c0_i32 = arith.constant 0 : i32
    %c0_i32_0 = arith.constant 0 : i32
    %c0_i32_1 = arith.constant 0 : i32
    return %c0_i32, %c0_i32_0 : i32, i32
  }
  func.func @transform_3(%arg0: i32) -> (i32, i32) {
    %c0_i32 = arith.constant 0 : i32
    %c0_i32_0 = arith.constant 0 : i32
    %c0_i32_1 = arith.constant 0 : i32
    return %c0_i32, %c0_i32_0 : i32, i32
  }
  func.func @transform_4(%arg0: i32) -> (i32, i32, i32) {
    %c0_i32 = arith.constant 0 : i32
    %c0_i32_0 = arith.constant 0 : i32
    %c0_i32_1 = arith.constant 0 : i32
    return %arg0, %c0_i32, %c0_i32_0 : i32, i32, i32
  }
  func.func @transform_5(%arg0: i32) -> (i32, i32, i32) {
    %c0_i32 = arith.constant 0 : i32
    %c0_i32_0 = arith.constant 0 : i32
    %c0_i32_1 = arith.constant 0 : i32
    return %arg0, %c0_i32, %c0_i32_0 : i32, i32, i32
  }
  func.func @transform_6(%arg0: i32) -> (i32, i32, i32) {
    %c0_i32 = arith.constant 0 : i32
    %c0_i32_0 = arith.constant 0 : i32
    %c0_i32_1 = arith.constant 0 : i32
    return %arg0, %c0_i32, %c0_i32_0 : i32, i32, i32
  }
  func.func @transform_7(%arg0: i32) -> (i32, i32, i32) {
    %c0_i32 = arith.constant 0 : i32
    %c0_i32_0 = arith.constant 0 : i32
    %c0_i32_1 = arith.constant 0 : i32
    return %arg0, %c0_i32, %c0_i32_0 : i32, i32, i32
  }
  func.func @transform_8(%arg0: i32) -> (i32, i32, i32) {
    %c0_i32 = arith.constant 0 : i32
    %c0_i32_0 = arith.constant 0 : i32
    %c0_i32_1 = arith.constant 0 : i32
    return %arg0, %c0_i32, %c0_i32_0 : i32, i32, i32
  }
  func.func @transform_9(%arg0: i32) -> (i32, i32, i32) {
    %c0_i32 = arith.constant 0 : i32
    %c0_i32_0 = arith.constant 0 : i32
    %c0_i32_1 = arith.constant 0 : i32
    return %arg0, %c0_i32, %c0_i32_0 : i32, i32, i32
  }
  func.func @transform_10(%arg0: i32) -> (i32, i32, i32) {
    %c0_i32 = arith.constant 0 : i32
    %c0_i32_0 = arith.constant 0 : i32
    %c0_i32_1 = arith.constant 0 : i32
    return %arg0, %c0_i32, %c0_i32_0 : i32, i32, i32
  }
  func.func @transform_11(%arg0: i32) -> (i32, i32, i32) {
    %c0_i32 = arith.constant 0 : i32
    %c0_i32_0 = arith.constant 0 : i32
    %c0_i32_1 = arith.constant 0 : i32
    return %arg0, %c0_i32, %c0_i32_0 : i32, i32, i32
  }
  func.func @transform_12(%arg0: i32) -> (i32, i32, i32) {
    %c0_i32 = arith.constant 0 : i32
    %c0_i32_0 = arith.constant 0 : i32
    %c0_i32_1 = arith.constant 0 : i32
    return %arg0, %c0_i32, %c0_i32_0 : i32, i32, i32
  }
  func.func @transform_13(%arg0: i32) -> (i32, i32, i32) {
    %c0_i32 = arith.constant 0 : i32
    %c0_i32_0 = arith.constant 0 : i32
    %c0_i32_1 = arith.constant 0 : i32
    return %arg0, %c0_i32, %c0_i32_0 : i32, i32, i32
  }
  func.func @transform_14(%arg0: i32) -> (i32, i32, i32) {
    %c0_i32 = arith.constant 0 : i32
    %c0_i32_0 = arith.constant 0 : i32
    %c0_i32_1 = arith.constant 0 : i32
    return %arg0, %c0_i32, %c0_i32_0 : i32, i32, i32
  }
  func.func @transform_15(%arg0: i32) -> (i32, i32, i32) {
    %c0_i32 = arith.constant 0 : i32
    %c0_i32_0 = arith.constant 0 : i32
    %c0_i32_1 = arith.constant 0 : i32
    return %arg0, %c0_i32, %c0_i32_0 : i32, i32, i32
  }
  func.func @transform_16(%arg0: i32) -> (i32, i32) {
    %c0_i32 = arith.constant 0 : i32
    %c0_i32_0 = arith.constant 0 : i32
    %c0_i32_1 = arith.constant 0 : i32
    return %c0_i32, %c0_i32_0 : i32, i32
  }
}

</mosaic_0001>

<llo_original>
// kernel: bert_vit_forward.9
$region0: #{bert_vit_forward.9}
  #allocation0 [shape = 'u32[]', space=smem, size = 0x4, offset = 0x4, fixed_abs, tag = 'smem constant byte address 0x4 - core index']
  #allocation1 [shape = 'u32[144,128]{1,0:T(1,128)}', space=vmem, size = 0x12000, scoped, tag = 'internal scratch']
  %s0 = inlined_call_operand.vmem [shape: f32[2,64], index: 0, kind: input, shape index: {}]
  %s1 = inlined_call_operand.vmem [shape: f32[2,64], index: 1, kind: input, shape index: {}]
  %s2 = inlined_call_operand.vmem [shape: f32[2,64], index: 2, kind: input, shape index: {}]
  %s3 = inlined_call_operand.vmem [shape: f32[64,64], index: 3, kind: input, shape index: {}]
  %s4 = inlined_call_operand.vmem [shape: f32[1,64], index: 4, kind: input, shape index: {}]
  %s5 = inlined_call_operand.vmem [shape: f32[1,64], index: 5, kind: input, shape index: {}]
  %s6 = inlined_call_operand.vmem [shape: f32[1,64], index: 6, kind: input, shape index: {}]
  %s7 = inlined_call_operand.vmem [shape: f32[64,64], index: 7, kind: input, shape index: {}]
  %s8 = inlined_call_operand.vmem [shape: f32[1,64], index: 8, kind: input, shape index: {}]
  %s9 = inlined_call_operand.vmem [shape: f32[3,64,64], index: 9, kind: input, shape index: {}]
  %s10 = inlined_call_operand.vmem [shape: f32[3,1,64], index: 10, kind: input, shape index: {}]
  %s11 = inlined_call_operand.vmem [shape: f32[3,1,64], index: 11, kind: input, shape index: {}]
  %s12 = inlined_call_operand.vmem [shape: f32[3,1,64], index: 12, kind: input, shape index: {}]
  %s13 = inlined_call_operand.vmem [shape: f32[128,3], index: 13, kind: input, shape index: {}]
  %s14 = inlined_call_operand.vmem [shape: f32[1,3], index: 14, kind: input, shape index: {}]
  %s15 = inlined_call_operand.hbm [shape: f32[2,3], index: 15, kind: output, shape index: {0}]
  %s16 = inlined_call_operand.hbm [shape: f32[2,64], index: 16, kind: output, shape index: {1}]
  %s17 = inlined_call_operand.hbm [shape: f32[2,64], index: 17, kind: output, shape index: {2}]
  %s18 = inlined_call_operand.hbm [shape: f32[2,64], index: 18, kind: output, shape index: {3}]
  %19 = xla_tuple %s15, %s16, %s17, %s18
  %s20 = sld [smem:[#allocation0]]
  $region94: #{bert_vit_forward.9} parent=0
    _
  %s22 = ssub.s32 1, %s20
  %s23 = scalar_select 0, %s22, %s20
  $region1: #{bert_vit_forward.9} parent=0
    #allocation2 [shape = 'u8[1024]{0}', space=vmem, size = 0x400, scoped, tag = 'output window, operand 0, single buffered']
    #allocation3 [shape = 's32[1]{0}', space=sflag, size = 0x4, scoped, tag = 'scoped memory for bert_vit_forward.9']
    #allocation4 [shape = 'u8[1024]{0}', space=vmem, size = 0x400, scoped, tag = 'output window, operand 1, single buffered']
    #allocation5 [shape = 's32[1]{0}', space=sflag, size = 0x4, scoped, tag = 'scoped memory for bert_vit_forward.9']
    #allocation6 [shape = 'u8[1024]{0}', space=vmem, size = 0x400, scoped, tag = 'output window, operand 2, single buffered']
    #allocation7 [shape = 'u8[1024]{0}', space=vmem, size = 0x400, scoped, tag = 'output window, operand 3, single buffered']
    #allocation8 [shape = 's32[1]{0}', space=sflag, size = 0x4, scoped, tag = 'scoped memory for bert_vit_forward.9']
    %24 = vsyncpa [#allocation3], 0
    %25 = vsyncpa [#allocation5], 0
    %26 = vsyncpa [#allocation8], 0
    // Predicated region
    $region2: #{bert_vit_forward.9} parent=1 // pred_check
      _
    $region3: #{bert_vit_forward.9} parent=1 // pred_check_branch
      %28 = sbr.rel (0) target = $region5
    $region4: #{bert_vit_forward.9} parent=1 // pred_region
      _
    $region5: #{bert_vit_forward.9} parent=1 // pred_fallthru
      _
    // Predicated region
    $region6: #{bert_vit_forward.9} parent=1 // pred_check
      _
    $region7: #{bert_vit_forward.9} parent=1 // pred_check_branch
      %30 = sbr.rel (0) target = $region9
    $region8: #{bert_vit_forward.9} parent=1 // pred_region
      _
    $region9: #{bert_vit_forward.9} parent=1 // pred_fallthru
      _
    // Predicated region
    $region10: #{bert_vit_forward.9} parent=1 // pred_check
      _
    $region11: #{bert_vit_forward.9} parent=1 // pred_check_branch
      %32 = sbr.rel (0) target = $region13
    $region12: #{bert_vit_forward.9} parent=1 // pred_region
      _
    $region13: #{bert_vit_forward.9} parent=1 // pred_fallthru
      _
    // Predicated region
    $region14: #{bert_vit_forward.9} parent=1 // pred_check
      _
    $region15: #{bert_vit_forward.9} parent=1 // pred_check_branch
      %34 = sbr.rel (0) target = $region17
    $region16: #{bert_vit_forward.9} parent=1 // pred_region
      _
    $region17: #{bert_vit_forward.9} parent=1 // pred_fallthru
      _
    // Predicated region
    $region18: #{bert_vit_forward.9} parent=1 // pred_check
      _
    $region19: #{bert_vit_forward.9} parent=1 // pred_check_branch
      %36 = sbr.rel (0) target = $region21
    $region20: #{bert_vit_forward.9} parent=1 // pred_region
      _
    $region21: #{bert_vit_forward.9} parent=1 // pred_fallthru
      _
    // Predicated region
    $region22: #{bert_vit_forward.9} parent=1 // pred_check
      _
    $region23: #{bert_vit_forward.9} parent=1 // pred_check_branch
      %38 = sbr.rel (0) target = $region25
    $region24: #{bert_vit_forward.9} parent=1 // pred_region
      _
    $region25: #{bert_vit_forward.9} parent=1 // pred_fallthru
      _
    // Predicated region
    $region26: #{bert_vit_forward.9} parent=1 // pred_check
      _
    $region27: #{bert_vit_forward.9} parent=1 // pred_check_branch
      %40 = sbr.rel (0) target = $region29
    $region28: #{bert_vit_forward.9} parent=1 // pred_region
      _
    $region29: #{bert_vit_forward.9} parent=1 // pred_fallthru
      _
    // Predicated region
    $region30: #{bert_vit_forward.9} parent=1 // pred_check
      _
    $region31: #{bert_vit_forward.9} parent=1 // pred_check_branch
      %42 = sbr.rel (0) target = $region33
    $region32: #{bert_vit_forward.9} parent=1 // pred_region
      _
    $region33: #{bert_vit_forward.9} parent=1 // pred_fallthru
      _
    // Predicated region
    $region34: #{bert_vit_forward.9} parent=1 // pred_check
      _
    $region35: #{bert_vit_forward.9} parent=1 // pred_check_branch
      %44 = sbr.rel (0) target = $region37
    $region36: #{bert_vit_forward.9} parent=1 // pred_region
      _
    $region37: #{bert_vit_forward.9} parent=1 // pred_fallthru
      _
    // Predicated region
    $region38: #{bert_vit_forward.9} parent=1 // pred_check
      _
    $region39: #{bert_vit_forward.9} parent=1 // pred_check_branch
      %46 = sbr.rel (0) target = $region41
    $region40: #{bert_vit_forward.9} parent=1 // pred_region
      _
    $region41: #{bert_vit_forward.9} parent=1 // pred_fallthru
      _
    // Predicated region
    $region42: #{bert_vit_forward.9} parent=1 // pred_check
      _
    $region43: #{bert_vit_forward.9} parent=1 // pred_check_branch
      %48 = sbr.rel (0) target = $region45
    $region44: #{bert_vit_forward.9} parent=1 // pred_region
      _
    $region45: #{bert_vit_forward.9} parent=1 // pred_fallthru
      _
    // Predicated region
    $region46: #{bert_vit_forward.9} parent=1 // pred_check
      _
    $region47: #{bert_vit_forward.9} parent=1 // pred_check_branch
      %50 = sbr.rel (0) target = $region49
    $region48: #{bert_vit_forward.9} parent=1 // pred_region
      _
    $region49: #{bert_vit_forward.9} parent=1 // pred_fallthru
      _
    // Predicated region
    $region50: #{bert_vit_forward.9} parent=1 // pred_check
      _
    $region51: #{bert_vit_forward.9} parent=1 // pred_check_branch
      %52 = sbr.rel (0) target = $region53
    $region52: #{bert_vit_forward.9} parent=1 // pred_region
      _
    $region53: #{bert_vit_forward.9} parent=1 // pred_fallthru
      _
    // Predicated region
    $region54: #{bert_vit_forward.9} parent=1 // pred_check
      _
    $region55: #{bert_vit_forward.9} parent=1 // pred_check_branch
      %54 = sbr.rel (0) target = $region57
    $region56: #{bert_vit_forward.9} parent=1 // pred_region
      _
    $region57: #{bert_vit_forward.9} parent=1 // pred_fallthru
      _
    // Predicated region
    $region58: #{bert_vit_forward.9} parent=1 // pred_check
      _
    $region59: #{bert_vit_forward.9} parent=1 // pred_check_branch
      %56 = sbr.rel (0) target = $region61
    $region60: #{bert_vit_forward.9} parent=1 // pred_region
      _
    $region61: #{bert_vit_forward.9} parent=1 // pred_fallthru
      _
    %v57 = vld [vmem:[%s0] sm:$0x3]
    %v58 = vld [vmem:[%s3] sm:$0xff]
    %v59 = vld [vmem:[%s3 + $0x8] sm:$0xff]
    %v60 = vld [vmem:[%s3 + $0x10] sm:$0xff]
    %v61 = vld [vmem:[%s3 + $0x18] sm:$0xff]
    %v62 = vld [vmem:[%s3 + $0x20] sm:$0xff]
    %v63 = vld [vmem:[%s3 + $0x28] sm:$0xff]
    %v64 = vld [vmem:[%s3 + $0x30] sm:$0xff]
    %v65 = vld [vmem:[%s3 + $0x38] sm:$0xff]
    %v66 = vld [vmem:[%s4] sm:$0x1]
    %v68 = vlaneseq
    %v69 = vshrl.u32 %v68, 7
    %v70 = vsub.s32 0, %v69
    %v71 = vrot.slane %v66, %v70
    %vm73 = vcmask 523264
    %v75 = vsel %vm73, %v57, 0
    %77 = vmatprep.subr.mxu0 0.0
    %78 = vmatpush1.msra.mxu0 %v58
    %79 = vmatprep.subr.mxu0 0.0
    %80 = vmatpush1.msra.mxu0 %v59
    %81 = vmatprep.subr.mxu0 0.0
    %82 = vmatpush1.msra.mxu0 %v60
    %83 = vmatprep.subr.mxu0 0.0
    %84 = vmatpush1.msra.mxu0 %v61
    %85 = vmatprep.subr.mxu0 0.0
    %86 = vmatpush1.msra.mxu0 %v62
    %87 = vmatprep.subr.mxu0 0.0
    %88 = vmatpush1.msra.mxu0 %v63
    %89 = vmatprep.subr.mxu0 0.0
    %90 = vmatpush1.msra.mxu0 %v64
    %91 = vmatprep.subr.mxu0 0.0
    %92 = vmatpush1.msra.mxu0 %v65
    %93 = vmatprep.subr.mxu0 0.0
    %94 = vmatpush1.msra.mxu0 0.0
    %95 = vmatprep.subr.mxu0 0.0
    %96 = vmatpush1.msra.mxu0 0.0
    %97 = vmatprep.subr.mxu0 0.0
    %98 = vmatpush1.msra.mxu0 0.0
    %99 = vmatprep.subr.mxu0 0.0
    %100 = vmatpush1.msra.mxu0 0.0
    %101 = vmatprep.subr.mxu0 0.0
    %102 = vmatpush1.msra.mxu0 0.0
    %103 = vmatprep.subr.mxu0 0.0
    %104 = vmatpush1.msra.mxu0 0.0
    %105 = vmatprep.subr.mxu0 0.0
    %106 = vmatpush1.msra.mxu0 0.0
    %107 = vmatprep.subr.mxu0 0.0
    %108 = vmatpush1.msra.mxu0 0.0
    %109 = vmatprep.subr.mxu0 0.0
    %110 = vmatpush1.msra.mxu0 0.0
    %111 = vmatprep.subr.mxu0 0.0
    %112 = vmatpush1.msra.mxu0 0.0
    %113 = vmatprep.subr.mxu0 0.0
    %114 = vmatpush1.msra.mxu0 0.0
    %115 = vmatprep.subr.mxu0 0.0
    %116 = vmatpush1.msra.mxu0 0.0
    %117 = vmatprep.subr.mxu0 0.0
    %118 = vmatpush1.msra.mxu0 0.0
    %119 = vmatprep.subr.mxu0 0.0
    %120 = vmatpush1.msra.mxu0 0.0
    %121 = vmatprep.subr.mxu0 0.0
    %122 = vmatpush1.msra.mxu0 0.0
    %123 = vmatprep.subr.mxu0 0.0
    %124 = vmatpush1.msra.mxu0 0.0
    %125 = vmatprep.subr.mxu0 0.0
    %126 = vmatpush1.msra.mxu0 0.0
    %127 = vmatprep.subr.mxu0 0.0
    %128 = vmatpush1.msra.mxu0 0.0
    %129 = vmatprep.subr.mxu0 0.0
    %130 = vmatpush1.msra.mxu0 0.0
    %131 = vmatprep.subr.mxu0 0.0
    %132 = vmatpush1.msra.mxu0 0.0
    %133 = vmatprep.subr.mxu0 0.0
    %134 = vmatpush1.msra.mxu0 0.0
    %135 = vmatprep.subr.mxu0 0.0
    %136 = vmatpush1.msra.mxu0 0.0
    %137 = vmatprep.subr.mxu0 0.0
    %138 = vmatpush1.msra.mxu0 0.0
    %139 = vmatprep.subr.mxu0 0.0
    %140 = vmatpush1.msra.mxu0 0.0
    %141 = vmatprep.mubr.f32.mxu0 0.0
    %142 = vmatmul.mubr.f32.gmra.mrb[0].mxu0 %v75
    %v143 = vpop.f32.mrb[0].mxu0
    %v144 = vadd.f32 %v71, %v143
    %v145 = vpop.f32.mrb[0].mxu0
    %146 = vdwg.mxu0
    %v147 = vtanh.pop %v144
    %v148 = vld [vmem:[%s1] sm:$0x3]
    %vm149 = vcmask 517120
    %v150 = vsel %vm149, %v148, 0.0
    %151 = vadd.xlane.f32.xlu0 %v150
    %v152 = vpop.xlane.xlu0 %151
    %v153 = vrcp.pop 64.0
    %v154 = vmul.f32 %v152, %v153
    %v155 = vsub.f32 %v148, %v154
    %v156 = vmul.f32 %v155, %v155
    %v157 = vsel %vm149, %v156, 0.0
    %158 = vadd.xlane.f32.xlu0 %v157
    %v159 = vpop.xlane.xlu0 %158
    %v160 = vmul.f32 %v159, %v153
    %v161 = vadd.f32 %v160, 1e-12
    %v162 = vrsqrt.pop %v161
    %v163 = vmul.f32 %v155, %v162
    %v164 = vld [vmem:[%s5] sm:$0x1]
    %v166 = vlaneseq
    %v167 = vshrl.u32 %v166, 7
    %v168 = vsub.s32 0, %v167
    %v169 = vrot.slane %v164, %v168
    %v171 = vmul.f32 %v163, %v169
    %v172 = vld [vmem:[%s6] sm:$0x1]
    %v174 = vlaneseq
    %v175 = vshrl.u32 %v174, 7
    %v176 = vsub.s32 0, %v175
    %v177 = vrot.slane %v172, %v176
    %v179 = vadd.f32 %v171, %v177
    %v180 = vld [vmem:[%s7] sm:$0xff]
    %v181 = vld [vmem:[%s7 + $0x8] sm:$0xff]
    %v182 = vld [vmem:[%s7 + $0x10] sm:$0xff]
    %v183 = vld [vmem:[%s7 + $0x18] sm:$0xff]
    %v184 = vld [vmem:[%s7 + $0x20] sm:$0xff]
    %v185 = vld [vmem:[%s7 + $0x28] sm:$0xff]
    %v186 = vld [vmem:[%s7 + $0x30] sm:$0xff]
    %v187 = vld [vmem:[%s7 + $0x38] sm:$0xff]
    %v188 = vld [vmem:[%s8] sm:$0x1]
    %v190 = vlaneseq
    %v191 = vshrl.u32 %v190, 7
    %v192 = vsub.s32 0, %v191
    %v193 = vrot.slane %v188, %v192
    %v196 = vsel %vm73, %v179, 0
    %198 = vmatprep.subr.mxu0 0.0
    %199 = vmatpush1.msra.mxu0 %v180
    %200 = vmatprep.subr.mxu0 0.0
    %201 = vmatpush1.msra.mxu0 %v181
    %202 = vmatprep.subr.mxu0 0.0
    %203 = vmatpush1.msra.mxu0 %v182
    %204 = vmatprep.subr.mxu0 0.0
    %205 = vmatpush1.msra.mxu0 %v183
    %206 = vmatprep.subr.mxu0 0.0
    %207 = vmatpush1.msra.mxu0 %v184
    %208 = vmatprep.subr.mxu0 0.0
    %209 = vmatpush1.msra.mxu0 %v185
    %210 = vmatprep.subr.mxu0 0.0
    %211 = vmatpush1.msra.mxu0 %v186
    %212 = vmatprep.subr.mxu0 0.0
    %213 = vmatpush1.msra.mxu0 %v187
    %214 = vmatprep.subr.mxu0 0.0
    %215 = vmatpush1.msra.mxu0 0.0
    %216 = vmatprep.subr.mxu0 0.0
    %217 = vmatpush1.msra.mxu0 0.0
    %218 = vmatprep.subr.mxu0 0.0
    %219 = vmatpush1.msra.mxu0 0.0
    %220 = vmatprep.subr.mxu0 0.0
    %221 = vmatpush1.msra.mxu0 0.0
    %222 = vmatprep.subr.mxu0 0.0
    %223 = vmatpush1.msra.mxu0 0.0
    %224 = vmatprep.subr.mxu0 0.0
    %225 = vmatpush1.msra.mxu0 0.0
    %226 = vmatprep.subr.mxu0 0.0
    %227 = vmatpush1.msra.mxu0 0.0
    %228 = vmatprep.subr.mxu0 0.0
    %229 = vmatpush1.msra.mxu0 0.0
    %230 = vmatprep.subr.mxu0 0.0
    %231 = vmatpush1.msra.mxu0 0.0
    %232 = vmatprep.subr.mxu0 0.0
    %233 = vmatpush1.msra.mxu0 0.0
    %234 = vmatprep.subr.mxu0 0.0
    %235 = vmatpush1.msra.mxu0 0.0
    %236 = vmatprep.subr.mxu0 0.0
    %237 = vmatpush1.msra.mxu0 0.0
    %238 = vmatprep.subr.mxu0 0.0
    %239 = vmatpush1.msra.mxu0 0.0
    %240 = vmatprep.subr.mxu0 0.0
    %241 = vmatpush1.msra.mxu0 0.0
    %242 = vmatprep.subr.mxu0 0.0
    %243 = vmatpush1.msra.mxu0 0.0
    %244 = vmatprep.subr.mxu0 0.0
    %245 = vmatpush1.msra.mxu0 0.0
    %246 = vmatprep.subr.mxu0 0.0
    %247 = vmatpush1.msra.mxu0 0.0
    %248 = vmatprep.subr.mxu0 0.0
    %249 = vmatpush1.msra.mxu0 0.0
    %250 = vmatprep.subr.mxu0 0.0
    %251 = vmatpush1.msra.mxu0 0.0
    %252 = vmatprep.subr.mxu0 0.0
    %253 = vmatpush1.msra.mxu0 0.0
    %254 = vmatprep.subr.mxu0 0.0
    %255 = vmatpush1.msra.mxu0 0.0
    %256 = vmatprep.subr.mxu0 0.0
    %257 = vmatpush1.msra.mxu0 0.0
    %258 = vmatprep.subr.mxu0 0.0
    %259 = vmatpush1.msra.mxu0 0.0
    %260 = vmatprep.subr.mxu0 0.0
    %261 = vmatpush1.msra.mxu0 0.0
    %262 = vmatprep.mubr.f32.mxu0 0.0
    %263 = vmatmul.mubr.f32.gmra.mrb[0].mxu0 %v196
    %v264 = vpop.f32.mrb[0].mxu0
    %v265 = vadd.f32 %v193, %v264
    %v266 = vpop.f32.mrb[0].mxu0
    %267 = vdwg.mxu0
    %v268 = vtanh.pop %v265
    %v269 = vld [vmem:[%s2] sm:$0x3]
    %v270 = vld [vmem:[%s9] sm:$0xff]
    %v271 = vld [vmem:[%s9 + $0x8] sm:$0xff]
    %v272 = vld [vmem:[%s9 + $0x10] sm:$0xff]
    %v273 = vld [vmem:[%s9 + $0x18] sm:$0xff]
    %v274 = vld [vmem:[%s9 + $0x20] sm:$0xff]
    %v275 = vld [vmem:[%s9 + $0x28] sm:$0xff]
    %v276 = vld [vmem:[%s9 + $0x30] sm:$0xff]
    %v277 = vld [vmem:[%s9 + $0x38] sm:$0xff]
    %v278 = vld [vmem:[%s10] sm:$0x1]
    %v280 = vlaneseq
    %v281 = vshrl.u32 %v280, 7
    %v282 = vsub.s32 0, %v281
    %v283 = vrot.slane %v278, %v282
    %v286 = vsel %vm73, %v269, 0
    %288 = vmatprep.subr.mxu0 0.0
    %289 = vmatpush1.msra.mxu0 %v270
    %290 = vmatprep.subr.mxu0 0.0
    %291 = vmatpush1.msra.mxu0 %v271
    %292 = vmatprep.subr.mxu0 0.0
    %293 = vmatpush1.msra.mxu0 %v272
    %294 = vmatprep.subr.mxu0 0.0
    %295 = vmatpush1.msra.mxu0 %v273
    %296 = vmatprep.subr.mxu0 0.0
    %297 = vmatpush1.msra.mxu0 %v274
    %298 = vmatprep.subr.mxu0 0.0
    %299 = vmatpush1.msra.mxu0 %v275
    %300 = vmatprep.subr.mxu0 0.0
    %301 = vmatpush1.msra.mxu0 %v276
    %302 = vmatprep.subr.mxu0 0.0
    %303 = vmatpush1.msra.mxu0 %v277
    %304 = vmatprep.subr.mxu0 0.0
    %305 = vmatpush1.msra.mxu0 0.0
    %306 = vmatprep.subr.mxu0 0.0
    %307 = vmatpush1.msra.mxu0 0.0
    %308 = vmatprep.subr.mxu0 0.0
    %309 = vmatpush1.msra.mxu0 0.0
    %310 = vmatprep.subr.mxu0 0.0
    %311 = vmatpush1.msra.mxu0 0.0
    %312 = vmatprep.subr.mxu0 0.0
    %313 = vmatpush1.msra.mxu0 0.0
    %314 = vmatprep.subr.mxu0 0.0
    %315 = vmatpush1.msra.mxu0 0.0
    %316 = vmatprep.subr.mxu0 0.0
    %317 = vmatpush1.msra.mxu0 0.0
    %318 = vmatprep.subr.mxu0 0.0
    %319 = vmatpush1.msra.mxu0 0.0
    %320 = vmatprep.subr.mxu0 0.0
    %321 = vmatpush1.msra.mxu0 0.0
    %322 = vmatprep.subr.mxu0 0.0
    %323 = vmatpush1.msra.mxu0 0.0
    %324 = vmatprep.subr.mxu0 0.0
    %325 = vmatpush1.msra.mxu0 0.0
    %326 = vmatprep.subr.mxu0 0.0
    %327 = vmatpush1.msra.mxu0 0.0
    %328 = vmatprep.subr.mxu0 0.0
    %329 = vmatpush1.msra.mxu0 0.0
    %330 = vmatprep.subr.mxu0 0.0
    %331 = vmatpush1.msra.mxu0 0.0
    %332 = vmatprep.subr.mxu0 0.0
    %333 = vmatpush1.msra.mxu0 0.0
    %334 = vmatprep.subr.mxu0 0.0
    %335 = vmatpush1.msra.mxu0 0.0
    %336 = vmatprep.subr.mxu0 0.0
    %337 = vmatpush1.msra.mxu0 0.0
    %338 = vmatprep.subr.mxu0 0.0
    %339 = vmatpush1.msra.mxu0 0.0
    %340 = vmatprep.subr.mxu0 0.0
    %341 = vmatpush1.msra.mxu0 0.0
    %342 = vmatprep.subr.mxu0 0.0
    %343 = vmatpush1.msra.mxu0 0.0
    %344 = vmatprep.subr.mxu0 0.0
    %345 = vmatpush1.msra.mxu0 0.0
    %346 = vmatprep.subr.mxu0 0.0
    %347 = vmatpush1.msra.mxu0 0.0
    %348 = vmatprep.subr.mxu0 0.0
    %349 = vmatpush1.msra.mxu0 0.0
    %350 = vmatprep.subr.mxu0 0.0
    %351 = vmatpush1.msra.mxu0 0.0
    %352 = vmatprep.mubr.f32.mxu0 0.0
    %353 = vmatmul.mubr.f32.gmra.mrb[0].mxu0 %v286
    %v354 = vpop.f32.mrb[0].mxu0
    %v355 = vadd.f32 %v283, %v354
    %v356 = vpop.f32.mrb[0].mxu0
    %357 = vdwg.mxu0
    %v358 = vsel %vm149, %v355, 0.0
    %v359 = vrot.slane %v358, 4
    %v360 = vadd.f32 %v358, %v359
    %v361 = vrot.slane %v360, 2
    %v362 = vadd.f32 %v360, %v361
    %v363 = vrot.slane %v362, 1
    %v364 = vadd.f32 %v362, %v363
    %v365 = vrcp.pop 2.0
    %v366 = vmul.f32 %v364, %v365
    %v367 = vsub.f32 %v355, %v366
    %v368 = vmul.f32 %v367, %v367
    %v369 = vsel %vm149, %v368, 0.0
    %v370 = vrot.slane %v369, 4
    %v371 = vadd.f32 %v369, %v370
    %v372 = vrot.slane %v371, 2
    %v373 = vadd.f32 %v371, %v372
    %v374 = vrot.slane %v373, 1
    %v375 = vadd.f32 %v373, %v374
    %v376 = vmul.f32 %v375, %v365
    %v377 = vadd.f32 %v376, 1e-05
    %v378 = vrsqrt.pop %v377
    %v379 = vmul.f32 %v367, %v378
    %v380 = vld [vmem:[%s11] sm:$0x1]
    %v382 = vlaneseq
    %v383 = vshrl.u32 %v382, 7
    %v384 = vsub.s32 0, %v383
    %v385 = vrot.slane %v380, %v384
    %v387 = vmul.f32 %v379, %v385
    %v388 = vld [vmem:[%s12] sm:$0x1]
    %v390 = vlaneseq
    %v391 = vshrl.u32 %v390, 7
    %v392 = vsub.s32 0, %v391
    %v393 = vrot.slane %v388, %v392
    %v395 = vadd.f32 %v387, %v393
    %v396 = vmax.f32 %v395, 0.0
    %s397 = scalar_lea.vmem %s9, 64
    %v398 = vld [vmem:[%s397] sm:$0xff]
    %v399 = vld [vmem:[%s397 + $0x8] sm:$0xff]
    %v400 = vld [vmem:[%s397 + $0x10] sm:$0xff]
    %v401 = vld [vmem:[%s397 + $0x18] sm:$0xff]
    %v402 = vld [vmem:[%s397 + $0x20] sm:$0xff]
    %v403 = vld [vmem:[%s397 + $0x28] sm:$0xff]
    %v404 = vld [vmem:[%s397 + $0x30] sm:$0xff]
    %v405 = vld [vmem:[%s397 + $0x38] sm:$0xff]
    %s406 = scalar_lea.vmem %s10, 1
    %v407 = vld [vmem:[%s406] sm:$0x1]
    %v409 = vlaneseq
    %v410 = vshrl.u32 %v409, 7
    %v411 = vsub.s32 0, %v410
    %v412 = vrot.slane %v407, %v411
    %v415 = vsel %vm73, %v396, 0
    %417 = vmatprep.subr.mxu0 0.0
    %418 = vmatpush1.msra.mxu0 %v398
    %419 = vmatprep.subr.mxu0 0.0
    %420 = vmatpush1.msra.mxu0 %v399
    %421 = vmatprep.subr.mxu0 0.0
    %422 = vmatpush1.msra.mxu0 %v400
    %423 = vmatprep.subr.mxu0 0.0
    %424 = vmatpush1.msra.mxu0 %v401
    %425 = vmatprep.subr.mxu0 0.0
    %426 = vmatpush1.msra.mxu0 %v402
    %427 = vmatprep.subr.mxu0 0.0
    %428 = vmatpush1.msra.mxu0 %v403
    %429 = vmatprep.subr.mxu0 0.0
    %430 = vmatpush1.msra.mxu0 %v404
    %431 = vmatprep.subr.mxu0 0.0
    %432 = vmatpush1.msra.mxu0 %v405
    %433 = vmatprep.subr.mxu0 0.0
    %434 = vmatpush1.msra.mxu0 0.0
    %435 = vmatprep.subr.mxu0 0.0
    %436 = vmatpush1.msra.mxu0 0.0
    %437 = vmatprep.subr.mxu0 0.0
    %438 = vmatpush1.msra.mxu0 0.0
    %439 = vmatprep.subr.mxu0 0.0
    %440 = vmatpush1.msra.mxu0 0.0
    %441 = vmatprep.subr.mxu0 0.0
    %442 = vmatpush1.msra.mxu0 0.0
    %443 = vmatprep.subr.mxu0 0.0
    %444 = vmatpush1.msra.mxu0 0.0
    %445 = vmatprep.subr.mxu0 0.0
    %446 = vmatpush1.msra.mxu0 0.0
    %447 = vmatprep.subr.mxu0 0.0
    %448 = vmatpush1.msra.mxu0 0.0
    %449 = vmatprep.subr.mxu0 0.0
    %450 = vmatpush1.msra.mxu0 0.0
    %451 = vmatprep.subr.mxu0 0.0
    %452 = vmatpush1.msra.mxu0 0.0
    %453 = vmatprep.subr.mxu0 0.0
    %454 = vmatpush1.msra.mxu0 0.0
    %455 = vmatprep.subr.mxu0 0.0
    %456 = vmatpush1.msra.mxu0 0.0
    %457 = vmatprep.subr.mxu0 0.0
    %458 = vmatpush1.msra.mxu0 0.0
    %459 = vmatprep.subr.mxu0 0.0
    %460 = vmatpush1.msra.mxu0 0.0
    %461 = vmatprep.subr.mxu0 0.0
    %462 = vmatpush1.msra.mxu0 0.0
    %463 = vmatprep.subr.mxu0 0.0
    %464 = vmatpush1.msra.mxu0 0.0
    %465 = vmatprep.subr.mxu0 0.0
    %466 = vmatpush1.msra.mxu0 0.0
    %467 = vmatprep.subr.mxu0 0.0
    %468 = vmatpush1.msra.mxu0 0.0
    %469 = vmatprep.subr.mxu0 0.0
    %470 = vmatpush1.msra.mxu0 0.0
    %471 = vmatprep.subr.mxu0 0.0
    %472 = vmatpush1.msra.mxu0 0.0
    %473 = vmatprep.subr.mxu0 0.0
    %474 = vmatpush1.msra.mxu0 0.0
    %475 = vmatprep.subr.mxu0 0.0
    %476 = vmatpush1.msra.mxu0 0.0
    %477 = vmatprep.subr.mxu0 0.0
    %478 = vmatpush1.msra.mxu0 0.0
    %479 = vmatprep.subr.mxu0 0.0
    %480 = vmatpush1.msra.mxu0 0.0
    %481 = vmatprep.mubr.f32.mxu0 0.0
    %482 = vmatmul.mubr.f32.gmra.mrb[0].mxu0 %v415
    %v483 = vpop.f32.mrb[0].mxu0
    %v484 = vadd.f32 %v412, %v483
    %v485 = vpop.f32.mrb[0].mxu0
    %486 = vdwg.mxu0
    %v487 = vsel %vm149, %v484, 0.0
    %v488 = vrot.slane %v487, 4
    %v489 = vadd.f32 %v487, %v488
    %v490 = vrot.slane %v489, 2
    %v491 = vadd.f32 %v489, %v490
    %v492 = vrot.slane %v491, 1
    %v493 = vadd.f32 %v491, %v492
    %v494 = vmul.f32 %v493, %v365
    %v495 = vsub.f32 %v484, %v494
    %v496 = vmul.f32 %v495, %v495
    %v497 = vsel %vm149, %v496, 0.0
    %v498 = vrot.slane %v497, 4
    %v499 = vadd.f32 %v497, %v498
    %v500 = vrot.slane %v499, 2
    %v501 = vadd.f32 %v499, %v500
    %v502 = vrot.slane %v501, 1
    %v503 = vadd.f32 %v501, %v502
    %v504 = vmul.f32 %v503, %v365
    %v505 = vadd.f32 %v504, 1e-05
    %v506 = vrsqrt.pop %v505
    %v507 = vmul.f32 %v495, %v506
    %s508 = scalar_lea.vmem %s11, 1
    %v509 = vld [vmem:[%s508] sm:$0x1]
    %v511 = vlaneseq
    %v512 = vshrl.u32 %v511, 7
    %v513 = vsub.s32 0, %v512
    %v514 = vrot.slane %v509, %v513
    %v516 = vmul.f32 %v507, %v514
    %s517 = scalar_lea.vmem %s12, 1
    %v518 = vld [vmem:[%s517] sm:$0x1]
    %v520 = vlaneseq
    %v521 = vshrl.u32 %v520, 7
    %v522 = vsub.s32 0, %v521
    %v523 = vrot.slane %v518, %v522
    %v525 = vadd.f32 %v516, %v523
    %v526 = vmax.f32 %v525, 0.0
    %s527 = scalar_lea.vmem %s9, 128
    %v528 = vld [vmem:[%s527] sm:$0xff]
    %v529 = vld [vmem:[%s527 + $0x8] sm:$0xff]
    %v530 = vld [vmem:[%s527 + $0x10] sm:$0xff]
    %v531 = vld [vmem:[%s527 + $0x18] sm:$0xff]
    %v532 = vld [vmem:[%s527 + $0x20] sm:$0xff]
    %v533 = vld [vmem:[%s527 + $0x28] sm:$0xff]
    %v534 = vld [vmem:[%s527 + $0x30] sm:$0xff]
    %v535 = vld [vmem:[%s527 + $0x38] sm:$0xff]
    %s536 = scalar_lea.vmem %s10, 2
    %v537 = vld [vmem:[%s536] sm:$0x1]
    %v539 = vlaneseq
    %v540 = vshrl.u32 %v539, 7
    %v541 = vsub.s32 0, %v540
    %v542 = vrot.slane %v537, %v541
    %v545 = vsel %vm73, %v526, 0
    %547 = vmatprep.subr.mxu0 0.0
    %548 = vmatpush1.msra.mxu0 %v528
    %549 = vmatprep.subr.mxu0 0.0
    %550 = vmatpush1.msra.mxu0 %v529
    %551 = vmatprep.subr.mxu0 0.0
    %552 = vmatpush1.msra.mxu0 %v530
    %553 = vmatprep.subr.mxu0 0.0
    %554 = vmatpush1.msra.mxu0 %v531
    %555 = vmatprep.subr.mxu0 0.0
    %556 = vmatpush1.msra.mxu0 %v532
    %557 = vmatprep.subr.mxu0 0.0
    %558 = vmatpush1.msra.mxu0 %v533
    %559 = vmatprep.subr.mxu0 0.0
    %560 = vmatpush1.msra.mxu0 %v534
    %561 = vmatprep.subr.mxu0 0.0
    %562 = vmatpush1.msra.mxu0 %v535
    %563 = vmatprep.subr.mxu0 0.0
    %564 = vmatpush1.msra.mxu0 0.0
    %565 = vmatprep.subr.mxu0 0.0
    %566 = vmatpush1.msra.mxu0 0.0
    %567 = vmatprep.subr.mxu0 0.0
    %568 = vmatpush1.msra.mxu0 0.0
    %569 = vmatprep.subr.mxu0 0.0
    %570 = vmatpush1.msra.mxu0 0.0
    %571 = vmatprep.subr.mxu0 0.0
    %572 = vmatpush1.msra.mxu0 0.0
    %573 = vmatprep.subr.mxu0 0.0
    %574 = vmatpush1.msra.mxu0 0.0
    %575 = vmatprep.subr.mxu0 0.0
    %576 = vmatpush1.msra.mxu0 0.0
    %577 = vmatprep.subr.mxu0 0.0
    %578 = vmatpush1.msra.mxu0 0.0
    %579 = vmatprep.subr.mxu0 0.0
    %580 = vmatpush1.msra.mxu0 0.0
    %581 = vmatprep.subr.mxu0 0.0
    %582 = vmatpush1.msra.mxu0 0.0
    %583 = vmatprep.subr.mxu0 0.0
    %584 = vmatpush1.msra.mxu0 0.0
    %585 = vmatprep.subr.mxu0 0.0
    %586 = vmatpush1.msra.mxu0 0.0
    %587 = vmatprep.subr.mxu0 0.0
    %588 = vmatpush1.msra.mxu0 0.0
    %589 = vmatprep.subr.mxu0 0.0
    %590 = vmatpush1.msra.mxu0 0.0
    %591 = vmatprep.subr.mxu0 0.0
    %592 = vmatpush1.msra.mxu0 0.0
    %593 = vmatprep.subr.mxu0 0.0
    %594 = vmatpush1.msra.mxu0 0.0
    %595 = vmatprep.subr.mxu0 0.0
    %596 = vmatpush1.msra.mxu0 0.0
    %597 = vmatprep.subr.mxu0 0.0
    %598 = vmatpush1.msra.mxu0 0.0
    %599 = vmatprep.subr.mxu0 0.0
    %600 = vmatpush1.msra.mxu0 0.0
    %601 = vmatprep.subr.mxu0 0.0
    %602 = vmatpush1.msra.mxu0 0.0
    %603 = vmatprep.subr.mxu0 0.0
    %604 = vmatpush1.msra.mxu0 0.0
    %605 = vmatprep.subr.mxu0 0.0
    %606 = vmatpush1.msra.mxu0 0.0
    %607 = vmatprep.subr.mxu0 0.0
    %608 = vmatpush1.msra.mxu0 0.0
    %609 = vmatprep.subr.mxu0 0.0
    %610 = vmatpush1.msra.mxu0 0.0
    %611 = vmatprep.mubr.f32.mxu0 0.0
    %612 = vmatmul.mubr.f32.gmra.mrb[0].mxu0 %v545
    %v613 = vpop.f32.mrb[0].mxu0
    %v614 = vadd.f32 %v542, %v613
    %v615 = vpop.f32.mrb[0].mxu0
    %616 = vdwg.mxu0
    %v617 = vsel %vm149, %v614, 0.0
    %v618 = vrot.slane %v617, 4
    %v619 = vadd.f32 %v617, %v618
    %v620 = vrot.slane %v619, 2
    %v621 = vadd.f32 %v619, %v620
    %v622 = vrot.slane %v621, 1
    %v623 = vadd.f32 %v621, %v622
    %v624 = vmul.f32 %v623, %v365
    %v625 = vsub.f32 %v614, %v624
    %v626 = vmul.f32 %v625, %v625
    %v627 = vsel %vm149, %v626, 0.0
    %v628 = vrot.slane %v627, 4
    %v629 = vadd.f32 %v627, %v628
    %v630 = vrot.slane %v629, 2
    %v631 = vadd.f32 %v629, %v630
    %v632 = vrot.slane %v631, 1
    %v633 = vadd.f32 %v631, %v632
    %v634 = vmul.f32 %v633, %v365
    %v635 = vadd.f32 %v634, 1e-05
    %v636 = vrsqrt.pop %v635
    %v637 = vmul.f32 %v625, %v636
    %s638 = scalar_lea.vmem %s11, 2
    %v639 = vld [vmem:[%s638] sm:$0x1]
    %v641 = vlaneseq
    %v642 = vshrl.u32 %v641, 7
    %v643 = vsub.s32 0, %v642
    %v644 = vrot.slane %v639, %v643
    %v646 = vmul.f32 %v637, %v644
    %s647 = scalar_lea.vmem %s12, 2
    %v648 = vld [vmem:[%s647] sm:$0x1]
    %v650 = vlaneseq
    %v651 = vshrl.u32 %v650, 7
    %v652 = vsub.s32 0, %v651
    %v653 = vrot.slane %v648, %v652
    %v655 = vadd.f32 %v646, %v653
    %v656 = vmax.f32 %v655, 0.0
    %658 = vrot.lane.b32.xlu0 %v268, 64
    %v659 = vpop.permute.xlu0 %658
    %v661 = vsel %vm73, %v147, %v659
    %v662 = vld [vmem:[%s13] sm:$0xff]
    %v663 = vld [vmem:[%s13 + $0x8] sm:$0xff]
    %v664 = vld [vmem:[%s13 + $0x10] sm:$0xff]
    %v665 = vld [vmem:[%s13 + $0x18] sm:$0xff]
    %v666 = vld [vmem:[%s13 + $0x20] sm:$0xff]
    %v667 = vld [vmem:[%s13 + $0x28] sm:$0xff]
    %v668 = vld [vmem:[%s13 + $0x30] sm:$0xff]
    %v669 = vld [vmem:[%s13 + $0x38] sm:$0xff]
    %v670 = vld [vmem:[%s13 + $0x40] sm:$0xff]
    %v671 = vld [vmem:[%s13 + $0x48] sm:$0xff]
    %v672 = vld [vmem:[%s13 + $0x50] sm:$0xff]
    %v673 = vld [vmem:[%s13 + $0x58] sm:$0xff]
    %v674 = vld [vmem:[%s13 + $0x60] sm:$0xff]
    %v675 = vld [vmem:[%s13 + $0x68] sm:$0xff]
    %v676 = vld [vmem:[%s13 + $0x70] sm:$0xff]
    %v677 = vld [vmem:[%s13 + $0x78] sm:$0xff]
    %v678 = vld [vmem:[%s14] sm:$0x1]
    %v680 = vlaneseq
    %v681 = vshrl.u32 %v680, 7
    %v682 = vsub.s32 0, %v681
    %v683 = vrot.slane %v678, %v682
    %685 = vmatprep.subr.mxu0 0.0
    %686 = vmatpush1.msra.mxu0 %v662
    %687 = vmatprep.subr.mxu0 0.0
    %688 = vmatpush1.msra.mxu0 %v663
    %689 = vmatprep.subr.mxu0 0.0
    %690 = vmatpush1.msra.mxu0 %v664
    %691 = vmatprep.subr.mxu0 0.0
    %692 = vmatpush1.msra.mxu0 %v665
    %693 = vmatprep.subr.mxu0 0.0
    %694 = vmatpush1.msra.mxu0 %v666
    %695 = vmatprep.subr.mxu0 0.0
    %696 = vmatpush1.msra.mxu0 %v667
    %697 = vmatprep.subr.mxu0 0.0
    %698 = vmatpush1.msra.mxu0 %v668
    %699 = vmatprep.subr.mxu0 0.0
    %700 = vmatpush1.msra.mxu0 %v669
    %701 = vmatprep.subr.mxu0 0.0
    %702 = vmatpush1.msra.mxu0 %v670
    %703 = vmatprep.subr.mxu0 0.0
    %704 = vmatpush1.msra.mxu0 %v671
    %705 = vmatprep.subr.mxu0 0.0
    %706 = vmatpush1.msra.mxu0 %v672
    %707 = vmatprep.subr.mxu0 0.0
    %708 = vmatpush1.msra.mxu0 %v673
    %709 = vmatprep.subr.mxu0 0.0
    %710 = vmatpush1.msra.mxu0 %v674
    %711 = vmatprep.subr.mxu0 0.0
    %712 = vmatpush1.msra.mxu0 %v675
    %713 = vmatprep.subr.mxu0 0.0
    %714 = vmatpush1.msra.mxu0 %v676
    %715 = vmatprep.subr.mxu0 0.0
    %716 = vmatpush1.msra.mxu0 %v677
    %717 = vmatprep.subr.mxu0 0.0
    %718 = vmatpush1.msra.mxu0 0.0
    %719 = vmatprep.subr.mxu0 0.0
    %720 = vmatpush1.msra.mxu0 0.0
    %721 = vmatprep.subr.mxu0 0.0
    %722 = vmatpush1.msra.mxu0 0.0
    %723 = vmatprep.subr.mxu0 0.0
    %724 = vmatpush1.msra.mxu0 0.0
    %725 = vmatprep.subr.mxu0 0.0
    %726 = vmatpush1.msra.mxu0 0.0
    %727 = vmatprep.subr.mxu0 0.0
    %728 = vmatpush1.msra.mxu0 0.0
    %729 = vmatprep.subr.mxu0 0.0
    %730 = vmatpush1.msra.mxu0 0.0
    %731 = vmatprep.subr.mxu0 0.0
    %732 = vmatpush1.msra.mxu0 0.0
    %733 = vmatprep.subr.mxu0 0.0
    %734 = vmatpush1.msra.mxu0 0.0
    %735 = vmatprep.subr.mxu0 0.0
    %736 = vmatpush1.msra.mxu0 0.0
    %737 = vmatprep.subr.mxu0 0.0
    %738 = vmatpush1.msra.mxu0 0.0
    %739 = vmatprep.subr.mxu0 0.0
    %740 = vmatpush1.msra.mxu0 0.0
    %741 = vmatprep.subr.mxu0 0.0
    %742 = vmatpush1.msra.mxu0 0.0
    %743 = vmatprep.subr.mxu0 0.0
    %744 = vmatpush1.msra.mxu0 0.0
    %745 = vmatprep.subr.mxu0 0.0
    %746 = vmatpush1.msra.mxu0 0.0
    %747 = vmatprep.subr.mxu0 0.0
    %748 = vmatpush1.msra.mxu0 0.0
    %749 = vmatprep.mubr.f32.mxu0 0.0
    %750 = vmatmul.mubr.f32.gmra.mrb[0].mxu0 %v661
    %v751 = vpop.f32.mrb[0].mxu0
    %v752 = vadd.f32 %v683, %v751
    %v753 = vpop.f32.mrb[0].mxu0
    %754 = vdwg.mxu0
    %vm755 = vcmask 17408
    %756 = vst.msk [vmem:[#allocation2] sm:$0x3] %vm755, %v752
    %757 = vst.msk [vmem:[#allocation4] sm:$0x3] %vm149, %v147
    %758 = vst.msk [vmem:[#allocation6] sm:$0x3] %vm149, %v268
    %759 = vst.msk [vmem:[#allocation7] sm:$0x3] %vm149, %v656
    // Predicated region
    $region62: #{bert_vit_forward.9} parent=1 // pred_check
      _
    $region63: #{bert_vit_forward.9} parent=1 // pred_check_branch
      %761 = sbr.rel (0) target = $region65
    $region64: #{bert_vit_forward.9} parent=1 // pred_region
      %s763 = ssub.s32 32, 32
      %764 = vsyncadd [#allocation3], %s763
      %s766 = sshll.u32 [#allocation2], 4
      %s767 = int_to_ptr.vmem [resolvable:$true] %s766
      %769 = dma.vmem_to_hbm [thread:$0]  %s767, 32, %s15, [#allocation3]
    $region65: #{bert_vit_forward.9} parent=1 // pred_fallthru
      _
    // Predicated region
    $region66: #{bert_vit_forward.9} parent=1 // pred_check
      _
    $region67: #{bert_vit_forward.9} parent=1 // pred_check_branch
      %771 = sbr.rel (0) target = $region69
    $region68: #{bert_vit_forward.9} parent=1 // pred_region
      %s773 = ssub.s32 32, 32
      %774 = vsyncadd [#allocation5], %s773
      %s776 = sshll.u32 [#allocation4], 4
      %s777 = int_to_ptr.vmem [resolvable:$true] %s776
      %779 = dma.vmem_to_hbm [thread:$0]  %s777, 32, %s16, [#allocation5]
    $region69: #{bert_vit_forward.9} parent=1 // pred_fallthru
      _
    // Predicated region
    $region70: #{bert_vit_forward.9} parent=1 // pred_check
      _
    $region71: #{bert_vit_forward.9} parent=1 // pred_check_branch
      %781 = sbr.rel (0) target = $region73
    $region72: #{bert_vit_forward.9} parent=1 // pred_region
      %s783 = ssub.s32 32, 32
      %784 = vsyncadd [#allocation5], %s783
      %s786 = sshll.u32 [#allocation6], 4
      %s787 = int_to_ptr.vmem [resolvable:$true] %s786
      %789 = dma.vmem_to_hbm [thread:$0]  %s787, 32, %s17, [#allocation5]
    $region73: #{bert_vit_forward.9} parent=1 // pred_fallthru
      _
    // Predicated region
    $region74: #{bert_vit_forward.9} parent=1 // pred_check
      _
    $region75: #{bert_vit_forward.9} parent=1 // pred_check_branch
      %791 = sbr.rel (0) target = $region77
    $region76: #{bert_vit_forward.9} parent=1 // pred_region
      %s793 = ssub.s32 32, 32
      %794 = vsyncadd [#allocation8], %s793
      %s796 = sshll.u32 [#allocation7], 4
      %s797 = int_to_ptr.vmem [resolvable:$true] %s796
      %799 = dma.vmem_to_hbm [thread:$0]  %s797, 32, %s18, [#allocation8]
    $region77: #{bert_vit_forward.9} parent=1 // pred_fallthru
      _
    // Predicated region
    $region78: #{bert_vit_forward.9} parent=1 // pred_check
      _
    $region79: #{bert_vit_forward.9} parent=1 // pred_check_branch
      %801 = sbr.rel (0) target = $region81
    $region80: #{bert_vit_forward.9} parent=1 // pred_region
      %802 = dma.done [#allocation3], 32
    $region81: #{bert_vit_forward.9} parent=1 // pred_fallthru
      _
    // Predicated region
    $region82: #{bert_vit_forward.9} parent=1 // pred_check
      _
    $region83: #{bert_vit_forward.9} parent=1 // pred_check_branch
      %804 = sbr.rel (0) target = $region85
    $region84: #{bert_vit_forward.9} parent=1 // pred_region
      %805 = dma.done [#allocation5], 32
    $region85: #{bert_vit_forward.9} parent=1 // pred_fallthru
      _
    // Predicated region
    $region86: #{bert_vit_forward.9} parent=1 // pred_check
      _
    $region87: #{bert_vit_forward.9} parent=1 // pred_check_branch
      %807 = sbr.rel (0) target = $region89
    $region88: #{bert_vit_forward.9} parent=1 // pred_region
      %808 = dma.done [#allocation5], 32
    $region89: #{bert_vit_forward.9} parent=1 // pred_fallthru
      _
    // Predicated region
    $region90: #{bert_vit_forward.9} parent=1 // pred_check
      _
    $region91: #{bert_vit_forward.9} parent=1 // pred_check_branch
      %810 = sbr.rel (0) target = $region93
    $region92: #{bert_vit_forward.9} parent=1 // pred_region
      %811 = dma.done [#allocation8], 32
    $region93: #{bert_vit_forward.9} parent=1 // pred_fallthru
      _
    %812 = vsyncpa [#allocation3], 1
    %813 = vsyncpa [#allocation5], 1
    %814 = vsyncpa [#allocation8], 1

// kernel: bert_vit_forward.7
$region0: #{bert_vit_forward.7}
  #allocation0 [shape = 'u32[]', space=smem, size = 0x4, offset = 0x4, fixed_abs, tag = 'smem constant byte address 0x4 - core index']
  #allocation1 [shape = 'u32[144,128]{1,0:T(1,128)}', space=vmem, size = 0x12000, scoped, tag = 'internal scratch']
  %s0 = inlined_call_operand.vmem [shape: f32[2,8], index: 0, kind: input, shape index: {}]
  %s1 = inlined_call_operand.vmem [shape: f32[16,64], index: 1, kind: input, shape index: {}]
  %s2 = inlined_call_operand.vmem [shape: f32[1,64], index: 2, kind: input, shape index: {}]
  %s3 = inlined_call_operand.vmem [shape: f32[1,64], index: 3, kind: input, shape index: {}]
  %s4 = inlined_call_operand.vmem [shape: bf16[2,64,192], index: 4, kind: input, shape index: {}]
  %s5 = inlined_call_operand.vmem [shape: f32[2,1,192], index: 5, kind: input, shape index: {}]
  %s6 = inlined_call_operand.vmem [shape: bf16[2,64,64], index: 6, kind: input, shape index: {}]
  %s7 = inlined_call_operand.vmem [shape: f32[2,1,64], index: 7, kind: input, shape index: {}]
  %s8 = inlined_call_operand.vmem [shape: f32[2,1,64], index: 8, kind: input, shape index: {}]
  %s9 = inlined_call_operand.vmem [shape: f32[2,1,64], index: 9, kind: input, shape index: {}]
  %s10 = inlined_call_operand.vmem [shape: bf16[2,64,128], index: 10, kind: input, shape index: {}]
  %s11 = inlined_call_operand.vmem [shape: f32[2,1,128], index: 11, kind: input, shape index: {}]
  %s12 = inlined_call_operand.vmem [shape: bf16[2,128,64], index: 12, kind: input, shape index: {}]
  %s13 = inlined_call_operand.vmem [shape: f32[2,1,64], index: 13, kind: input, shape index: {}]
  %s14 = inlined_call_operand.vmem [shape: f32[2,1,64], index: 14, kind: input, shape index: {}]
  %s15 = inlined_call_operand.vmem [shape: f32[2,1,64], index: 15, kind: input, shape index: {}]
  %s16 = inlined_call_operand.vmem [shape: f32[16,64], index: 16, kind: output, shape index: {}]
  %s17 = sld [smem:[#allocation0]]
  $region101: #{bert_vit_forward.7} parent=0
    _
  %s19 = ssub.s32 1, %s17
  %s20 = scalar_select 0, %s19, %s17
  loop: start=0, step=1, limit=4
  $region2: #{bert_vit_forward.7} parent=0 // loop_pre_header
    _
  $region3: #{bert_vit_forward.7} parent=0 // loop_header
    %s22 = sphi 0, %s26
    %p23 = scmp.ge.s32.totalorder %s22, 4
    %s30 = sphi 0, %s30
    %s32 = sphi 0, %s30
    %s33 = sphi 0, %s32
    %s47 = sphi 0, %s33
    %s51 = sphi 0, %s51
    %s53 = sphi 0, %s51
    %s54 = sphi 0, %s53
    %s68 = sphi 0, %s54
    %s72 = sphi 0, %s72
    %s74 = sphi 0, %s72
    %s75 = sphi 0, %s74
    %s89 = sphi 0, %s75
    %s93 = sphi 0, %s93
    %s95 = sphi 0, %s93
    %s96 = sphi 0, %s95
    %s110 = sphi 0, %s96
    %s116 = sphi 0, %s118
    %s119 = sphi 0, %s116
    %s120 = sphi 0, %s119
    %s136 = sphi 0, %s120
    %s142 = sphi 0, %s144
    %s145 = sphi 0, %s142
    %s146 = sphi 0, %s145
    %s162 = sphi 0, %s146
    %s168 = sphi 0, %s170
    %s171 = sphi 0, %s168
    %s172 = sphi 0, %s171
    %s188 = sphi 0, %s172
    %s194 = sphi 0, %s196
    %s197 = sphi 0, %s194
    %s198 = sphi 0, %s197
    %s214 = sphi 0, %s198
    %s220 = sphi 0, %s222
    %s223 = sphi 0, %s220
    %s224 = sphi 0, %s223
    %s240 = sphi 0, %s224
    %s246 = sphi 0, %s248
    %s249 = sphi 0, %s246
    %s250 = sphi 0, %s249
    %s266 = sphi 0, %s250
    %s272 = sphi 0, %s274
    %s275 = sphi 0, %s272
    %s276 = sphi 0, %s275
    %s292 = sphi 0, %s276
    %s298 = sphi 0, %s300
    %s301 = sphi 0, %s298
    %s302 = sphi 0, %s301
    %s318 = sphi 0, %s302
    %s324 = sphi 0, %s326
    %s327 = sphi 0, %s324
    %s328 = sphi 0, %s327
    %s344 = sphi 0, %s328
    %s350 = sphi 0, %s352
    %s353 = sphi 0, %s350
    %s354 = sphi 0, %s353
    %s370 = sphi 0, %s354
    %s376 = sphi 0, %s378
    %s379 = sphi 0, %s376
    %s380 = sphi 0, %s379
    %s396 = sphi 0, %s380
    %s402 = sphi 0, %s404
    %s405 = sphi 0, %s402
    %s406 = sphi 0, %s405
    %s422 = sphi 0, %s406
    %s426 = sphi 0, %s426
    %s428 = sphi 0, %s426
    %s429 = sphi 0, %s428
    %s443 = sphi 0, %s429
  $region4: #{bert_vit_forward.7} parent=0 // loop_header_branch
    %25 = sbr.rel (%p23) target = $region8
  $region5: #{bert_vit_forward.7} parent=0 // loop_body
    %s27 = ssub.s32 %s22, 1
    %s28 = ssub.s32 %s22, 2
    %s29 = sadd.s32 %s22, 1
    %s31 = sadd.s32 %s30, 1
    %p34 = scmp.eq.s32.totalorder %s22, 1
    %p35 = scmp.ne.s32.totalorder %s30, %s32
    %p36 = scmp.eq.s32.totalorder %s22, 0
    %p37 = por %p35, %p36
    %p38 = scmp.ne.s32.totalorder %s30, %s32
    %p39 = scmp.eq.s32.totalorder %s27, 1
    %p40 = por %p38, %p39
    %p41 = scmp.ne.s32.totalorder %s32, %s33
    %p42 = scmp.eq.s32.totalorder %s27, 0
    %p43 = por %p41, %p42
    %p44 = scmp.ne.s32.totalorder %s32, %s33
    %p45 = scmp.eq.s32.totalorder %s28, 1
    %p46 = por %p44, %p45
    %p48 = scmp.ne.s32.totalorder %s33, %s47
    %p49 = scmp.eq.s32.totalorder %s28, 0
    %p50 = por %p48, %p49
    %s52 = sadd.s32 %s51, 1
    %p55 = scmp.eq.s32.totalorder %s22, 1
    %p56 = scmp.ne.s32.totalorder %s51, %s53
    %p57 = scmp.eq.s32.totalorder %s22, 0
    %p58 = por %p56, %p57
    %p59 = scmp.ne.s32.totalorder %s51, %s53
    %p60 = scmp.eq.s32.totalorder %s27, 1
    %p61 = por %p59, %p60
    %p62 = scmp.ne.s32.totalorder %s53, %s54
    %p63 = scmp.eq.s32.totalorder %s27, 0
    %p64 = por %p62, %p63
    %p65 = scmp.ne.s32.totalorder %s53, %s54
    %p66 = scmp.eq.s32.totalorder %s28, 1
    %p67 = por %p65, %p66
    %p69 = scmp.ne.s32.totalorder %s54, %s68
    %p70 = scmp.eq.s32.totalorder %s28, 0
    %p71 = por %p69, %p70
    %s73 = sadd.s32 %s72, 1
    %p76 = scmp.eq.s32.totalorder %s22, 1
    %p77 = scmp.ne.s32.totalorder %s72, %s74
    %p78 = scmp.eq.s32.totalorder %s22, 0
    %p79 = por %p77, %p78
    %p80 = scmp.ne.s32.totalorder %s72, %s74
    %p81 = scmp.eq.s32.totalorder %s27, 1
    %p82 = por %p80, %p81
    %p83 = scmp.ne.s32.totalorder %s74, %s75
    %p84 = scmp.eq.s32.totalorder %s27, 0
    %p85 = por %p83, %p84
    %p86 = scmp.ne.s32.totalorder %s74, %s75
    %p87 = scmp.eq.s32.totalorder %s28, 1
    %p88 = por %p86, %p87
    %p90 = scmp.ne.s32.totalorder %s75, %s89
    %p91 = scmp.eq.s32.totalorder %s28, 0
    %p92 = por %p90, %p91
    %s94 = sadd.s32 %s93, 1
    %p97 = scmp.eq.s32.totalorder %s22, 1
    %p98 = scmp.ne.s32.totalorder %s93, %s95
    %p99 = scmp.eq.s32.totalorder %s22, 0
    %p100 = por %p98, %p99
    %p101 = scmp.ne.s32.totalorder %s93, %s95
    %p102 = scmp.eq.s32.totalorder %s27, 1
    %p103 = por %p101, %p102
    %p104 = scmp.ne.s32.totalorder %s95, %s96
    %p105 = scmp.eq.s32.totalorder %s27, 0
    %p106 = por %p104, %p105
    %p107 = scmp.ne.s32.totalorder %s95, %s96
    %p108 = scmp.eq.s32.totalorder %s28, 1
    %p109 = por %p107, %p108
    %p111 = scmp.ne.s32.totalorder %s96, %s110
    %p112 = scmp.eq.s32.totalorder %s28, 0
    %p113 = por %p111, %p112
    %s114 = ssub.s32 %s22, %s29
    %p115 = scmp.eq.s32.totalorder %s114, 0
    %s117 = sadd.s32 %s116, 1
    %s118 = scalar_select %p115, %s116, %s117
    %p121 = pneg %p115
    %p122 = scmp.eq.s32.totalorder %s22, 1
    %p123 = por %p121, %p122
    %p124 = scmp.ne.s32.totalorder %s116, %s119
    %p125 = scmp.eq.s32.totalorder %s22, 0
    %p126 = por %p124, %p125
    %p127 = scmp.ne.s32.totalorder %s116, %s119
    %p128 = scmp.eq.s32.totalorder %s27, 1
    %p129 = por %p127, %p128
    %p130 = scmp.ne.s32.totalorder %s119, %s120
    %p131 = scmp.eq.s32.totalorder %s27, 0
    %p132 = por %p130, %p131
    %p133 = scmp.ne.s32.totalorder %s119, %s120
    %p134 = scmp.eq.s32.totalorder %s28, 1
    %p135 = por %p133, %p134
    %p137 = scmp.ne.s32.totalorder %s120, %s136
    %p138 = scmp.eq.s32.totalorder %s28, 0
    %p139 = por %p137, %p138
    %s140 = ssub.s32 %s22, %s29
    %p141 = scmp.eq.s32.totalorder %s140, 0
    %s143 = sadd.s32 %s142, 1
    %s144 = scalar_select %p141, %s142, %s143
    %p147 = pneg %p141
    %p148 = scmp.eq.s32.totalorder %s22, 1
    %p149 = por %p147, %p148
    %p150 = scmp.ne.s32.totalorder %s142, %s145
    %p151 = scmp.eq.s32.totalorder %s22, 0
    %p152 = por %p150, %p151
    %p153 = scmp.ne.s32.totalorder %s142, %s145
    %p154 = scmp.eq.s32.totalorder %s27, 1
    %p155 = por %p153, %p154
    %p156 = scmp.ne.s32.totalorder %s145, %s146
    %p157 = scmp.eq.s32.totalorder %s27, 0
    %p158 = por %p156, %p157
    %p159 = scmp.ne.s32.totalorder %s145, %s146
    %p160 = scmp.eq.s32.totalorder %s28, 1
    %p161 = por %p159, %p160
    %p163 = scmp.ne.s32.totalorder %s146, %s162
    %p164 = scmp.eq.s32.totalorder %s28, 0
    %p165 = por %p163, %p164
    %s166 = ssub.s32 %s22, %s29
    %p167 = scmp.eq.s32.totalorder %s166, 0
    %s169 = sadd.s32 %s168, 1
    %s170 = scalar_select %p167, %s168, %s169
    %p173 = pneg %p167
    %p174 = scmp.eq.s32.totalorder %s22, 1
    %p175 = por %p173, %p174
    %p176 = scmp.ne.s32.totalorder %s168, %s171
    %p177 = scmp.eq.s32.totalorder %s22, 0
    %p178 = por %p176, %p177
    %p179 = scmp.ne.s32.totalorder %s168, %s171
    %p180 = scmp.eq.s32.totalorder %s27, 1
    %p181 = por %p179, %p180
    %p182 = scmp.ne.s32.totalorder %s171, %s172
    %p183 = scmp.eq.s32.totalorder %s27, 0
    %p184 = por %p182, %p183
    %p185 = scmp.ne.s32.totalorder %s171, %s172
    %p186 = scmp.eq.s32.totalorder %s28, 1
    %p187 = por %p185, %p186
    %p189 = scmp.ne.s32.totalorder %s172, %s188
    %p190 = scmp.eq.s32.totalorder %s28, 0
    %p191 = por %p189, %p190
    %s192 = ssub.s32 %s22, %s29
    %p193 = scmp.eq.s32.totalorder %s192, 0
    %s195 = sadd.s32 %s194, 1
    %s196 = scalar_select %p193, %s194, %s195
    %p199 = pneg %p193
    %p200 = scmp.eq.s32.totalorder %s22, 1
    %p201 = por %p199, %p200
    %p202 = scmp.ne.s32.totalorder %s194, %s197
    %p203 = scmp.eq.s32.totalorder %s22, 0
    %p204 = por %p202, %p203
    %p205 = scmp.ne.s32.totalorder %s194, %s197
    %p206 = scmp.eq.s32.totalorder %s27, 1
    %p207 = por %p205, %p206
    %p208 = scmp.ne.s32.totalorder %s197, %s198
    %p209 = scmp.eq.s32.totalorder %s27, 0
    %p210 = por %p208, %p209
    %p211 = scmp.ne.s32.totalorder %s197, %s198
    %p212 = scmp.eq.s32.totalorder %s28, 1
    %p213 = por %p211, %p212
    %p215 = scmp.ne.s32.totalorder %s198, %s214
    %p216 = scmp.eq.s32.totalorder %s28, 0
    %p217 = por %p215, %p216
    %s218 = ssub.s32 %s22, %s29
    %p219 = scmp.eq.s32.totalorder %s218, 0
    %s221 = sadd.s32 %s220, 1
    %s222 = scalar_select %p219, %s220, %s221
    %p225 = pneg %p219
    %p226 = scmp.eq.s32.totalorder %s22, 1
    %p227 = por %p225, %p226
    %p228 = scmp.ne.s32.totalorder %s220, %s223
    %p229 = scmp.eq.s32.totalorder %s22, 0
    %p230 = por %p228, %p229
    %p231 = scmp.ne.s32.totalorder %s220, %s223
    %p232 = scmp.eq.s32.totalorder %s27, 1
    %p233 = por %p231, %p232
    %p234 = scmp.ne.s32.totalorder %s223, %s224
    %p235 = scmp.eq.s32.totalorder %s27, 0
    %p236 = por %p234, %p235
    %p237 = scmp.ne.s32.totalorder %s223, %s224
    %p238 = scmp.eq.s32.totalorder %s28, 1
    %p239 = por %p237, %p238
    %p241 = scmp.ne.s32.totalorder %s224, %s240
    %p242 = scmp.eq.s32.totalorder %s28, 0
    %p243 = por %p241, %p242
    %s244 = ssub.s32 %s22, %s29
    %p245 = scmp.eq.s32.totalorder %s244, 0
    %s247 = sadd.s32 %s246, 1
    %s248 = scalar_select %p245, %s246, %s247
    %p251 = pneg %p245
    %p252 = scmp.eq.s32.totalorder %s22, 1
    %p253 = por %p251, %p252
    %p254 = scmp.ne.s32.totalorder %s246, %s249
    %p255 = scmp.eq.s32.totalorder %s22, 0
    %p256 = por %p254, %p255
    %p257 = scmp.ne.s32.totalorder %s246, %s249
    %p258 = scmp.eq.s32.totalorder %s27, 1
    %p259 = por %p257, %p258
    %p260 = scmp.ne.s32.totalorder %s249, %s250
    %p261 = scmp.eq.s32.totalorder %s27, 0
    %p262 = por %p260, %p261
    %p263 = scmp.ne.s32.totalorder %s249, %s250
    %p264 = scmp.eq.s32.totalorder %s28, 1
    %p265 = por %p263, %p264
    %p267 = scmp.ne.s32.totalorder %s250, %s266
    %p268 = scmp.eq.s32.totalorder %s28, 0
    %p269 = por %p267, %p268
    %s270 = ssub.s32 %s22, %s29
    %p271 = scmp.eq.s32.totalorder %s270, 0
    %s273 = sadd.s32 %s272, 1
    %s274 = scalar_select %p271, %s272, %s273
    %p277 = pneg %p271
    %p278 = scmp.eq.s32.totalorder %s22, 1
    %p279 = por %p277, %p278
    %p280 = scmp.ne.s32.totalorder %s272, %s275
    %p281 = scmp.eq.s32.totalorder %s22, 0
    %p282 = por %p280, %p281
    %p283 = scmp.ne.s32.totalorder %s272, %s275
    %p284 = scmp.eq.s32.totalorder %s27, 1
    %p285 = por %p283, %p284
    %p286 = scmp.ne.s32.totalorder %s275, %s276
    %p287 = scmp.eq.s32.totalorder %s27, 0
    %p288 = por %p286, %p287
    %p289 = scmp.ne.s32.totalorder %s275, %s276
    %p290 = scmp.eq.s32.totalorder %s28, 1
    %p291 = por %p289, %p290
    %p293 = scmp.ne.s32.totalorder %s276, %s292
    %p294 = scmp.eq.s32.totalorder %s28, 0
    %p295 = por %p293, %p294
    %s296 = ssub.s32 %s22, %s29
    %p297 = scmp.eq.s32.totalorder %s296, 0
    %s299 = sadd.s32 %s298, 1
    %s300 = scalar_select %p297, %s298, %s299
    %p303 = pneg %p297
    %p304 = scmp.eq.s32.totalorder %s22, 1
    %p305 = por %p303, %p304
    %p306 = scmp.ne.s32.totalorder %s298, %s301
    %p307 = scmp.eq.s32.totalorder %s22, 0
    %p308 = por %p306, %p307
    %p309 = scmp.ne.s32.totalorder %s298, %s301
    %p310 = scmp.eq.s32.totalorder %s27, 1
    %p311 = por %p309, %p310
    %p312 = scmp.ne.s32.totalorder %s301, %s302
    %p313 = scmp.eq.s32.totalorder %s27, 0
    %p314 = por %p312, %p313
    %p315 = scmp.ne.s32.totalorder %s301, %s302
    %p316 = scmp.eq.s32.totalorder %s28, 1
    %p317 = por %p315, %p316
    %p319 = scmp.ne.s32.totalorder %s302, %s318
    %p320 = scmp.eq.s32.totalorder %s28, 0
    %p321 = por %p319, %p320
    %s322 = ssub.s32 %s22, %s29
    %p323 = scmp.eq.s32.totalorder %s322, 0
    %s325 = sadd.s32 %s324, 1
    %s326 = scalar_select %p323, %s324, %s325
    %p329 = pneg %p323
    %p330 = scmp.eq.s32.totalorder %s22, 1
    %p331 = por %p329, %p330
    %p332 = scmp.ne.s32.totalorder %s324, %s327
    %p333 = scmp.eq.s32.totalorder %s22, 0
    %p334 = por %p332, %p333
    %p335 = scmp.ne.s32.totalorder %s324, %s327
    %p336 = scmp.eq.s32.totalorder %s27, 1
    %p337 = por %p335, %p336
    %p338 = scmp.ne.s32.totalorder %s327, %s328
    %p339 = scmp.eq.s32.totalorder %s27, 0
    %p340 = por %p338, %p339
    %p341 = scmp.ne.s32.totalorder %s327, %s328
    %p342 = scmp.eq.s32.totalorder %s28, 1
    %p343 = por %p341, %p342
    %p345 = scmp.ne.s32.totalorder %s328, %s344
    %p346 = scmp.eq.s32.totalorder %s28, 0
    %p347 = por %p345, %p346
    %s348 = ssub.s32 %s22, %s29
    %p349 = scmp.eq.s32.totalorder %s348, 0
    %s351 = sadd.s32 %s350, 1
    %s352 = scalar_select %p349, %s350, %s351
    %p355 = pneg %p349
    %p356 = scmp.eq.s32.totalorder %s22, 1
    %p357 = por %p355, %p356
    %p358 = scmp.ne.s32.totalorder %s350, %s353
    %p359 = scmp.eq.s32.totalorder %s22, 0
    %p360 = por %p358, %p359
    %p361 = scmp.ne.s32.totalorder %s350, %s353
    %p362 = scmp.eq.s32.totalorder %s27, 1
    %p363 = por %p361, %p362
    %p364 = scmp.ne.s32.totalorder %s353, %s354
    %p365 = scmp.eq.s32.totalorder %s27, 0
    %p366 = por %p364, %p365
    %p367 = scmp.ne.s32.totalorder %s353, %s354
    %p368 = scmp.eq.s32.totalorder %s28, 1
    %p369 = por %p367, %p368
    %p371 = scmp.ne.s32.totalorder %s354, %s370
    %p372 = scmp.eq.s32.totalorder %s28, 0
    %p373 = por %p371, %p372
    %s374 = ssub.s32 %s22, %s29
    %p375 = scmp.eq.s32.totalorder %s374, 0
    %s377 = sadd.s32 %s376, 1
    %s378 = scalar_select %p375, %s376, %s377
    %p381 = pneg %p375
    %p382 = scmp.eq.s32.totalorder %s22, 1
    %p383 = por %p381, %p382
    %p384 = scmp.ne.s32.totalorder %s376, %s379
    %p385 = scmp.eq.s32.totalorder %s22, 0
    %p386 = por %p384, %p385
    %p387 = scmp.ne.s32.totalorder %s376, %s379
    %p388 = scmp.eq.s32.totalorder %s27, 1
    %p389 = por %p387, %p388
    %p390 = scmp.ne.s32.totalorder %s379, %s380
    %p391 = scmp.eq.s32.totalorder %s27, 0
    %p392 = por %p390, %p391
    %p393 = scmp.ne.s32.totalorder %s379, %s380
    %p394 = scmp.eq.s32.totalorder %s28, 1
    %p395 = por %p393, %p394
    %p397 = scmp.ne.s32.totalorder %s380, %s396
    %p398 = scmp.eq.s32.totalorder %s28, 0
    %p399 = por %p397, %p398
    %s400 = ssub.s32 %s22, %s29
    %p401 = scmp.eq.s32.totalorder %s400, 0
    %s403 = sadd.s32 %s402, 1
    %s404 = scalar_select %p401, %s402, %s403
    %p407 = pneg %p401
    %p408 = scmp.eq.s32.totalorder %s22, 1
    %p409 = por %p407, %p408
    %p410 = scmp.ne.s32.totalorder %s402, %s405
    %p411 = scmp.eq.s32.totalorder %s22, 0
    %p412 = por %p410, %p411
    %p413 = scmp.ne.s32.totalorder %s402, %s405
    %p414 = scmp.eq.s32.totalorder %s27, 1
    %p415 = por %p413, %p414
    %p416 = scmp.ne.s32.totalorder %s405, %s406
    %p417 = scmp.eq.s32.totalorder %s27, 0
    %p418 = por %p416, %p417
    %p419 = scmp.ne.s32.totalorder %s405, %s406
    %p420 = scmp.eq.s32.totalorder %s28, 1
    %p421 = por %p419, %p420
    %p423 = scmp.ne.s32.totalorder %s406, %s422
    %p424 = scmp.eq.s32.totalorder %s28, 0
    %p425 = por %p423, %p424
    %s427 = sadd.s32 %s426, 1
    %p430 = scmp.eq.s32.totalorder %s22, 1
    %p431 = scmp.ne.s32.totalorder %s426, %s428
    %p432 = scmp.eq.s32.totalorder %s22, 0
    %p433 = por %p431, %p432
    %p434 = scmp.ne.s32.totalorder %s426, %s428
    %p435 = scmp.eq.s32.totalorder %s27, 1
    %p436 = por %p434, %p435
    %p437 = scmp.ne.s32.totalorder %s428, %s429
    %p438 = scmp.eq.s32.totalorder %s27, 0
    %p439 = por %p437, %p438
    %p440 = scmp.ne.s32.totalorder %s428, %s429
    %p441 = scmp.eq.s32.totalorder %s28, 1
    %p442 = por %p440, %p441
    %p444 = scmp.ne.s32.totalorder %s429, %s443
    %p445 = scmp.eq.s32.totalorder %s28, 0
    %p446 = por %p444, %p445
    %p447 = scmp.le.s32.totalorder 1, %s22
    %p448 = scmp.lt.s32.totalorder %s22, 3
    %p449 = pnand %p447, %p448
    %p450 = pneg %p449
    // Predicated region
    $region9: #{bert_vit_forward.7} parent=5 // pred_check
      _
    $region10: #{bert_vit_forward.7} parent=5 // pred_check_branch
      %452 = sbr.rel (%p449) target = $region12
    $region11: #{bert_vit_forward.7} parent=5 // pred_region
      %s453 = ssub.s32 %s22, 1
      // Predicated region
      $region13: #{bert_vit_forward.7} parent=11 // pred_check
        %p454 = pneg %p43
      $region14: #{bert_vit_forward.7} parent=11 // pred_check_branch
        %456 = sbr.rel (%p454) target = $region16
      $region15: #{bert_vit_forward.7} parent=11 // pred_region
        _
      $region16: #{bert_vit_forward.7} parent=11 // pred_fallthru
        _
      // Predicated region
      $region17: #{bert_vit_forward.7} parent=11 // pred_check
        %p457 = pneg %p64
      $region18: #{bert_vit_forward.7} parent=11 // pred_check_branch
        %459 = sbr.rel (%p457) target = $region20
      $region19: #{bert_vit_forward.7} parent=11 // pred_region
        _
      $region20: #{bert_vit_forward.7} parent=11 // pred_fallthru
        _
      // Predicated region
      $region21: #{bert_vit_forward.7} parent=11 // pred_check
        %p460 = pneg %p85
      $region22: #{bert_vit_forward.7} parent=11 // pred_check_branch
        %462 = sbr.rel (%p460) target = $region24
      $region23: #{bert_vit_forward.7} parent=11 // pred_region
        _
      $region24: #{bert_vit_forward.7} parent=11 // pred_fallthru
        _
      // Predicated region
      $region25: #{bert_vit_forward.7} parent=11 // pred_check
        %p463 = pneg %p106
      $region26: #{bert_vit_forward.7} parent=11 // pred_check_branch
        %465 = sbr.rel (%p463) target = $region28
      $region27: #{bert_vit_forward.7} parent=11 // pred_region
        _
      $region28: #{bert_vit_forward.7} parent=11 // pred_fallthru
        _
    $region12: #{bert_vit_forward.7} parent=5 // pred_fallthru
      _
    %p466 = scmp.lt.s32.totalorder %s22, 2
    // Predicated region
    $region29: #{bert_vit_forward.7} parent=5 // pred_check
      %p467 = pneg %p466
    $region30: #{bert_vit_forward.7} parent=5 // pred_check_branch
      %469 = sbr.rel (%p467) target = $region32
    $region31: #{bert_vit_forward.7} parent=5 // pred_region
      // Predicated region
      $region33: #{bert_vit_forward.7} parent=31 // pred_check
        %p470 = pneg %p126
      $region34: #{bert_vit_forward.7} parent=31 // pred_check_branch
        %472 = sbr.rel (%p470) target = $region36
      $region35: #{bert_vit_forward.7} parent=31 // pred_region
        %p473 = scmp.lt.s32.totalorder %s22, 1
        %s474 = scalar_select %p473, %s22, 1
        %s475 = smul.addr %s474, 16
        %s476 = smul.addr %s475, 4
        %s477 = scalar_lea.vmem %s4, %s476
      $region36: #{bert_vit_forward.7} parent=31 // pred_fallthru
        _
      // Predicated region
      $region37: #{bert_vit_forward.7} parent=31 // pred_check
        %p478 = pneg %p152
      $region38: #{bert_vit_forward.7} parent=31 // pred_check_branch
        %480 = sbr.rel (%p478) target = $region40
      $region39: #{bert_vit_forward.7} parent=31 // pred_region
        %p481 = scmp.lt.s32.totalorder %s22, 1
        %s482 = scalar_select %p481, %s22, 1
        %s483 = smul.addr %s482, 2
        %s484 = scalar_lea.vmem %s5, %s483
      $region40: #{bert_vit_forward.7} parent=31 // pred_fallthru
        _
      // Predicated region
      $region41: #{bert_vit_forward.7} parent=31 // pred_check
        %p485 = pneg %p178
      $region42: #{bert_vit_forward.7} parent=31 // pred_check_branch
        %487 = sbr.rel (%p485) target = $region44
      $region43: #{bert_vit_forward.7} parent=31 // pred_region
        %p488 = scmp.lt.s32.totalorder %s22, 1
        %s489 = scalar_select %p488, %s22, 1
        %s490 = smul.addr %s489, 8
        %s491 = smul.addr %s490, 4
        %s492 = scalar_lea.vmem %s6, %s491
      $region44: #{bert_vit_forward.7} parent=31 // pred_fallthru
        _
      // Predicated region
      $region45: #{bert_vit_forward.7} parent=31 // pred_check
        %p493 = pneg %p204
      $region46: #{bert_vit_forward.7} parent=31 // pred_check_branch
        %495 = sbr.rel (%p493) target = $region48
      $region47: #{bert_vit_forward.7} parent=31 // pred_region
        %p496 = scmp.lt.s32.totalorder %s22, 1
        %s497 = scalar_select %p496, %s22, 1
        %s498 = scalar_lea.vmem %s7, %s497
      $region48: #{bert_vit_forward.7} parent=31 // pred_fallthru
        _
      // Predicated region
      $region49: #{bert_vit_forward.7} parent=31 // pred_check
        %p499 = pneg %p230
      $region50: #{bert_vit_forward.7} parent=31 // pred_check_branch
        %501 = sbr.rel (%p499) target = $region52
      $region51: #{bert_vit_forward.7} parent=31 // pred_region
        %p502 = scmp.lt.s32.totalorder %s22, 1
        %s503 = scalar_select %p502, %s22, 1
        %s504 = scalar_lea.vmem %s8, %s503
      $region52: #{bert_vit_forward.7} parent=31 // pred_fallthru
        _
      // Predicated region
      $region53: #{bert_vit_forward.7} parent=31 // pred_check
        %p505 = pneg %p256
      $region54: #{bert_vit_forward.7} parent=31 // pred_check_branch
        %507 = sbr.rel (%p505) target = $region56
      $region55: #{bert_vit_forward.7} parent=31 // pred_region
        %p508 = scmp.lt.s32.totalorder %s22, 1
        %s509 = scalar_select %p508, %s22, 1
        %s510 = scalar_lea.vmem %s9, %s509
      $region56: #{bert_vit_forward.7} parent=31 // pred_fallthru
        _
      // Predicated region
      $region57: #{bert_vit_forward.7} parent=31 // pred_check
        %p511 = pneg %p282
      $region58: #{bert_vit_forward.7} parent=31 // pred_check_branch
        %513 = sbr.rel (%p511) target = $region60
      $region59: #{bert_vit_forward.7} parent=31 // pred_region
        %p514 = scmp.lt.s32.totalorder %s22, 1
        %s515 = scalar_select %p514, %s22, 1
        %s516 = smul.addr %s515, 8
        %s517 = smul.addr %s516, 4
        %s518 = scalar_lea.vmem %s10, %s517
      $region60: #{bert_vit_forward.7} parent=31 // pred_fallthru
        _
      // Predicated region
      $region61: #{bert_vit_forward.7} parent=31 // pred_check
        %p519 = pneg %p308
      $region62: #{bert_vit_forward.7} parent=31 // pred_check_branch
        %521 = sbr.rel (%p519) target = $region64
      $region63: #{bert_vit_forward.7} parent=31 // pred_region
        %p522 = scmp.lt.s32.totalorder %s22, 1
        %s523 = scalar_select %p522, %s22, 1
        %s524 = scalar_lea.vmem %s11, %s523
      $region64: #{bert_vit_forward.7} parent=31 // pred_fallthru
        _
      // Predicated region
      $region65: #{bert_vit_forward.7} parent=31 // pred_check
        %p525 = pneg %p334
      $region66: #{bert_vit_forward.7} parent=31 // pred_check_branch
        %527 = sbr.rel (%p525) target = $region68
      $region67: #{bert_vit_forward.7} parent=31 // pred_region
        %p528 = scmp.lt.s32.totalorder %s22, 1
        %s529 = scalar_select %p528, %s22, 1
        %s530 = smul.addr %s529, 16
        %s531 = smul.addr %s530, 4
        %s532 = scalar_lea.vmem %s12, %s531
      $region68: #{bert_vit_forward.7} parent=31 // pred_fallthru
        _
      // Predicated region
      $region69: #{bert_vit_forward.7} parent=31 // pred_check
        %p533 = pneg %p360
      $region70: #{bert_vit_forward.7} parent=31 // pred_check_branch
        %535 = sbr.rel (%p533) target = $region72
      $region71: #{bert_vit_forward.7} parent=31 // pred_region
        %p536 = scmp.lt.s32.totalorder %s22, 1
        %s537 = scalar_select %p536, %s22, 1
        %s538 = scalar_lea.vmem %s13, %s537
      $region72: #{bert_vit_forward.7} parent=31 // pred_fallthru
        _
      // Predicated region
      $region73: #{bert_vit_forward.7} parent=31 // pred_check
        %p539 = pneg %p386
      $region74: #{bert_vit_forward.7} parent=31 // pred_check_branch
        %541 = sbr.rel (%p539) target = $region76
      $region75: #{bert_vit_forward.7} parent=31 // pred_region
        %p542 = scmp.lt.s32.totalorder %s22, 1
        %s543 = scalar_select %p542, %s22, 1
        %s544 = scalar_lea.vmem %s14, %s543
      $region76: #{bert_vit_forward.7} parent=31 // pred_fallthru
        _
      // Predicated region
      $region77: #{bert_vit_forward.7} parent=31 // pred_check
        %p545 = pneg %p412
      $region78: #{bert_vit_forward.7} parent=31 // pred_check_branch
        %547 = sbr.rel (%p545) target = $region80
      $region79: #{bert_vit_forward.7} parent=31 // pred_region
        %p548 = scmp.lt.s32.totalorder %s22, 1
        %s549 = scalar_select %p548, %s22, 1
        %s550 = scalar_lea.vmem %s15, %s549
      $region80: #{bert_vit_forward.7} parent=31 // pred_fallthru
        _
    $region32: #{bert_vit_forward.7} parent=5 // pred_fallthru
      _
    %p551 = scmp.le.s32.totalorder 1, %s22
    %p552 = scmp.lt.s32.totalorder %s22, 3
    %p553 = pnand %p551, %p552
    %p554 = pneg %p553
    // Predicated region
    $region81: #{bert_vit_forward.7} parent=5 // pred_check
      _
    $region82: #{bert_vit_forward.7} parent=5 // pred_check_branch
      %556 = sbr.rel (%p553) target = $region84
    $region83: #{bert_vit_forward.7} parent=5 // pred_region
      %s557 = ssub.s32 %s22, 1
      %p558 = pneg %p43
      %p559 = pneg %p40
      %p560 = pneg %p64
      %p561 = pneg %p61
      %p562 = pneg %p85
      %p563 = pneg %p82
      %p564 = pneg %p106
      %p565 = pneg %p103
      %p566 = scmp.lt.s32.totalorder %s27, 1
      %s567 = scalar_select %p566, %s27, 1
      %s568 = smul.addr %s567, 16
      %s569 = smul.addr %s568, 4
      %s570 = scalar_lea.vmem %s4, %s569
      %p571 = pneg %p132
      %p572 = pneg %p129
      %p573 = scmp.lt.s32.totalorder %s27, 1
      %s574 = scalar_select %p573, %s27, 1
      %s575 = smul.addr %s574, 2
      %s576 = scalar_lea.vmem %s5, %s575
      %p577 = pneg %p158
      %p578 = pneg %p155
      %p579 = scmp.lt.s32.totalorder %s27, 1
      %s580 = scalar_select %p579, %s27, 1
      %s581 = smul.addr %s580, 8
      %s582 = smul.addr %s581, 4
      %s583 = scalar_lea.vmem %s6, %s582
      %p584 = pneg %p184
      %p585 = pneg %p181
      %p586 = scmp.lt.s32.totalorder %s27, 1
      %s587 = scalar_select %p586, %s27, 1
      %s588 = scalar_lea.vmem %s7, %s587
      %p589 = pneg %p210
      %p590 = pneg %p207
      %p591 = scmp.lt.s32.totalorder %s27, 1
      %s592 = scalar_select %p591, %s27, 1
      %s593 = scalar_lea.vmem %s8, %s592
      %p594 = pneg %p236
      %p595 = pneg %p233
      %p596 = scmp.lt.s32.totalorder %s27, 1
      %s597 = scalar_select %p596, %s27, 1
      %s598 = scalar_lea.vmem %s9, %s597
      %p599 = pneg %p262
      %p600 = pneg %p259
      %p601 = scmp.lt.s32.totalorder %s27, 1
      %s602 = scalar_select %p601, %s27, 1
      %s603 = smul.addr %s602, 8
      %s604 = smul.addr %s603, 4
      %s605 = scalar_lea.vmem %s10, %s604
      %p606 = pneg %p288
      %p607 = pneg %p285
      %p608 = scmp.lt.s32.totalorder %s27, 1
      %s609 = scalar_select %p608, %s27, 1
      %s610 = scalar_lea.vmem %s11, %s609
      %p611 = pneg %p314
      %p612 = pneg %p311
      %p613 = scmp.lt.s32.totalorder %s27, 1
      %s614 = scalar_select %p613, %s27, 1
      %s615 = smul.addr %s614, 16
      %s616 = smul.addr %s615, 4
      %s617 = scalar_lea.vmem %s12, %s616
      %p618 = pneg %p340
      %p619 = pneg %p337
      %p620 = scmp.lt.s32.totalorder %s27, 1
      %s621 = scalar_select %p620, %s27, 1
      %s622 = scalar_lea.vmem %s13, %s621
      %p623 = pneg %p366
      %p624 = pneg %p363
      %p625 = scmp.lt.s32.totalorder %s27, 1
      %s626 = scalar_select %p625, %s27, 1
      %s627 = scalar_lea.vmem %s14, %s626
      %p628 = pneg %p392
      %p629 = pneg %p389
      %p630 = scmp.lt.s32.totalorder %s27, 1
      %s631 = scalar_select %p630, %s27, 1
      %s632 = scalar_lea.vmem %s15, %s631
      %p633 = pneg %p418
      %p634 = pneg %p415
      %p635 = pneg %p439
      %p636 = pneg %p436
      %p637 = scmp.lt.s32.totalorder %s27, 1
      %s638 = scalar_select %p637, %s27, 1
      %s639 = smul.addr %s638, 16
      %s640 = smul.addr %s639, 4
      %s641 = scalar_lea.vmem %s4, %s640
      %p642 = scmp.lt.s32.totalorder %s27, 1
      %s643 = scalar_select %p642, %s27, 1
      %s644 = smul.addr %s643, 2
      %s645 = scalar_lea.vmem %s5, %s644
      %p646 = scmp.lt.s32.totalorder %s27, 1
      %s647 = scalar_select %p646, %s27, 1
      %s648 = smul.addr %s647, 8
      %s649 = smul.addr %s648, 4
      %s650 = scalar_lea.vmem %s6, %s649
      %p651 = scmp.lt.s32.totalorder %s27, 1
      %s652 = scalar_select %p651, %s27, 1
      %s653 = scalar_lea.vmem %s7, %s652
      %p654 = scmp.lt.s32.totalorder %s27, 1
      %s655 = scalar_select %p654, %s27, 1
      %s656 = scalar_lea.vmem %s8, %s655
      %p657 = scmp.lt.s32.totalorder %s27, 1
      %s658 = scalar_select %p657, %s27, 1
      %s659 = scalar_lea.vmem %s9, %s658
      %p660 = scmp.lt.s32.totalorder %s27, 1
      %s661 = scalar_select %p660, %s27, 1
      %s662 = smul.addr %s661, 8
      %s663 = smul.addr %s662, 4
      %s664 = scalar_lea.vmem %s10, %s663
      %p665 = scmp.lt.s32.totalorder %s27, 1
      %s666 = scalar_select %p665, %s27, 1
      %s667 = scalar_lea.vmem %s11, %s666
      %p668 = scmp.lt.s32.totalorder %s27, 1
      %s669 = scalar_select %p668, %s27, 1
      %s670 = smul.addr %s669, 16
      %s671 = smul.addr %s670, 4
      %s672 = scalar_lea.vmem %s12, %s671
      %p673 = scmp.lt.s32.totalorder %s27, 1
      %s674 = scalar_select %p673, %s27, 1
      %s675 = scalar_lea.vmem %s13, %s674
      %p676 = scmp.lt.s32.totalorder %s27, 1
      %s677 = scalar_select %p676, %s27, 1
      %s678 = scalar_lea.vmem %s14, %s677
      %p679 = scmp.lt.s32.totalorder %s27, 1
      %s680 = scalar_select %p679, %s27, 1
      %s681 = scalar_lea.vmem %s15, %s680
      %p683 = scmp.eq.s32.totalorder %s27, 0
      // Predicated region
      $region85: #{bert_vit_forward.7} parent=83 // pred_check
        %p684 = pneg %p683
      $region86: #{bert_vit_forward.7} parent=83 // pred_check_branch
        %686 = sbr.rel (%p684) target = $region88
      $region87: #{bert_vit_forward.7} parent=83 // pred_region
        %v687 = vld [vmem:[%s1] sm:$0xff]
        %v688 = vld [vmem:[%s1 + $0x8] sm:$0xff]
        %vm689 = vcmask 523264
        %690 = vst.msk [vmem:[%s16] sm:$0xff] %vm689, %v687
        %691 = vst.msk [vmem:[%s16 + $0x8] sm:$0xff] %vm689, %v688
      $region88: #{bert_vit_forward.7} parent=83 // pred_fallthru
        _
      %v692 = vld [vmem:[%s16] sm:$0xff]
      %v693 = vld [vmem:[%s16 + $0x8] sm:$0xff]
      %v694 = vld [vmem:[%s0] sm:$0x3]
      %v695 = vld [vmem:[%s656] sm:$0x1]
      %v696 = vld [vmem:[%s659] sm:$0x1]
      %vm697 = vcmask 523264
      %v698 = vsel %vm697, %v692, 0.0
      %699 = vadd.xlane.f32.xlu0 %v698
      %v700 = vpop.xlane.xlu0 %699
      %v701 = vsel %vm697, %v693, 0.0
      %702 = vadd.xlane.f32.xlu0 %v701
      %v703 = vpop.xlane.xlu0 %702
      %v704 = vrcp.pop 64.0
      %v705 = vmul.f32 %v700, %v704
      %v706 = vmul.f32 %v703, %v704
      %v707 = vsub.f32 %v692, %v705
      %v708 = vsub.f32 %v693, %v706
      %v709 = vmul.f32 %v707, %v707
      %v710 = vmul.f32 %v708, %v708
      %v711 = vsel %vm697, %v709, 0.0
      %712 = vadd.xlane.f32.xlu0 %v711
      %v713 = vpop.xlane.xlu0 %712
      %v714 = vsel %vm697, %v710, 0.0
      %715 = vadd.xlane.f32.xlu0 %v714
      %v716 = vpop.xlane.xlu0 %715
      %v717 = vmul.f32 %v713, %v704
      %v718 = vmul.f32 %v716, %v704
      %v719 = vadd.f32 %v717, 1e-12
      %v720 = vadd.f32 %v718, 1e-12
      %v721 = vrsqrt.pop %v719
      %v722 = vrsqrt.pop %v720
      %v723 = vmul.f32 %v707, %v721
      %v724 = vmul.f32 %v708, %v722
      %v726 = vlaneseq
      %v727 = vshrl.u32 %v726, 7
      %v728 = vsub.s32 0, %v727
      %v729 = vrot.slane %v695, %v728
      %v731 = vmul.f32 %v723, %v729
      %v732 = vmul.f32 %v724, %v729
      %v734 = vlaneseq
      %v735 = vshrl.u32 %v734, 7
      %v736 = vsub.s32 0, %v735
      %v737 = vrot.slane %v696, %v736
      %v739 = vadd.f32 %v731, %v737
      %v740 = vadd.f32 %v732, %v737
      %v741 = vld [vmem:[%s641] sm:$0xff]
      %v742 = vld [vmem:[%s641 + $0x8] sm:$0xff]
      %v743 = vld [vmem:[%s641 + $0x10] sm:$0xff]
      %v744 = vld [vmem:[%s641 + $0x18] sm:$0xff]
      %v745 = vld [vmem:[%s641 + $0x20] sm:$0xff]
      %v746 = vld [vmem:[%s641 + $0x28] sm:$0xff]
      %v747 = vld [vmem:[%s641 + $0x30] sm:$0xff]
      %v748 = vld [vmem:[%s641 + $0x38] sm:$0xff]
      %v749 = vpack.c.bf16 %v740, %v739
      %v750 = vld [vmem:[%s645] sm:$0x3]
      %v752 = vlaneseq
      %v753 = vshrl.u32 %v752, 7
      %v754 = vsub.s32 0, %v753
      %v755 = vrot.slane %v750, %v754
      %v756 = vlaneseq
      %v757 = vshrl.u32 %v756, 7
      %v758 = vsub.s32 1, %v757
      %v759 = vrot.slane %v750, %v758
      %v770 = vunpack.c.l.b16 %v741
      %v771 = vunpack.c.h.b16 %v741
      %v772 = vunpack.c.l.b16 %v742
      %v773 = vunpack.c.h.b16 %v742
      %v774 = vunpack.c.l.b16 %v743
      %v775 = vunpack.c.h.b16 %v743
      %v776 = vunpack.c.l.b16 %v744
      %v777 = vunpack.c.h.b16 %v744
      %v778 = vunpack.c.l.b16 %v745
      %v779 = vunpack.c.h.b16 %v745
      %v780 = vunpack.c.l.b16 %v746
      %v781 = vunpack.c.h.b16 %v746
      %v782 = vunpack.c.l.b16 %v747
      %v783 = vunpack.c.h.b16 %v747
      %v784 = vunpack.c.l.b16 %v748
      %v785 = vunpack.c.h.b16 %v748
      %v786 = vpack.c.b16 %v772, %v770
      %v787 = vpack.c.b16 %v773, %v771
      %v788 = vpack.c.b16 %v776, %v774
      %v789 = vpack.c.b16 %v777, %v775
      %v790 = vpack.c.b16 %v780, %v778
      %v791 = vpack.c.b16 %v781, %v779
      %v792 = vpack.c.b16 %v784, %v782
      %v793 = vpack.c.b16 %v785, %v783
      %v803 = vsel %vm697, %v749, 0
      %805 = vmatprep.subr.bf16.mxu0 %v787
      %806 = vmatpush1.bf16.msra.mxu0 %v786
      %807 = vmatprep.subr.bf16.mxu0 %v789
      %808 = vmatpush1.bf16.msra.mxu0 %v788
      %809 = vmatprep.subr.bf16.mxu0 %v791
      %810 = vmatpush1.bf16.msra.mxu0 %v790
      %811 = vmatprep.subr.bf16.mxu0 %v793
      %812 = vmatpush1.bf16.msra.mxu0 %v792
      %813 = vmatprep.subr.bf16.mxu0 0
      %814 = vmatpush1.bf16.msra.mxu0 0
      %815 = vmatprep.subr.bf16.mxu0 0
      %816 = vmatpush1.bf16.msra.mxu0 0
      %817 = vmatprep.subr.bf16.mxu0 0
      %818 = vmatpush1.bf16.msra.mxu0 0
      %819 = vmatprep.subr.bf16.mxu0 0
      %820 = vmatpush1.bf16.msra.mxu0 0
      %821 = vmatprep.subr.bf16.mxu0 0
      %822 = vmatpush1.bf16.msra.mxu0 0
      %823 = vmatprep.subr.bf16.mxu0 0
      %824 = vmatpush1.bf16.msra.mxu0 0
      %825 = vmatprep.subr.bf16.mxu0 0
      %826 = vmatpush1.bf16.msra.mxu0 0
      %827 = vmatprep.subr.bf16.mxu0 0
      %828 = vmatpush1.bf16.msra.mxu0 0
      %829 = vmatprep.subr.bf16.mxu0 0
      %830 = vmatpush1.bf16.msra.mxu0 0
      %831 = vmatprep.subr.bf16.mxu0 0
      %832 = vmatpush1.bf16.msra.mxu0 0
      %833 = vmatprep.subr.bf16.mxu0 0
      %834 = vmatpush1.bf16.msra.mxu0 0
      %835 = vmatprep.subr.bf16.mxu0 0
      %836 = vmatpush1.bf16.msra.mxu0 0
      %837 = vmatprep.mubr.bf16.mxu0 0
      %838 = vmatmul.mubr.bf16.gmra.mrb[0].mxu0 %v803
      %v839 = vpop.f32.mrb[0].mxu0
      %v840 = vadd.f32 %v755, %v839
      %v841 = vpop.f32.mrb[0].mxu0
      %v842 = vadd.f32 %v759, %v841
      %v843 = vpop.f32.mrb[0].mxu0
      %v844 = vadd.f32 %v755, %v843
      %v845 = vpop.f32.mrb[0].mxu0
      %v846 = vadd.f32 %v759, %v845
      %847 = vdwg.mxu0
      %849 = vrot.lane.b32.xlu0 %v840, 64
      %v850 = vpop.permute.xlu0 %849
      %vm851 = vcmask 261120
      %v852 = vsel %vm851, %v840, 0
      %v854 = vsel %vm851, %v850, 0
      %856 = vmatprep.subr.mxu0 0.0
      %857 = vmatpush1.xpose.msra.mxu0 %v854
      %858 = vmatprep.subr.mxu0 0.0
      %859 = vmatpush1.xpose.msra.mxu0 0.0
      %860 = vmatprep.subr.mxu0 0.0
      %861 = vmatpush1.xpose.msra.mxu0 0.0
      %862 = vmatprep.subr.mxu0 0.0
      %863 = vmatpush1.xpose.msra.mxu0 0.0
      %864 = vmatprep.subr.mxu0 0.0
      %865 = vmatpush1.xpose.msra.mxu0 0.0
      %866 = vmatprep.subr.mxu0 0.0
      %867 = vmatpush1.xpose.msra.mxu0 0.0
      %868 = vmatprep.subr.mxu0 0.0
      %869 = vmatpush1.xpose.msra.mxu0 0.0
      %870 = vmatprep.subr.mxu0 0.0
      %871 = vmatpush1.xpose.msra.mxu0 0.0
      %872 = vmatprep.subr.mxu0 0.0
      %873 = vmatpush1.xpose.msra.mxu0 0.0
      %874 = vmatprep.subr.mxu0 0.0
      %875 = vmatpush1.xpose.msra.mxu0 0.0
      %876 = vmatprep.subr.mxu0 0.0
      %877 = vmatpush1.xpose.msra.mxu0 0.0
      %878 = vmatprep.subr.mxu0 0.0
      %879 = vmatpush1.xpose.msra.mxu0 0.0
      %880 = vmatprep.subr.mxu0 0.0
      %881 = vmatpush1.xpose.msra.mxu0 0.0
      %882 = vmatprep.subr.mxu0 0.0
      %883 = vmatpush1.xpose.msra.mxu0 0.0
      %884 = vmatprep.subr.mxu0 0.0
      %885 = vmatpush1.xpose.msra.mxu0 0.0
      %886 = vmatprep.subr.mxu0 0.0
      %887 = vmatpush1.xpose.msra.mxu0 0.0
      %888 = vmatprep.subr.mxu0 0.0
      %889 = vmatpush1.xpose.msra.mxu0 0.0
      %890 = vmatprep.subr.mxu0 0.0
      %891 = vmatpush1.xpose.msra.mxu0 0.0
      %892 = vmatprep.subr.mxu0 0.0
      %893 = vmatpush1.xpose.msra.mxu0 0.0
      %894 = vmatprep.subr.mxu0 0.0
      %895 = vmatpush1.xpose.msra.mxu0 0.0
      %896 = vmatprep.subr.mxu0 0.0
      %897 = vmatpush1.xpose.msra.mxu0 0.0
      %898 = vmatprep.subr.mxu0 0.0
      %899 = vmatpush1.xpose.msra.mxu0 0.0
      %900 = vmatprep.subr.mxu0 0.0
      %901 = vmatpush1.xpose.msra.mxu0 0.0
      %902 = vmatprep.subr.mxu0 0.0
      %903 = vmatpush1.xpose.msra.mxu0 0.0
      %904 = vmatprep.subr.mxu0 0.0
      %905 = vmatpush1.xpose.msra.mxu0 0.0
      %906 = vmatprep.subr.mxu0 0.0
      %907 = vmatpush1.xpose.msra.mxu0 0.0
      %908 = vmatprep.subr.mxu0 0.0
      %909 = vmatpush1.xpose.msra.mxu0 0.0
      %910 = vmatprep.subr.mxu0 0.0
      %911 = vmatpush1.xpose.msra.mxu0 0.0
      %912 = vmatprep.subr.mxu0 0.0
      %913 = vmatpush1.xpose.msra.mxu0 0.0
      %914 = vmatprep.subr.mxu0 0.0
      %915 = vmatpush1.xpose.msra.mxu0 0.0
      %916 = vmatprep.subr.mxu0 0.0
      %917 = vmatpush1.xpose.msra.mxu0 0.0
      %918 = vmatprep.subr.mxu0 0.0
      %919 = vmatpush1.xpose.msra.mxu0 0.0
      %920 = vmatprep.mubr.f32.mxu0 0.0
      %921 = vmatmul.mubr.f32.gmra.mrb[0].mxu0 %v852
      %v922 = vpop.f32.mrb[0].mxu0
      %v923 = vadd.f32 0.0, %v922
      %v924 = vpop.f32.mrb[0].mxu0
      %925 = vdwg.mxu0
      %v926 = vmul.f32 %v923, 0.17677669
      %v927 = vlaneseq
      %v928 = vshrl.u32 %v927, 7
      %v929 = vsub.s32 0, %v928
      %v930 = vrot.slane %v694, %v929
      %v931 = vadd.f32 %v926, %v930
      %vm932 = vcmask 64512
      %v933 = vsel %vm932, %v931, -inf
      %934 = vmax.xlane.f32.xlu0 %v933
      %v935 = vpop.xlane.xlu0 %934
      %v936 = vsub.f32 %v931, %v935
      %v937 = vmul.f32 %v936, 1.442695
      %v938 = vpow.pop %v937
      %v939 = vsel %vm932, %v938, 0.0
      %940 = vadd.xlane.f32.xlu0 %v939
      %v941 = vpop.xlane.xlu0 %940
      %v942 = vrcp.pop %v941
      %v943 = vmul.f32 %v938, %v942
      %v945 = vsel %vm932, %v943, 0
      %947 = vmatprep.subr.mxu0 0.0
      %948 = vmatpush1.msra.mxu0 %v842
      %949 = vmatprep.subr.mxu0 0.0
      %950 = vmatpush1.msra.mxu0 0.0
      %951 = vmatprep.subr.mxu0 0.0
      %952 = vmatpush1.msra.mxu0 0.0
      %953 = vmatprep.subr.mxu0 0.0
      %954 = vmatpush1.msra.mxu0 0.0
      %955 = vmatprep.subr.mxu0 0.0
      %956 = vmatpush1.msra.mxu0 0.0
      %957 = vmatprep.subr.mxu0 0.0
      %958 = vmatpush1.msra.mxu0 0.0
      %959 = vmatprep.subr.mxu0 0.0
      %960 = vmatpush1.msra.mxu0 0.0
      %961 = vmatprep.subr.mxu0 0.0
      %962 = vmatpush1.msra.mxu0 0.0
      %963 = vmatprep.subr.mxu0 0.0
      %964 = vmatpush1.msra.mxu0 0.0
      %965 = vmatprep.subr.mxu0 0.0
      %966 = vmatpush1.msra.mxu0 0.0
      %967 = vmatprep.subr.mxu0 0.0
      %968 = vmatpush1.msra.mxu0 0.0
      %969 = vmatprep.subr.mxu0 0.0
      %970 = vmatpush1.msra.mxu0 0.0
      %971 = vmatprep.subr.mxu0 0.0
      %972 = vmatpush1.msra.mxu0 0.0
      %973 = vmatprep.subr.mxu0 0.0
      %974 = vmatpush1.msra.mxu0 0.0
      %975 = vmatprep.subr.mxu0 0.0
      %976 = vmatpush1.msra.mxu0 0.0
      %977 = vmatprep.subr.mxu0 0.0
      %978 = vmatpush1.msra.mxu0 0.0
      %979 = vmatprep.subr.mxu0 0.0
      %980 = vmatpush1.msra.mxu0 0.0
      %981 = vmatprep.subr.mxu0 0.0
      %982 = vmatpush1.msra.mxu0 0.0
      %983 = vmatprep.subr.mxu0 0.0
      %984 = vmatpush1.msra.mxu0 0.0
      %985 = vmatprep.subr.mxu0 0.0
      %986 = vmatpush1.msra.mxu0 0.0
      %987 = vmatprep.subr.mxu0 0.0
      %988 = vmatpush1.msra.mxu0 0.0
      %989 = vmatprep.subr.mxu0 0.0
      %990 = vmatpush1.msra.mxu0 0.0
      %991 = vmatprep.subr.mxu0 0.0
      %992 = vmatpush1.msra.mxu0 0.0
      %993 = vmatprep.subr.mxu0 0.0
      %994 = vmatpush1.msra.mxu0 0.0
      %995 = vmatprep.subr.mxu0 0.0
      %996 = vmatpush1.msra.mxu0 0.0
      %997 = vmatprep.subr.mxu0 0.0
      %998 = vmatpush1.msra.mxu0 0.0
      %999 = vmatprep.subr.mxu0 0.0
      %1000 = vmatpush1.msra.mxu0 0.0
      %1001 = vmatprep.subr.mxu0 0.0
      %1002 = vmatpush1.msra.mxu0 0.0
      %1003 = vmatprep.subr.mxu0 0.0
      %1004 = vmatpush1.msra.mxu0 0.0
      %1005 = vmatprep.subr.mxu0 0.0
      %1006 = vmatpush1.msra.mxu0 0.0
      %1007 = vmatprep.subr.mxu0 0.0
      %1008 = vmatpush1.msra.mxu0 0.0
      %1009 = vmatprep.subr.mxu0 0.0
      %1010 = vmatpush1.msra.mxu0 0.0
      %1011 = vmatprep.mubr.f32.mxu0 0.0
      %1012 = vmatmul.mubr.f32.gmra.mrb[0].mxu0 %v945
      %v1013 = vpop.f32.mrb[0].mxu0
      %v1014 = vadd.f32 0.0, %v1013
      %v1015 = vpop.f32.mrb[0].mxu0
      %1016 = vdwg.mxu0
      %1018 = vrot.lane.b32.xlu0 %v844, 64
      %v1019 = vpop.permute.xlu0 %1018
      %v1020 = vsel %vm851, %v844, 0
      %v1022 = vsel %vm851, %v1019, 0
      %1024 = vmatprep.subr.mxu0 0.0
      %1025 = vmatpush1.xpose.msra.mxu0 %v1022
      %1026 = vmatprep.subr.mxu0 0.0
      %1027 = vmatpush1.xpose.msra.mxu0 0.0
      %1028 = vmatprep.subr.mxu0 0.0
      %1029 = vmatpush1.xpose.msra.mxu0 0.0
      %1030 = vmatprep.subr.mxu0 0.0
      %1031 = vmatpush1.xpose.msra.mxu0 0.0
      %1032 = vmatprep.subr.mxu0 0.0
      %1033 = vmatpush1.xpose.msra.mxu0 0.0
      %1034 = vmatprep.subr.mxu0 0.0
      %1035 = vmatpush1.xpose.msra.mxu0 0.0
      %1036 = vmatprep.subr.mxu0 0.0
      %1037 = vmatpush1.xpose.msra.mxu0 0.0
      %1038 = vmatprep.subr.mxu0 0.0
      %1039 = vmatpush1.xpose.msra.mxu0 0.0
      %1040 = vmatprep.subr.mxu0 0.0
      %1041 = vmatpush1.xpose.msra.mxu0 0.0
      %1042 = vmatprep.subr.mxu0 0.0
      %1043 = vmatpush1.xpose.msra.mxu0 0.0
      %1044 = vmatprep.subr.mxu0 0.0
      %1045 = vmatpush1.xpose.msra.mxu0 0.0
      %1046 = vmatprep.subr.mxu0 0.0
      %1047 = vmatpush1.xpose.msra.mxu0 0.0
      %1048 = vmatprep.subr.mxu0 0.0
      %1049 = vmatpush1.xpose.msra.mxu0 0.0
      %1050 = vmatprep.subr.mxu0 0.0
      %1051 = vmatpush1.xpose.msra.mxu0 0.0
      %1052 = vmatprep.subr.mxu0 0.0
      %1053 = vmatpush1.xpose.msra.mxu0 0.0
      %1054 = vmatprep.subr.mxu0 0.0
      %1055 = vmatpush1.xpose.msra.mxu0 0.0
      %1056 = vmatprep.subr.mxu0 0.0
      %1057 = vmatpush1.xpose.msra.mxu0 0.0
      %1058 = vmatprep.subr.mxu0 0.0
      %1059 = vmatpush1.xpose.msra.mxu0 0.0
      %1060 = vmatprep.subr.mxu0 0.0
      %1061 = vmatpush1.xpose.msra.mxu0 0.0
      %1062 = vmatprep.subr.mxu0 0.0
      %1063 = vmatpush1.xpose.msra.mxu0 0.0
      %1064 = vmatprep.subr.mxu0 0.0
      %1065 = vmatpush1.xpose.msra.mxu0 0.0
      %1066 = vmatprep.subr.mxu0 0.0
      %1067 = vmatpush1.xpose.msra.mxu0 0.0
      %1068 = vmatprep.subr.mxu0 0.0
      %1069 = vmatpush1.xpose.msra.mxu0 0.0
      %1070 = vmatprep.subr.mxu0 0.0
      %1071 = vmatpush1.xpose.msra.mxu0 0.0
      %1072 = vmatprep.subr.mxu0 0.0
      %1073 = vmatpush1.xpose.msra.mxu0 0.0
      %1074 = vmatprep.subr.mxu0 0.0
      %1075 = vmatpush1.xpose.msra.mxu0 0.0
      %1076 = vmatprep.subr.mxu0 0.0
      %1077 = vmatpush1.xpose.msra.mxu0 0.0
      %1078 = vmatprep.subr.mxu0 0.0
      %1079 = vmatpush1.xpose.msra.mxu0 0.0
      %1080 = vmatprep.subr.mxu0 0.0
      %1081 = vmatpush1.xpose.msra.mxu0 0.0
      %1082 = vmatprep.subr.mxu0 0.0
      %1083 = vmatpush1.xpose.msra.mxu0 0.0
      %1084 = vmatprep.subr.mxu0 0.0
      %1085 = vmatpush1.xpose.msra.mxu0 0.0
      %1086 = vmatprep.subr.mxu0 0.0
      %1087 = vmatpush1.xpose.msra.mxu0 0.0
      %1088 = vmatprep.mubr.f32.mxu0 0.0
      %1089 = vmatmul.mubr.f32.gmra.mrb[0].mxu0 %v1020
      %v1090 = vpop.f32.mrb[0].mxu0
      %v1091 = vadd.f32 0.0, %v1090
      %v1092 = vpop.f32.mrb[0].mxu0
      %1093 = vdwg.mxu0
      %v1094 = vmul.f32 %v1091, 0.17677669
      %v1095 = vlaneseq
      %v1096 = vshrl.u32 %v1095, 7
      %v1097 = vsub.s32 1, %v1096
      %v1098 = vrot.slane %v694, %v1097
      %v1099 = vadd.f32 %v1094, %v1098
      %v1100 = vsel %vm932, %v1099, -inf
      %1101 = vmax.xlane.f32.xlu0 %v1100
      %v1102 = vpop.xlane.xlu0 %1101
      %v1103 = vsub.f32 %v1099, %v1102
      %v1104 = vmul.f32 %v1103, 1.442695
      %v1105 = vpow.pop %v1104
      %v1106 = vsel %vm932, %v1105, 0.0
      %1107 = vadd.xlane.f32.xlu0 %v1106
      %v1108 = vpop.xlane.xlu0 %1107
      %v1109 = vrcp.pop %v1108
      %v1110 = vmul.f32 %v1105, %v1109
      %v1112 = vsel %vm932, %v1110, 0
      %1114 = vmatprep.subr.mxu0 0.0
      %1115 = vmatpush1.msra.mxu0 %v846
      %1116 = vmatprep.subr.mxu0 0.0
      %1117 = vmatpush1.msra.mxu0 0.0
      %1118 = vmatprep.subr.mxu0 0.0
      %1119 = vmatpush1.msra.mxu0 0.0
      %1120 = vmatprep.subr.mxu0 0.0
      %1121 = vmatpush1.msra.mxu0 0.0
      %1122 = vmatprep.subr.mxu0 0.0
      %1123 = vmatpush1.msra.mxu0 0.0
      %1124 = vmatprep.subr.mxu0 0.0
      %1125 = vmatpush1.msra.mxu0 0.0
      %1126 = vmatprep.subr.mxu0 0.0
      %1127 = vmatpush1.msra.mxu0 0.0
      %1128 = vmatprep.subr.mxu0 0.0
      %1129 = vmatpush1.msra.mxu0 0.0
      %1130 = vmatprep.subr.mxu0 0.0
      %1131 = vmatpush1.msra.mxu0 0.0
      %1132 = vmatprep.subr.mxu0 0.0
      %1133 = vmatpush1.msra.mxu0 0.0
      %1134 = vmatprep.subr.mxu0 0.0
      %1135 = vmatpush1.msra.mxu0 0.0
      %1136 = vmatprep.subr.mxu0 0.0
      %1137 = vmatpush1.msra.mxu0 0.0
      %1138 = vmatprep.subr.mxu0 0.0
      %1139 = vmatpush1.msra.mxu0 0.0
      %1140 = vmatprep.subr.mxu0 0.0
      %1141 = vmatpush1.msra.mxu0 0.0
      %1142 = vmatprep.subr.mxu0 0.0
      %1143 = vmatpush1.msra.mxu0 0.0
      %1144 = vmatprep.subr.mxu0 0.0
      %1145 = vmatpush1.msra.mxu0 0.0
      %1146 = vmatprep.subr.mxu0 0.0
      %1147 = vmatpush1.msra.mxu0 0.0
      %1148 = vmatprep.subr.mxu0 0.0
      %1149 = vmatpush1.msra.mxu0 0.0
      %1150 = vmatprep.subr.mxu0 0.0
      %1151 = vmatpush1.msra.mxu0 0.0
      %1152 = vmatprep.subr.mxu0 0.0
      %1153 = vmatpush1.msra.mxu0 0.0
      %1154 = vmatprep.subr.mxu0 0.0
      %1155 = vmatpush1.msra.mxu0 0.0
      %1156 = vmatprep.subr.mxu0 0.0
      %1157 = vmatpush1.msra.mxu0 0.0
      %1158 = vmatprep.subr.mxu0 0.0
      %1159 = vmatpush1.msra.mxu0 0.0
      %1160 = vmatprep.subr.mxu0 0.0
      %1161 = vmatpush1.msra.mxu0 0.0
      %1162 = vmatprep.subr.mxu0 0.0
      %1163 = vmatpush1.msra.mxu0 0.0
      %1164 = vmatprep.subr.mxu0 0.0
      %1165 = vmatpush1.msra.mxu0 0.0
      %1166 = vmatprep.subr.mxu0 0.0
      %1167 = vmatpush1.msra.mxu0 0.0
      %1168 = vmatprep.subr.mxu0 0.0
      %1169 = vmatpush1.msra.mxu0 0.0
      %1170 = vmatprep.subr.mxu0 0.0
      %1171 = vmatpush1.msra.mxu0 0.0
      %1172 = vmatprep.subr.mxu0 0.0
      %1173 = vmatpush1.msra.mxu0 0.0
      %1174 = vmatprep.subr.mxu0 0.0
      %1175 = vmatpush1.msra.mxu0 0.0
      %1176 = vmatprep.subr.mxu0 0.0
      %1177 = vmatpush1.msra.mxu0 0.0
      %1178 = vmatprep.mubr.f32.mxu0 0.0
      %1179 = vmatmul.mubr.f32.gmra.mrb[0].mxu0 %v1112
      %v1180 = vpop.f32.mrb[0].mxu0
      %v1181 = vadd.f32 0.0, %v1180
      %v1182 = vpop.f32.mrb[0].mxu0
      %1183 = vdwg.mxu0
      %1184 = vrot.lane.b32.xlu0 %v840, 96
      %v1185 = vpop.permute.xlu0 %1184
      %1186 = vrot.lane.b32.xlu0 %v840, 32
      %v1187 = vpop.permute.xlu0 %1186
      %v1188 = vsel %vm851, %v1185, 0
      %v1190 = vsel %vm851, %v1187, 0
      %1192 = vmatprep.subr.mxu0 0.0
      %1193 = vmatpush1.xpose.msra.mxu0 %v1190
      %1194 = vmatprep.subr.mxu0 0.0
      %1195 = vmatpush1.xpose.msra.mxu0 0.0
      %1196 = vmatprep.subr.mxu0 0.0
      %1197 = vmatpush1.xpose.msra.mxu0 0.0
      %1198 = vmatprep.subr.mxu0 0.0
      %1199 = vmatpush1.xpose.msra.mxu0 0.0
      %1200 = vmatprep.subr.mxu0 0.0
      %1201 = vmatpush1.xpose.msra.mxu0 0.0
      %1202 = vmatprep.subr.mxu0 0.0
      %1203 = vmatpush1.xpose.msra.mxu0 0.0
      %1204 = vmatprep.subr.mxu0 0.0
      %1205 = vmatpush1.xpose.msra.mxu0 0.0
      %1206 = vmatprep.subr.mxu0 0.0
      %1207 = vmatpush1.xpose.msra.mxu0 0.0
      %1208 = vmatprep.subr.mxu0 0.0
      %1209 = vmatpush1.xpose.msra.mxu0 0.0
      %1210 = vmatprep.subr.mxu0 0.0
      %1211 = vmatpush1.xpose.msra.mxu0 0.0
      %1212 = vmatprep.subr.mxu0 0.0
      %1213 = vmatpush1.xpose.msra.mxu0 0.0
      %1214 = vmatprep.subr.mxu0 0.0
      %1215 = vmatpush1.xpose.msra.mxu0 0.0
      %1216 = vmatprep.subr.mxu0 0.0
      %1217 = vmatpush1.xpose.msra.mxu0 0.0
      %1218 = vmatprep.subr.mxu0 0.0
      %1219 = vmatpush1.xpose.msra.mxu0 0.0
      %1220 = vmatprep.subr.mxu0 0.0
      %1221 = vmatpush1.xpose.msra.mxu0 0.0
      %1222 = vmatprep.subr.mxu0 0.0
      %1223 = vmatpush1.xpose.msra.mxu0 0.0
      %1224 = vmatprep.subr.mxu0 0.0
      %1225 = vmatpush1.xpose.msra.mxu0 0.0
      %1226 = vmatprep.subr.mxu0 0.0
      %1227 = vmatpush1.xpose.msra.mxu0 0.0
      %1228 = vmatprep.subr.mxu0 0.0
      %1229 = vmatpush1.xpose.msra.mxu0 0.0
      %1230 = vmatprep.subr.mxu0 0.0
      %1231 = vmatpush1.xpose.msra.mxu0 0.0
      %1232 = vmatprep.subr.mxu0 0.0
      %1233 = vmatpush1.xpose.msra.mxu0 0.0
      %1234 = vmatprep.subr.mxu0 0.0
      %1235 = vmatpush1.xpose.msra.mxu0 0.0
      %1236 = vmatprep.subr.mxu0 0.0
      %1237 = vmatpush1.xpose.msra.mxu0 0.0
      %1238 = vmatprep.subr.mxu0 0.0
      %1239 = vmatpush1.xpose.msra.mxu0 0.0
      %1240 = vmatprep.subr.mxu0 0.0
      %1241 = vmatpush1.xpose.msra.mxu0 0.0
      %1242 = vmatprep.subr.mxu0 0.0
      %1243 = vmatpush1.xpose.msra.mxu0 0.0
      %1244 = vmatprep.subr.mxu0 0.0
      %1245 = vmatpush1.xpose.msra.mxu0 0.0
      %1246 = vmatprep.subr.mxu0 0.0
      %1247 = vmatpush1.xpose.msra.mxu0 0.0
      %1248 = vmatprep.subr.mxu0 0.0
      %1249 = vmatpush1.xpose.msra.mxu0 0.0
      %1250 = vmatprep.subr.mxu0 0.0
      %1251 = vmatpush1.xpose.msra.mxu0 0.0
      %1252 = vmatprep.subr.mxu0 0.0
      %1253 = vmatpush1.xpose.msra.mxu0 0.0
      %1254 = vmatprep.subr.mxu0 0.0
      %1255 = vmatpush1.xpose.msra.mxu0 0.0
      %1256 = vmatprep.mubr.f32.mxu0 0.0
      %1257 = vmatmul.mubr.f32.gmra.mrb[0].mxu0 %v1188
      %v1258 = vpop.f32.mrb[0].mxu0
      %v1259 = vadd.f32 0.0, %v1258
      %v1260 = vpop.f32.mrb[0].mxu0
      %1261 = vdwg.mxu0
      %v1262 = vmul.f32 %v1259, 0.17677669
      %v1263 = vadd.f32 %v1262, %v930
      %v1264 = vsel %vm932, %v1263, -inf
      %1265 = vmax.xlane.f32.xlu0 %v1264
      %v1266 = vpop.xlane.xlu0 %1265
      %v1267 = vsub.f32 %v1263, %v1266
      %v1268 = vmul.f32 %v1267, 1.442695
      %v1269 = vpow.pop %v1268
      %v1270 = vsel %vm932, %v1269, 0.0
      %1271 = vadd.xlane.f32.xlu0 %v1270
      %v1272 = vpop.xlane.xlu0 %1271
      %v1273 = vrcp.pop %v1272
      %v1274 = vmul.f32 %v1269, %v1273
      %1276 = vrot.lane.b32.xlu0 %v842, 96
      %v1277 = vpop.permute.xlu0 %1276
      %v1280 = vsel %vm932, %v1274, 0
      %1282 = vmatprep.subr.mxu0 0.0
      %1283 = vmatpush1.msra.mxu0 %v1277
      %1284 = vmatprep.subr.mxu0 0.0
      %1285 = vmatpush1.msra.mxu0 0.0
      %1286 = vmatprep.subr.mxu0 0.0
      %1287 = vmatpush1.msra.mxu0 0.0
      %1288 = vmatprep.subr.mxu0 0.0
      %1289 = vmatpush1.msra.mxu0 0.0
      %1290 = vmatprep.subr.mxu0 0.0
      %1291 = vmatpush1.msra.mxu0 0.0
      %1292 = vmatprep.subr.mxu0 0.0
      %1293 = vmatpush1.msra.mxu0 0.0
      %1294 = vmatprep.subr.mxu0 0.0
      %1295 = vmatpush1.msra.mxu0 0.0
      %1296 = vmatprep.subr.mxu0 0.0
      %1297 = vmatpush1.msra.mxu0 0.0
      %1298 = vmatprep.subr.mxu0 0.0
      %1299 = vmatpush1.msra.mxu0 0.0
      %1300 = vmatprep.subr.mxu0 0.0
      %1301 = vmatpush1.msra.mxu0 0.0
      %1302 = vmatprep.subr.mxu0 0.0
      %1303 = vmatpush1.msra.mxu0 0.0
      %1304 = vmatprep.subr.mxu0 0.0
      %1305 = vmatpush1.msra.mxu0 0.0
      %1306 = vmatprep.subr.mxu0 0.0
      %1307 = vmatpush1.msra.mxu0 0.0
      %1308 = vmatprep.subr.mxu0 0.0
      %1309 = vmatpush1.msra.mxu0 0.0
      %1310 = vmatprep.subr.mxu0 0.0
      %1311 = vmatpush1.msra.mxu0 0.0
      %1312 = vmatprep.subr.mxu0 0.0
      %1313 = vmatpush1.msra.mxu0 0.0
      %1314 = vmatprep.subr.mxu0 0.0
      %1315 = vmatpush1.msra.mxu0 0.0
      %1316 = vmatprep.subr.mxu0 0.0
      %1317 = vmatpush1.msra.mxu0 0.0
      %1318 = vmatprep.subr.mxu0 0.0
      %1319 = vmatpush1.msra.mxu0 0.0
      %1320 = vmatprep.subr.mxu0 0.0
      %1321 = vmatpush1.msra.mxu0 0.0
      %1322 = vmatprep.subr.mxu0 0.0
      %1323 = vmatpush1.msra.mxu0 0.0
      %1324 = vmatprep.subr.mxu0 0.0
      %1325 = vmatpush1.msra.mxu0 0.0
      %1326 = vmatprep.subr.mxu0 0.0
      %1327 = vmatpush1.msra.mxu0 0.0
      %1328 = vmatprep.subr.mxu0 0.0
      %1329 = vmatpush1.msra.mxu0 0.0
      %1330 = vmatprep.subr.mxu0 0.0
      %1331 = vmatpush1.msra.mxu0 0.0
      %1332 = vmatprep.subr.mxu0 0.0
      %1333 = vmatpush1.msra.mxu0 0.0
      %1334 = vmatprep.subr.mxu0 0.0
      %1335 = vmatpush1.msra.mxu0 0.0
      %1336 = vmatprep.subr.mxu0 0.0
      %1337 = vmatpush1.msra.mxu0 0.0
      %1338 = vmatprep.subr.mxu0 0.0
      %1339 = vmatpush1.msra.mxu0 0.0
      %1340 = vmatprep.subr.mxu0 0.0
      %1341 = vmatpush1.msra.mxu0 0.0
      %1342 = vmatprep.subr.mxu0 0.0
      %1343 = vmatpush1.msra.mxu0 0.0
      %1344 = vmatprep.subr.mxu0 0.0
      %1345 = vmatpush1.msra.mxu0 0.0
      %1346 = vmatprep.mubr.f32.mxu0 0.0
      %1347 = vmatmul.mubr.f32.gmra.mrb[0].mxu0 %v1280
      %v1348 = vpop.f32.mrb[0].mxu0
      %v1349 = vadd.f32 0.0, %v1348
      %v1350 = vpop.f32.mrb[0].mxu0
      %1351 = vdwg.mxu0
      %1352 = vrot.lane.b32.xlu0 %v844, 96
      %v1353 = vpop.permute.xlu0 %1352
      %1354 = vrot.lane.b32.xlu0 %v844, 32
      %v1355 = vpop.permute.xlu0 %1354
      %v1356 = vsel %vm851, %v1353, 0
      %v1358 = vsel %vm851, %v1355, 0
      %1360 = vmatprep.subr.mxu0 0.0
      %1361 = vmatpush1.xpose.msra.mxu0 %v1358
      %1362 = vmatprep.subr.mxu0 0.0
      %1363 = vmatpush1.xpose.msra.mxu0 0.0
      %1364 = vmatprep.subr.mxu0 0.0
      %1365 = vmatpush1.xpose.msra.mxu0 0.0
      %1366 = vmatprep.subr.mxu0 0.0
      %1367 = vmatpush1.xpose.msra.mxu0 0.0
      %1368 = vmatprep.subr.mxu0 0.0
      %1369 = vmatpush1.xpose.msra.mxu0 0.0
      %1370 = vmatprep.subr.mxu0 0.0
      %1371 = vmatpush1.xpose.msra.mxu0 0.0
      %1372 = vmatprep.subr.mxu0 0.0
      %1373 = vmatpush1.xpose.msra.mxu0 0.0
      %1374 = vmatprep.subr.mxu0 0.0
      %1375 = vmatpush1.xpose.msra.mxu0 0.0
      %1376 = vmatprep.subr.mxu0 0.0
      %1377 = vmatpush1.xpose.msra.mxu0 0.0
      %1378 = vmatprep.subr.mxu0 0.0
      %1379 = vmatpush1.xpose.msra.mxu0 0.0
      %1380 = vmatprep.subr.mxu0 0.0
      %1381 = vmatpush1.xpose.msra.mxu0 0.0
      %1382 = vmatprep.subr.mxu0 0.0
      %1383 = vmatpush1.xpose.msra.mxu0 0.0
      %1384 = vmatprep.subr.mxu0 0.0
      %1385 = vmatpush1.xpose.msra.mxu0 0.0
      %1386 = vmatprep.subr.mxu0 0.0
      %1387 = vmatpush1.xpose.msra.mxu0 0.0
      %1388 = vmatprep.subr.mxu0 0.0
      %1389 = vmatpush1.xpose.msra.mxu0 0.0
      %1390 = vmatprep.subr.mxu0 0.0
      %1391 = vmatpush1.xpose.msra.mxu0 0.0
      %1392 = vmatprep.subr.mxu0 0.0
      %1393 = vmatpush1.xpose.msra.mxu0 0.0
      %1394 = vmatprep.subr.mxu0 0.0
      %1395 = vmatpush1.xpose.msra.mxu0 0.0
      %1396 = vmatprep.subr.mxu0 0.0
      %1397 = vmatpush1.xpose.msra.mxu0 0.0
      %1398 = vmatprep.subr.mxu0 0.0
      %1399 = vmatpush1.xpose.msra.mxu0 0.0
      %1400 = vmatprep.subr.mxu0 0.0
      %1401 = vmatpush1.xpose.msra.mxu0 0.0
      %1402 = vmatprep.subr.mxu0 0.0
      %1403 = vmatpush1.xpose.msra.mxu0 0.0
      %1404 = vmatprep.subr.mxu0 0.0
      %1405 = vmatpush1.xpose.msra.mxu0 0.0
      %1406 = vmatprep.subr.mxu0 0.0
      %1407 = vmatpush1.xpose.msra.mxu0 0.0
      %1408 = vmatprep.subr.mxu0 0.0
      %1409 = vmatpush1.xpose.msra.mxu0 0.0
      %1410 = vmatprep.subr.mxu0 0.0
      %1411 = vmatpush1.xpose.msra.mxu0 0.0
      %1412 = vmatprep.subr.mxu0 0.0
      %1413 = vmatpush1.xpose.msra.mxu0 0.0
      %1414 = vmatprep.subr.mxu0 0.0
      %1415 = vmatpush1.xpose.msra.mxu0 0.0
      %1416 = vmatprep.subr.mxu0 0.0
      %1417 = vmatpush1.xpose.msra.mxu0 0.0
      %1418 = vmatprep.subr.mxu0 0.0
      %1419 = vmatpush1.xpose.msra.mxu0 0.0
      %1420 = vmatprep.subr.mxu0 0.0
      %1421 = vmatpush1.xpose.msra.mxu0 0.0
      %1422 = vmatprep.subr.mxu0 0.0
      %1423 = vmatpush1.xpose.msra.mxu0 0.0
      %1424 = vmatprep.mubr.f32.mxu0 0.0
      %1425 = vmatmul.mubr.f32.gmra.mrb[0].mxu0 %v1356
      %v1426 = vpop.f32.mrb[0].mxu0
      %v1427 = vadd.f32 0.0, %v1426
      %v1428 = vpop.f32.mrb[0].mxu0
      %1429 = vdwg.mxu0
      %v1430 = vmul.f32 %v1427, 0.17677669
      %v1431 = vadd.f32 %v1430, %v1098
      %v1432 = vsel %vm932, %v1431, -inf
      %1433 = vmax.xlane.f32.xlu0 %v1432
      %v1434 = vpop.xlane.xlu0 %1433
      %v1435 = vsub.f32 %v1431, %v1434
      %v1436 = vmul.f32 %v1435, 1.442695
      %v1437 = vpow.pop %v1436
      %v1438 = vsel %vm932, %v1437, 0.0
      %1439 = vadd.xlane.f32.xlu0 %v1438
      %v1440 = vpop.xlane.xlu0 %1439
      %v1441 = vrcp.pop %v1440
      %v1442 = vmul.f32 %v1437, %v1441
      %1444 = vrot.lane.b32.xlu0 %v846, 96
      %v1445 = vpop.permute.xlu0 %1444
      %v1448 = vsel %vm932, %v1442, 0
      %1450 = vmatprep.subr.mxu0 0.0
      %1451 = vmatpush1.msra.mxu0 %v1445
      %1452 = vmatprep.subr.mxu0 0.0
      %1453 = vmatpush1.msra.mxu0 0.0
      %1454 = vmatprep.subr.mxu0 0.0
      %1455 = vmatpush1.msra.mxu0 0.0
      %1456 = vmatprep.subr.mxu0 0.0
      %1457 = vmatpush1.msra.mxu0 0.0
      %1458 = vmatprep.subr.mxu0 0.0
      %1459 = vmatpush1.msra.mxu0 0.0
      %1460 = vmatprep.subr.mxu0 0.0
      %1461 = vmatpush1.msra.mxu0 0.0
      %1462 = vmatprep.subr.mxu0 0.0
      %1463 = vmatpush1.msra.mxu0 0.0
      %1464 = vmatprep.subr.mxu0 0.0
      %1465 = vmatpush1.msra.mxu0 0.0
      %1466 = vmatprep.subr.mxu0 0.0
      %1467 = vmatpush1.msra.mxu0 0.0
      %1468 = vmatprep.subr.mxu0 0.0
      %1469 = vmatpush1.msra.mxu0 0.0
      %1470 = vmatprep.subr.mxu0 0.0
      %1471 = vmatpush1.msra.mxu0 0.0
      %1472 = vmatprep.subr.mxu0 0.0
      %1473 = vmatpush1.msra.mxu0 0.0
      %1474 = vmatprep.subr.mxu0 0.0
      %1475 = vmatpush1.msra.mxu0 0.0
      %1476 = vmatprep.subr.mxu0 0.0
      %1477 = vmatpush1.msra.mxu0 0.0
      %1478 = vmatprep.subr.mxu0 0.0
      %1479 = vmatpush1.msra.mxu0 0.0
      %1480 = vmatprep.subr.mxu0 0.0
      %1481 = vmatpush1.msra.mxu0 0.0
      %1482 = vmatprep.subr.mxu0 0.0
      %1483 = vmatpush1.msra.mxu0 0.0
      %1484 = vmatprep.subr.mxu0 0.0
      %1485 = vmatpush1.msra.mxu0 0.0
      %1486 = vmatprep.subr.mxu0 0.0
      %1487 = vmatpush1.msra.mxu0 0.0
      %1488 = vmatprep.subr.mxu0 0.0
      %1489 = vmatpush1.msra.mxu0 0.0
      %1490 = vmatprep.subr.mxu0 0.0
      %1491 = vmatpush1.msra.mxu0 0.0
      %1492 = vmatprep.subr.mxu0 0.0
      %1493 = vmatpush1.msra.mxu0 0.0
      %1494 = vmatprep.subr.mxu0 0.0
      %1495 = vmatpush1.msra.mxu0 0.0
      %1496 = vmatprep.subr.mxu0 0.0
      %1497 = vmatpush1.msra.mxu0 0.0
      %1498 = vmatprep.subr.mxu0 0.0
      %1499 = vmatpush1.msra.mxu0 0.0
      %1500 = vmatprep.subr.mxu0 0.0
      %1501 = vmatpush1.msra.mxu0 0.0
      %1502 = vmatprep.subr.mxu0 0.0
      %1503 = vmatpush1.msra.mxu0 0.0
      %1504 = vmatprep.subr.mxu0 0.0
      %1505 = vmatpush1.msra.mxu0 0.0
      %1506 = vmatprep.subr.mxu0 0.0
      %1507 = vmatpush1.msra.mxu0 0.0
      %1508 = vmatprep.subr.mxu0 0.0
      %1509 = vmatpush1.msra.mxu0 0.0
      %1510 = vmatprep.subr.mxu0 0.0
      %1511 = vmatpush1.msra.mxu0 0.0
      %1512 = vmatprep.subr.mxu0 0.0
      %1513 = vmatpush1.msra.mxu0 0.0
      %1514 = vmatprep.mubr.f32.mxu0 0.0
      %1515 = vmatmul.mubr.f32.gmra.mrb[0].mxu0 %v1448
      %v1516 = vpop.f32.mrb[0].mxu0
      %v1517 = vadd.f32 0.0, %v1516
      %v1518 = vpop.f32.mrb[0].mxu0
      %1519 = vdwg.mxu0
      %1522 = vrot.lane.b32.xlu0 %v1349, 32
      %v1523 = vpop.permute.xlu0 %1522
      %1524 = vrot.lane.b32.xlu0 %v1517, 32
      %v1525 = vpop.permute.xlu0 %1524
      %v1528 = vsel %vm851, %v1014, %v1523
      %v1529 = vsel %vm851, %v1181, %v1525
      %v1530 = vld [vmem:[%s650] sm:$0xf]
      %v1531 = vld [vmem:[%s650 + $0x4] sm:$0xf]
      %v1532 = vld [vmem:[%s650 + $0x8] sm:$0xf]
      %v1533 = vld [vmem:[%s650 + $0xc] sm:$0xf]
      %v1534 = vld [vmem:[%s650 + $0x10] sm:$0xf]
      %v1535 = vld [vmem:[%s650 + $0x14] sm:$0xf]
      %v1536 = vld [vmem:[%s650 + $0x18] sm:$0xf]
      %v1537 = vld [vmem:[%s650 + $0x1c] sm:$0xf]
      %v1538 = vpack.c.bf16 %v1529, %v1528
      %v1539 = vld [vmem:[%s653] sm:$0x1]
      %v1541 = vlaneseq
      %v1542 = vshrl.u32 %v1541, 7
      %v1543 = vsub.s32 0, %v1542
      %v1544 = vrot.slane %v1539, %v1543
      %v1554 = vunpack.c.l.b16 %v1530
      %v1555 = vunpack.c.l.b16 %v1531
      %v1556 = vunpack.c.l.b16 %v1532
      %v1557 = vunpack.c.l.b16 %v1533
      %v1558 = vunpack.c.l.b16 %v1534
      %v1559 = vunpack.c.l.b16 %v1535
      %v1560 = vunpack.c.l.b16 %v1536
      %v1561 = vunpack.c.l.b16 %v1537
      %v1562 = vpack.c.b16 %v1555, %v1554
      %v1563 = vpack.c.b16 %v1557, %v1556
      %v1564 = vpack.c.b16 %v1559, %v1558
      %v1565 = vpack.c.b16 %v1561, %v1560
      %v1571 = vsel %vm697, %v1538, 0
      %1573 = vmatprep.subr.bf16.mxu0 0
      %1574 = vmatpush1.bf16.msra.mxu0 %v1562
      %1575 = vmatprep.subr.bf16.mxu0 0
      %1576 = vmatpush1.bf16.msra.mxu0 %v1563
      %1577 = vmatprep.subr.bf16.mxu0 0
      %1578 = vmatpush1.bf16.msra.mxu0 %v1564
      %1579 = vmatprep.subr.bf16.mxu0 0
      %1580 = vmatpush1.bf16.msra.mxu0 %v1565
      %1581 = vmatprep.subr.bf16.mxu0 0
      %1582 = vmatpush1.bf16.msra.mxu0 0
      %1583 = vmatprep.subr.bf16.mxu0 0
      %1584 = vmatpush1.bf16.msra.mxu0 0
      %1585 = vmatprep.subr.bf16.mxu0 0
      %1586 = vmatpush1.bf16.msra.mxu0 0
      %1587 = vmatprep.subr.bf16.mxu0 0
      %1588 = vmatpush1.bf16.msra.mxu0 0
      %1589 = vmatprep.subr.bf16.mxu0 0
      %1590 = vmatpush1.bf16.msra.mxu0 0
      %1591 = vmatprep.subr.bf16.mxu0 0
      %1592 = vmatpush1.bf16.msra.mxu0 0
      %1593 = vmatprep.subr.bf16.mxu0 0
      %1594 = vmatpush1.bf16.msra.mxu0 0
      %1595 = vmatprep.subr.bf16.mxu0 0
      %1596 = vmatpush1.bf16.msra.mxu0 0
      %1597 = vmatprep.subr.bf16.mxu0 0
      %1598 = vmatpush1.bf16.msra.mxu0 0
      %1599 = vmatprep.subr.bf16.mxu0 0
      %1600 = vmatpush1.bf16.msra.mxu0 0
      %1601 = vmatprep.subr.bf16.mxu0 0
      %1602 = vmatpush1.bf16.msra.mxu0 0
      %1603 = vmatprep.subr.bf16.mxu0 0
      %1604 = vmatpush1.bf16.msra.mxu0 0
      %1605 = vmatprep.mubr.bf16.mxu0 0
      %1606 = vmatmul.mubr.bf16.gmra.mrb[0].mxu0 %v1571
      %v1607 = vpop.f32.mrb[0].mxu0
      %v1608 = vadd.f32 %v1544, %v1607
      %v1609 = vpop.f32.mrb[0].mxu0
      %v1610 = vpop.f32.mrb[0].mxu0
      %v1611 = vadd.f32 %v1544, %v1610
      %v1612 = vpop.f32.mrb[0].mxu0
      %1613 = vdwg.mxu0
      %v1614 = vadd.f32 %v692, %v1608
      %v1615 = vadd.f32 %v693, %v1611
      %v1616 = vld [vmem:[%s678] sm:$0x1]
      %v1617 = vld [vmem:[%s681] sm:$0x1]
      %v1618 = vsel %vm697, %v1614, 0.0
      %1619 = vadd.xlane.f32.xlu0 %v1618
      %v1620 = vpop.xlane.xlu0 %1619
      %v1621 = vsel %vm697, %v1615, 0.0
      %1622 = vadd.xlane.f32.xlu0 %v1621
      %v1623 = vpop.xlane.xlu0 %1622
      %v1624 = vmul.f32 %v1620, %v704
      %v1625 = vmul.f32 %v1623, %v704
      %v1626 = vsub.f32 %v1614, %v1624
      %v1627 = vsub.f32 %v1615, %v1625
      %v1628 = vmul.f32 %v1626, %v1626
      %v1629 = vmul.f32 %v1627, %v1627
      %v1630 = vsel %vm697, %v1628, 0.0
      %1631 = vadd.xlane.f32.xlu0 %v1630
      %v1632 = vpop.xlane.xlu0 %1631
      %v1633 = vsel %vm697, %v1629, 0.0
      %1634 = vadd.xlane.f32.xlu0 %v1633
      %v1635 = vpop.xlane.xlu0 %1634
      %v1636 = vmul.f32 %v1632, %v704
      %v1637 = vmul.f32 %v1635, %v704
      %v1638 = vadd.f32 %v1636, 1e-12
      %v1639 = vadd.f32 %v1637, 1e-12
      %v1640 = vrsqrt.pop %v1638
      %v1641 = vrsqrt.pop %v1639
      %v1642 = vmul.f32 %v1626, %v1640
      %v1643 = vmul.f32 %v1627, %v1641
      %v1645 = vlaneseq
      %v1646 = vshrl.u32 %v1645, 7
      %v1647 = vsub.s32 0, %v1646
      %v1648 = vrot.slane %v1616, %v1647
      %v1650 = vmul.f32 %v1642, %v1648
      %v1651 = vmul.f32 %v1643, %v1648
      %v1653 = vlaneseq
      %v1654 = vshrl.u32 %v1653, 7
      %v1655 = vsub.s32 0, %v1654
      %v1656 = vrot.slane %v1617, %v1655
      %v1658 = vadd.f32 %v1650, %v1656
      %v1659 = vadd.f32 %v1651, %v1656
      %v1660 = vld [vmem:[%s664] sm:$0xf]
      %v1661 = vld [vmem:[%s664 + $0x4] sm:$0xf]
      %v1662 = vld [vmem:[%s664 + $0x8] sm:$0xf]
      %v1663 = vld [vmem:[%s664 + $0xc] sm:$0xf]
      %v1664 = vld [vmem:[%s664 + $0x10] sm:$0xf]
      %v1665 = vld [vmem:[%s664 + $0x14] sm:$0xf]
      %v1666 = vld [vmem:[%s664 + $0x18] sm:$0xf]
      %v1667 = vld [vmem:[%s664 + $0x1c] sm:$0xf]
      %v1668 = vpack.c.bf16 %v1659, %v1658
      %v1669 = vld [vmem:[%s667] sm:$0x1]
      %v1671 = vlaneseq
      %v1672 = vshrl.u32 %v1671, 7
      %v1673 = vsub.s32 0, %v1672
      %v1674 = vrot.slane %v1669, %v1673
      %v1684 = vunpack.c.l.b16 %v1660
      %v1685 = vunpack.c.l.b16 %v1661
      %v1686 = vunpack.c.l.b16 %v1662
      %v1687 = vunpack.c.l.b16 %v1663
      %v1688 = vunpack.c.l.b16 %v1664
      %v1689 = vunpack.c.l.b16 %v1665
      %v1690 = vunpack.c.l.b16 %v1666
      %v1691 = vunpack.c.l.b16 %v1667
      %v1692 = vpack.c.b16 %v1685, %v1684
      %v1693 = vpack.c.b16 %v1687, %v1686
      %v1694 = vpack.c.b16 %v1689, %v1688
      %v1695 = vpack.c.b16 %v1691, %v1690
      %v1701 = vsel %vm697, %v1668, 0
      %1703 = vmatprep.subr.bf16.mxu0 0
      %1704 = vmatpush1.bf16.msra.mxu0 %v1692
      %1705 = vmatprep.subr.bf16.mxu0 0
      %1706 = vmatpush1.bf16.msra.mxu0 %v1693
      %1707 = vmatprep.subr.bf16.mxu0 0
      %1708 = vmatpush1.bf16.msra.mxu0 %v1694
      %1709 = vmatprep.subr.bf16.mxu0 0
      %1710 = vmatpush1.bf16.msra.mxu0 %v1695
      %1711 = vmatprep.subr.bf16.mxu0 0
      %1712 = vmatpush1.bf16.msra.mxu0 0
      %1713 = vmatprep.subr.bf16.mxu0 0
      %1714 = vmatpush1.bf16.msra.mxu0 0
      %1715 = vmatprep.subr.bf16.mxu0 0
      %1716 = vmatpush1.bf16.msra.mxu0 0
      %1717 = vmatprep.subr.bf16.mxu0 0
      %1718 = vmatpush1.bf16.msra.mxu0 0
      %1719 = vmatprep.subr.bf16.mxu0 0
      %1720 = vmatpush1.bf16.msra.mxu0 0
      %1721 = vmatprep.subr.bf16.mxu0 0
      %1722 = vmatpush1.bf16.msra.mxu0 0
      %1723 = vmatprep.subr.bf16.mxu0 0
      %1724 = vmatpush1.bf16.msra.mxu0 0
      %1725 = vmatprep.subr.bf16.mxu0 0
      %1726 = vmatpush1.bf16.msra.mxu0 0
      %1727 = vmatprep.subr.bf16.mxu0 0
      %1728 = vmatpush1.bf16.msra.mxu0 0
      %1729 = vmatprep.subr.bf16.mxu0 0
      %1730 = vmatpush1.bf16.msra.mxu0 0
      %1731 = vmatprep.subr.bf16.mxu0 0
      %1732 = vmatpush1.bf16.msra.mxu0 0
      %1733 = vmatprep.subr.bf16.mxu0 0
      %1734 = vmatpush1.bf16.msra.mxu0 0
      %1735 = vmatprep.mubr.bf16.mxu0 0
      %1736 = vmatmul.mubr.bf16.gmra.mrb[0].mxu0 %v1701
      %v1737 = vpop.f32.mrb[0].mxu0
      %v1738 = vadd.f32 %v1674, %v1737
      %v1739 = vpop.f32.mrb[0].mxu0
      %v1740 = vpop.f32.mrb[0].mxu0
      %v1741 = vadd.f32 %v1674, %v1740
      %v1742 = vpop.f32.mrb[0].mxu0
      %1743 = vdwg.mxu0
      %v1744 = vmul.f32 %v1738, %v1738
      %v1745 = vmul.f32 %v1741, %v1741
      %v1746 = vmul.f32 %v1738, %v1744
      %v1747 = vmul.f32 %v1741, %v1745
      %v1748 = vmul.f32 %v1746, 0.044715
      %v1749 = vmul.f32 %v1747, 0.044715
      %v1750 = vadd.f32 %v1738, %v1748
      %v1751 = vadd.f32 %v1741, %v1749
      %v1752 = vmul.f32 %v1750, 0.7978846
      %v1753 = vmul.f32 %v1751, 0.7978846
      %v1754 = vtanh.pop %v1752
      %v1755 = vtanh.pop %v1753
      %v1756 = vadd.f32 %v1754, 1.0
      %v1757 = vadd.f32 %v1755, 1.0
      %v1758 = vmul.f32 %v1756, 0.5
      %v1759 = vmul.f32 %v1757, 0.5
      %v1760 = vmul.f32 %v1738, %v1758
      %v1761 = vmul.f32 %v1741, %v1759
      %v1762 = vld [vmem:[%s672] sm:$0xf]
      %v1763 = vld [vmem:[%s672 + $0x4] sm:$0xf]
      %v1764 = vld [vmem:[%s672 + $0x8] sm:$0xf]
      %v1765 = vld [vmem:[%s672 + $0xc] sm:$0xf]
      %v1766 = vld [vmem:[%s672 + $0x10] sm:$0xf]
      %v1767 = vld [vmem:[%s672 + $0x14] sm:$0xf]
      %v1768 = vld [vmem:[%s672 + $0x18] sm:$0xf]
      %v1769 = vld [vmem:[%s672 + $0x1c] sm:$0xf]
      %v1770 = vld [vmem:[%s672 + $0x20] sm:$0xf]
      %v1771 = vld [vmem:[%s672 + $0x24] sm:$0xf]
      %v1772 = vld [vmem:[%s672 + $0x28] sm:$0xf]
      %v1773 = vld [vmem:[%s672 + $0x2c] sm:$0xf]
      %v1774 = vld [vmem:[%s672 + $0x30] sm:$0xf]
      %v1775 = vld [vmem:[%s672 + $0x34] sm:$0xf]
      %v1776 = vld [vmem:[%s672 + $0x38] sm:$0xf]
      %v1777 = vld [vmem:[%s672 + $0x3c] sm:$0xf]
      %v1778 = vpack.c.bf16 %v1761, %v1760
      %v1779 = vld [vmem:[%s675] sm:$0x1]
      %v1781 = vlaneseq
      %v1782 = vshrl.u32 %v1781, 7
      %v1783 = vsub.s32 0, %v1782
      %v1784 = vrot.slane %v1779, %v1783
      %v1802 = vunpack.c.l.b16 %v1762
      %v1803 = vunpack.c.l.b16 %v1763
      %v1804 = vunpack.c.l.b16 %v1764
      %v1805 = vunpack.c.l.b16 %v1765
      %v1806 = vunpack.c.l.b16 %v1766
      %v1807 = vunpack.c.l.b16 %v1767
      %v1808 = vunpack.c.l.b16 %v1768
      %v1809 = vunpack.c.l.b16 %v1769
      %v1810 = vunpack.c.l.b16 %v1770
      %v1811 = vunpack.c.l.b16 %v1771
      %v1812 = vunpack.c.l.b16 %v1772
      %v1813 = vunpack.c.l.b16 %v1773
      %v1814 = vunpack.c.l.b16 %v1774
      %v1815 = vunpack.c.l.b16 %v1775
      %v1816 = vunpack.c.l.b16 %v1776
      %v1817 = vunpack.c.l.b16 %v1777
      %v1818 = vpack.c.b16 %v1803, %v1802
      %v1819 = vpack.c.b16 %v1805, %v1804
      %v1820 = vpack.c.b16 %v1807, %v1806
      %v1821 = vpack.c.b16 %v1809, %v1808
      %v1822 = vpack.c.b16 %v1811, %v1810
      %v1823 = vpack.c.b16 %v1813, %v1812
      %v1824 = vpack.c.b16 %v1815, %v1814
      %v1825 = vpack.c.b16 %v1817, %v1816
      %1834 = vmatprep.subr.bf16.mxu0 0
      %1835 = vmatpush1.bf16.msra.mxu0 %v1818
      %1836 = vmatprep.subr.bf16.mxu0 0
      %1837 = vmatpush1.bf16.msra.mxu0 %v1819
      %1838 = vmatprep.subr.bf16.mxu0 0
      %1839 = vmatpush1.bf16.msra.mxu0 %v1820
      %1840 = vmatprep.subr.bf16.mxu0 0
      %1841 = vmatpush1.bf16.msra.mxu0 %v1821
      %1842 = vmatprep.subr.bf16.mxu0 0
      %1843 = vmatpush1.bf16.msra.mxu0 %v1822
      %1844 = vmatprep.subr.bf16.mxu0 0
      %1845 = vmatpush1.bf16.msra.mxu0 %v1823
      %1846 = vmatprep.subr.bf16.mxu0 0
      %1847 = vmatpush1.bf16.msra.mxu0 %v1824
      %1848 = vmatprep.subr.bf16.mxu0 0
      %1849 = vmatpush1.bf16.msra.mxu0 %v1825
      %1850 = vmatprep.subr.bf16.mxu0 0
      %1851 = vmatpush1.bf16.msra.mxu0 0
      %1852 = vmatprep.subr.bf16.mxu0 0
      %1853 = vmatpush1.bf16.msra.mxu0 0
      %1854 = vmatprep.subr.bf16.mxu0 0
      %1855 = vmatpush1.bf16.msra.mxu0 0
      %1856 = vmatprep.subr.bf16.mxu0 0
      %1857 = vmatpush1.bf16.msra.mxu0 0
      %1858 = vmatprep.subr.bf16.mxu0 0
      %1859 = vmatpush1.bf16.msra.mxu0 0
      %1860 = vmatprep.subr.bf16.mxu0 0
      %1861 = vmatpush1.bf16.msra.mxu0 0
      %1862 = vmatprep.subr.bf16.mxu0 0
      %1863 = vmatpush1.bf16.msra.mxu0 0
      %1864 = vmatprep.subr.bf16.mxu0 0
      %1865 = vmatpush1.bf16.msra.mxu0 0
      %1866 = vmatprep.mubr.bf16.mxu0 0
      %1867 = vmatmul.mubr.bf16.gmra.mrb[0].mxu0 %v1778
      %v1868 = vpop.f32.mrb[0].mxu0
      %v1869 = vadd.f32 %v1784, %v1868
      %v1870 = vpop.f32.mrb[0].mxu0
      %v1871 = vpop.f32.mrb[0].mxu0
      %v1872 = vadd.f32 %v1784, %v1871
      %v1873 = vpop.f32.mrb[0].mxu0
      %1874 = vdwg.mxu0
      %v1875 = vadd.f32 %v1614, %v1869
      %v1876 = vadd.f32 %v1615, %v1872
      %1877 = vst.msk [vmem:[%s16] sm:$0xff] %vm697, %v1875
      %1878 = vst.msk [vmem:[%s16 + $0x8] sm:$0xff] %vm697, %v1876
      // Predicated region
      $region89: #{bert_vit_forward.7} parent=83 // pred_check
        %p1879 = pneg %p436
      $region90: #{bert_vit_forward.7} parent=83 // pred_check_branch
        %1881 = sbr.rel (%p1879) target = $region92
      $region91: #{bert_vit_forward.7} parent=83 // pred_region
        _
      $region92: #{bert_vit_forward.7} parent=83 // pred_fallthru
        _
      // Predicated region
      $region93: #{bert_vit_forward.7} parent=83 // pred_check
        %p1882 = pneg %p436
      $region94: #{bert_vit_forward.7} parent=83 // pred_check_branch
        %1884 = sbr.rel (%p1882) target = $region96
      $region95: #{bert_vit_forward.7} parent=83 // pred_region
        _
      $region96: #{bert_vit_forward.7} parent=83 // pred_fallthru
        _
    $region84: #{bert_vit_forward.7} parent=5 // pred_fallthru
      _
    %p1885 = scmp.le.s32.totalorder 2, %s22
    // Predicated region
    $region97: #{bert_vit_forward.7} parent=5 // pred_check
      %p1886 = pneg %p1885
    $region98: #{bert_vit_forward.7} parent=5 // pred_check_branch
      %1888 = sbr.rel (%p1886) target = $region100
    $region99: #{bert_vit_forward.7} parent=5 // pred_region
      %s1889 = ssub.s32 %s22, 2
    $region100: #{bert_vit_forward.7} parent=5 // pred_fallthru
      _
  $region6: #{bert_vit_forward.7} parent=0 // loop_footer
    %s26 = sadd.s32 1, %s22
  $region7: #{bert_vit_forward.7} parent=0 // loop_footer_branch
    %21 = sbr.rel target = $region3
  $region8: #{bert_vit_forward.7} parent=0 // loop_exit
    _

// kernel: bert_vit_forward.5
$region0: #{bert_vit_forward.5}
  #allocation0 [shape = 'u32[]', space=smem, size = 0x4, offset = 0x4, fixed_abs, tag = 'smem constant byte address 0x4 - core index']
  #allocation1 [shape = 'u32[144,128]{1,0:T(1,128)}', space=vmem, size = 0x12000, scoped, tag = 'internal scratch']
  %s0 = inlined_call_operand.vmem [shape: f32[2,8], index: 0, kind: input, shape index: {}]
  %s1 = inlined_call_operand.vmem [shape: f32[16,64], index: 1, kind: input, shape index: {}]
  %s2 = inlined_call_operand.vmem [shape: f32[1,64], index: 2, kind: input, shape index: {}]
  %s3 = inlined_call_operand.vmem [shape: f32[1,64], index: 3, kind: input, shape index: {}]
  %s4 = inlined_call_operand.vmem [shape: bf16[2,64,192], index: 4, kind: input, shape index: {}]
  %s5 = inlined_call_operand.vmem [shape: f32[2,1,192], index: 5, kind: input, shape index: {}]
  %s6 = inlined_call_operand.vmem [shape: bf16[2,64,64], index: 6, kind: input, shape index: {}]
  %s7 = inlined_call_operand.vmem [shape: f32[2,1,64], index: 7, kind: input, shape index: {}]
  %s8 = inlined_call_operand.vmem [shape: f32[2,1,64], index: 8, kind: input, shape index: {}]
  %s9 = inlined_call_operand.vmem [shape: f32[2,1,64], index: 9, kind: input, shape index: {}]
  %s10 = inlined_call_operand.vmem [shape: bf16[2,64,128], index: 10, kind: input, shape index: {}]
  %s11 = inlined_call_operand.vmem [shape: f32[2,1,128], index: 11, kind: input, shape index: {}]
  %s12 = inlined_call_operand.vmem [shape: bf16[2,128,64], index: 12, kind: input, shape index: {}]
  %s13 = inlined_call_operand.vmem [shape: f32[2,1,64], index: 13, kind: input, shape index: {}]
  %s14 = inlined_call_operand.vmem [shape: f32[2,1,64], index: 14, kind: input, shape index: {}]
  %s15 = inlined_call_operand.vmem [shape: f32[2,1,64], index: 15, kind: input, shape index: {}]
  %s16 = inlined_call_operand.vmem [shape: f32[16,64], index: 16, kind: output, shape index: {}]
  %s17 = sld [smem:[#allocation0]]
  $region101: #{bert_vit_forward.5} parent=0
    _
  %s19 = ssub.s32 1, %s17
  %s20 = scalar_select 0, %s19, %s17
  loop: start=0, step=1, limit=4
  $region2: #{bert_vit_forward.5} parent=0 // loop_pre_header
    _
  $region3: #{bert_vit_forward.5} parent=0 // loop_header
    %s22 = sphi 0, %s26
    %p23 = scmp.ge.s32.totalorder %s22, 4
    %s30 = sphi 0, %s30
    %s32 = sphi 0, %s30
    %s33 = sphi 0, %s32
    %s47 = sphi 0, %s33
    %s51 = sphi 0, %s51
    %s53 = sphi 0, %s51
    %s54 = sphi 0, %s53
    %s68 = sphi 0, %s54
    %s72 = sphi 0, %s72
    %s74 = sphi 0, %s72
    %s75 = sphi 0, %s74
    %s89 = sphi 0, %s75
    %s93 = sphi 0, %s93
    %s95 = sphi 0, %s93
    %s96 = sphi 0, %s95
    %s110 = sphi 0, %s96
    %s116 = sphi 0, %s118
    %s119 = sphi 0, %s116
    %s120 = sphi 0, %s119
    %s136 = sphi 0, %s120
    %s142 = sphi 0, %s144
    %s145 = sphi 0, %s142
    %s146 = sphi 0, %s145
    %s162 = sphi 0, %s146
    %s168 = sphi 0, %s170
    %s171 = sphi 0, %s168
    %s172 = sphi 0, %s171
    %s188 = sphi 0, %s172
    %s194 = sphi 0, %s196
    %s197 = sphi 0, %s194
    %s198 = sphi 0, %s197
    %s214 = sphi 0, %s198
    %s220 = sphi 0, %s222
    %s223 = sphi 0, %s220
    %s224 = sphi 0, %s223
    %s240 = sphi 0, %s224
    %s246 = sphi 0, %s248
    %s249 = sphi 0, %s246
    %s250 = sphi 0, %s249
    %s266 = sphi 0, %s250
    %s272 = sphi 0, %s274
    %s275 = sphi 0, %s272
    %s276 = sphi 0, %s275
    %s292 = sphi 0, %s276
    %s298 = sphi 0, %s300
    %s301 = sphi 0, %s298
    %s302 = sphi 0, %s301
    %s318 = sphi 0, %s302
    %s324 = sphi 0, %s326
    %s327 = sphi 0, %s324
    %s328 = sphi 0, %s327
    %s344 = sphi 0, %s328
    %s350 = sphi 0, %s352
    %s353 = sphi 0, %s350
    %s354 = sphi 0, %s353
    %s370 = sphi 0, %s354
    %s376 = sphi 0, %s378
    %s379 = sphi 0, %s376
    %s380 = sphi 0, %s379
    %s396 = sphi 0, %s380
    %s402 = sphi 0, %s404
    %s405 = sphi 0, %s402
    %s406 = sphi 0, %s405
    %s422 = sphi 0, %s406
    %s426 = sphi 0, %s426
    %s428 = sphi 0, %s426
    %s429 = sphi 0, %s428
    %s443 = sphi 0, %s429
  $region4: #{bert_vit_forward.5} parent=0 // loop_header_branch
    %25 = sbr.rel (%p23) target = $region8
  $region5: #{bert_vit_forward.5} parent=0 // loop_body
    %s27 = ssub.s32 %s22, 1
    %s28 = ssub.s32 %s22, 2
    %s29 = sadd.s32 %s22, 1
    %s31 = sadd.s32 %s30, 1
    %p34 = scmp.eq.s32.totalorder %s22, 1
    %p35 = scmp.ne.s32.totalorder %s30, %s32
    %p36 = scmp.eq.s32.totalorder %s22, 0
    %p37 = por %p35, %p36
    %p38 = scmp.ne.s32.totalorder %s30, %s32
    %p39 = scmp.eq.s32.totalorder %s27, 1
    %p40 = por %p38, %p39
    %p41 = scmp.ne.s32.totalorder %s32, %s33
    %p42 = scmp.eq.s32.totalorder %s27, 0
    %p43 = por %p41, %p42
    %p44 = scmp.ne.s32.totalorder %s32, %s33
    %p45 = scmp.eq.s32.totalorder %s28, 1
    %p46 = por %p44, %p45
    %p48 = scmp.ne.s32.totalorder %s33, %s47
    %p49 = scmp.eq.s32.totalorder %s28, 0
    %p50 = por %p48, %p49
    %s52 = sadd.s32 %s51, 1
    %p55 = scmp.eq.s32.totalorder %s22, 1
    %p56 = scmp.ne.s32.totalorder %s51, %s53
    %p57 = scmp.eq.s32.totalorder %s22, 0
    %p58 = por %p56, %p57
    %p59 = scmp.ne.s32.totalorder %s51, %s53
    %p60 = scmp.eq.s32.totalorder %s27, 1
    %p61 = por %p59, %p60
    %p62 = scmp.ne.s32.totalorder %s53, %s54
    %p63 = scmp.eq.s32.totalorder %s27, 0
    %p64 = por %p62, %p63
    %p65 = scmp.ne.s32.totalorder %s53, %s54
    %p66 = scmp.eq.s32.totalorder %s28, 1
    %p67 = por %p65, %p66
    %p69 = scmp.ne.s32.totalorder %s54, %s68
    %p70 = scmp.eq.s32.totalorder %s28, 0
    %p71 = por %p69, %p70
    %s73 = sadd.s32 %s72, 1
    %p76 = scmp.eq.s32.totalorder %s22, 1
    %p77 = scmp.ne.s32.totalorder %s72, %s74
    %p78 = scmp.eq.s32.totalorder %s22, 0
    %p79 = por %p77, %p78
    %p80 = scmp.ne.s32.totalorder %s72, %s74
    %p81 = scmp.eq.s32.totalorder %s27, 1
    %p82 = por %p80, %p81
    %p83 = scmp.ne.s32.totalorder %s74, %s75
    %p84 = scmp.eq.s32.totalorder %s27, 0
    %p85 = por %p83, %p84
    %p86 = scmp.ne.s32.totalorder %s74, %s75
    %p87 = scmp.eq.s32.totalorder %s28, 1
    %p88 = por %p86, %p87
    %p90 = scmp.ne.s32.totalorder %s75, %s89
    %p91 = scmp.eq.s32.totalorder %s28, 0
    %p92 = por %p90, %p91
    %s94 = sadd.s32 %s93, 1
    %p97 = scmp.eq.s32.totalorder %s22, 1
    %p98 = scmp.ne.s32.totalorder %s93, %s95
    %p99 = scmp.eq.s32.totalorder %s22, 0
    %p100 = por %p98, %p99
    %p101 = scmp.ne.s32.totalorder %s93, %s95
    %p102 = scmp.eq.s32.totalorder %s27, 1
    %p103 = por %p101, %p102
    %p104 = scmp.ne.s32.totalorder %s95, %s96
    %p105 = scmp.eq.s32.totalorder %s27, 0
    %p106 = por %p104, %p105
    %p107 = scmp.ne.s32.totalorder %s95, %s96
    %p108 = scmp.eq.s32.totalorder %s28, 1
    %p109 = por %p107, %p108
    %p111 = scmp.ne.s32.totalorder %s96, %s110
    %p112 = scmp.eq.s32.totalorder %s28, 0
    %p113 = por %p111, %p112
    %s114 = ssub.s32 %s22, %s29
    %p115 = scmp.eq.s32.totalorder %s114, 0
    %s117 = sadd.s32 %s116, 1
    %s118 = scalar_select %p115, %s116, %s117
    %p121 = pneg %p115
    %p122 = scmp.eq.s32.totalorder %s22, 1
    %p123 = por %p121, %p122
    %p124 = scmp.ne.s32.totalorder %s116, %s119
    %p125 = scmp.eq.s32.totalorder %s22, 0
    %p126 = por %p124, %p125
    %p127 = scmp.ne.s32.totalorder %s116, %s119
    %p128 = scmp.eq.s32.totalorder %s27, 1
    %p129 = por %p127, %p128
    %p130 = scmp.ne.s32.totalorder %s119, %s120
    %p131 = scmp.eq.s32.totalorder %s27, 0
    %p132 = por %p130, %p131
    %p133 = scmp.ne.s32.totalorder %s119, %s120
    %p134 = scmp.eq.s32.totalorder %s28, 1
    %p135 = por %p133, %p134
    %p137 = scmp.ne.s32.totalorder %s120, %s136
    %p138 = scmp.eq.s32.totalorder %s28, 0
    %p139 = por %p137, %p138
    %s140 = ssub.s32 %s22, %s29
    %p141 = scmp.eq.s32.totalorder %s140, 0
    %s143 = sadd.s32 %s142, 1
    %s144 = scalar_select %p141, %s142, %s143
    %p147 = pneg %p141
    %p148 = scmp.eq.s32.totalorder %s22, 1
    %p149 = por %p147, %p148
    %p150 = scmp.ne.s32.totalorder %s142, %s145
    %p151 = scmp.eq.s32.totalorder %s22, 0
    %p152 = por %p150, %p151
    %p153 = scmp.ne.s32.totalorder %s142, %s145
    %p154 = scmp.eq.s32.totalorder %s27, 1
    %p155 = por %p153, %p154
    %p156 = scmp.ne.s32.totalorder %s145, %s146
    %p157 = scmp.eq.s32.totalorder %s27, 0
    %p158 = por %p156, %p157
    %p159 = scmp.ne.s32.totalorder %s145, %s146
    %p160 = scmp.eq.s32.totalorder %s28, 1
    %p161 = por %p159, %p160
    %p163 = scmp.ne.s32.totalorder %s146, %s162
    %p164 = scmp.eq.s32.totalorder %s28, 0
    %p165 = por %p163, %p164
    %s166 = ssub.s32 %s22, %s29
    %p167 = scmp.eq.s32.totalorder %s166, 0
    %s169 = sadd.s32 %s168, 1
    %s170 = scalar_select %p167, %s168, %s169
    %p173 = pneg %p167
    %p174 = scmp.eq.s32.totalorder %s22, 1
    %p175 = por %p173, %p174
    %p176 = scmp.ne.s32.totalorder %s168, %s171
    %p177 = scmp.eq.s32.totalorder %s22, 0
    %p178 = por %p176, %p177
    %p179 = scmp.ne.s32.totalorder %s168, %s171
    %p180 = scmp.eq.s32.totalorder %s27, 1
    %p181 = por %p179, %p180
    %p182 = scmp.ne.s32.totalorder %s171, %s172
    %p183 = scmp.eq.s32.totalorder %s27, 0
    %p184 = por %p182, %p183
    %p185 = scmp.ne.s32.totalorder %s171, %s172
    %p186 = scmp.eq.s32.totalorder %s28, 1
    %p187 = por %p185, %p186
    %p189 = scmp.ne.s32.totalorder %s172, %s188
    %p190 = scmp.eq.s32.totalorder %s28, 0
    %p191 = por %p189, %p190
    %s192 = ssub.s32 %s22, %s29
    %p193 = scmp.eq.s32.totalorder %s192, 0
    %s195 = sadd.s32 %s194, 1
    %s196 = scalar_select %p193, %s194, %s195
    %p199 = pneg %p193
    %p200 = scmp.eq.s32.totalorder %s22, 1
    %p201 = por %p199, %p200
    %p202 = scmp.ne.s32.totalorder %s194, %s197
    %p203 = scmp.eq.s32.totalorder %s22, 0
    %p204 = por %p202, %p203
    %p205 = scmp.ne.s32.totalorder %s194, %s197
    %p206 = scmp.eq.s32.totalorder %s27, 1
    %p207 = por %p205, %p206
    %p208 = scmp.ne.s32.totalorder %s197, %s198
    %p209 = scmp.eq.s32.totalorder %s27, 0
    %p210 = por %p208, %p209
    %p211 = scmp.ne.s32.totalorder %s197, %s198
    %p212 = scmp.eq.s32.totalorder %s28, 1
    %p213 = por %p211, %p212
    %p215 = scmp.ne.s32.totalorder %s198, %s214
    %p216 = scmp.eq.s32.totalorder %s28, 0
    %p217 = por %p215, %p216
    %s218 = ssub.s32 %s22, %s29
    %p219 = scmp.eq.s32.totalorder %s218, 0
    %s221 = sadd.s32 %s220, 1
    %s222 = scalar_select %p219, %s220, %s221
    %p225 = pneg %p219
    %p226 = scmp.eq.s32.totalorder %s22, 1
    %p227 = por %p225, %p226
    %p228 = scmp.ne.s32.totalorder %s220, %s223
    %p229 = scmp.eq.s32.totalorder %s22, 0
    %p230 = por %p228, %p229
    %p231 = scmp.ne.s32.totalorder %s220, %s223
    %p232 = scmp.eq.s32.totalorder %s27, 1
    %p233 = por %p231, %p232
    %p234 = scmp.ne.s32.totalorder %s223, %s224
    %p235 = scmp.eq.s32.totalorder %s27, 0
    %p236 = por %p234, %p235
    %p237 = scmp.ne.s32.totalorder %s223, %s224
    %p238 = scmp.eq.s32.totalorder %s28, 1
    %p239 = por %p237, %p238
    %p241 = scmp.ne.s32.totalorder %s224, %s240
    %p242 = scmp.eq.s32.totalorder %s28, 0
    %p243 = por %p241, %p242
    %s244 = ssub.s32 %s22, %s29
    %p245 = scmp.eq.s32.totalorder %s244, 0
    %s247 = sadd.s32 %s246, 1
    %s248 = scalar_select %p245, %s246, %s247
    %p251 = pneg %p245
    %p252 = scmp.eq.s32.totalorder %s22, 1
    %p253 = por %p251, %p252
    %p254 = scmp.ne.s32.totalorder %s246, %s249
    %p255 = scmp.eq.s32.totalorder %s22, 0
    %p256 = por %p254, %p255
    %p257 = scmp.ne.s32.totalorder %s246, %s249
    %p258 = scmp.eq.s32.totalorder %s27, 1
    %p259 = por %p257, %p258
    %p260 = scmp.ne.s32.totalorder %s249, %s250
    %p261 = scmp.eq.s32.totalorder %s27, 0
    %p262 = por %p260, %p261
    %p263 = scmp.ne.s32.totalorder %s249, %s250
    %p264 = scmp.eq.s32.totalorder %s28, 1
    %p265 = por %p263, %p264
    %p267 = scmp.ne.s32.totalorder %s250, %s266
    %p268 = scmp.eq.s32.totalorder %s28, 0
    %p269 = por %p267, %p268
    %s270 = ssub.s32 %s22, %s29
    %p271 = scmp.eq.s32.totalorder %s270, 0
    %s273 = sadd.s32 %s272, 1
    %s274 = scalar_select %p271, %s272, %s273
    %p277 = pneg %p271
    %p278 = scmp.eq.s32.totalorder %s22, 1
    %p279 = por %p277, %p278
    %p280 = scmp.ne.s32.totalorder %s272, %s275
    %p281 = scmp.eq.s32.totalorder %s22, 0
    %p282 = por %p280, %p281
    %p283 = scmp.ne.s32.totalorder %s272, %s275
    %p284 = scmp.eq.s32.totalorder %s27, 1
    %p285 = por %p283, %p284
    %p286 = scmp.ne.s32.totalorder %s275, %s276
    %p287 = scmp.eq.s32.totalorder %s27, 0
    %p288 = por %p286, %p287
    %p289 = scmp.ne.s32.totalorder %s275, %s276
    %p290 = scmp.eq.s32.totalorder %s28, 1
    %p291 = por %p289, %p290
    %p293 = scmp.ne.s32.totalorder %s276, %s292
    %p294 = scmp.eq.s32.totalorder %s28, 0
    %p295 = por %p293, %p294
    %s296 = ssub.s32 %s22, %s29
    %p297 = scmp.eq.s32.totalorder %s296, 0
    %s299 = sadd.s32 %s298, 1
    %s300 = scalar_select %p297, %s298, %s299
    %p303 = pneg %p297
    %p304 = scmp.eq.s32.totalorder %s22, 1
    %p305 = por %p303, %p304
    %p306 = scmp.ne.s32.totalorder %s298, %s301
    %p307 = scmp.eq.s32.totalorder %s22, 0
    %p308 = por %p306, %p307
    %p309 = scmp.ne.s32.totalorder %s298, %s301
    %p310 = scmp.eq.s32.totalorder %s27, 1
    %p311 = por %p309, %p310
    %p312 = scmp.ne.s32.totalorder %s301, %s302
    %p313 = scmp.eq.s32.totalorder %s27, 0
    %p314 = por %p312, %p313
    %p315 = scmp.ne.s32.totalorder %s301, %s302
    %p316 = scmp.eq.s32.totalorder %s28, 1
    %p317 = por %p315, %p316
    %p319 = scmp.ne.s32.totalorder %s302, %s318
    %p320 = scmp.eq.s32.totalorder %s28, 0
    %p321 = por %p319, %p320
    %s322 = ssub.s32 %s22, %s29
    %p323 = scmp.eq.s32.totalorder %s322, 0
    %s325 = sadd.s32 %s324, 1
    %s326 = scalar_select %p323, %s324, %s325
    %p329 = pneg %p323
    %p330 = scmp.eq.s32.totalorder %s22, 1
    %p331 = por %p329, %p330
    %p332 = scmp.ne.s32.totalorder %s324, %s327
    %p333 = scmp.eq.s32.totalorder %s22, 0
    %p334 = por %p332, %p333
    %p335 = scmp.ne.s32.totalorder %s324, %s327
    %p336 = scmp.eq.s32.totalorder %s27, 1
    %p337 = por %p335, %p336
    %p338 = scmp.ne.s32.totalorder %s327, %s328
    %p339 = scmp.eq.s32.totalorder %s27, 0
    %p340 = por %p338, %p339
    %p341 = scmp.ne.s32.totalorder %s327, %s328
    %p342 = scmp.eq.s32.totalorder %s28, 1
    %p343 = por %p341, %p342
    %p345 = scmp.ne.s32.totalorder %s328, %s344
    %p346 = scmp.eq.s32.totalorder %s28, 0
    %p347 = por %p345, %p346
    %s348 = ssub.s32 %s22, %s29
    %p349 = scmp.eq.s32.totalorder %s348, 0
    %s351 = sadd.s32 %s350, 1
    %s352 = scalar_select %p349, %s350, %s351
    %p355 = pneg %p349
    %p356 = scmp.eq.s32.totalorder %s22, 1
    %p357 = por %p355, %p356
    %p358 = scmp.ne.s32.totalorder %s350, %s353
    %p359 = scmp.eq.s32.totalorder %s22, 0
    %p360 = por %p358, %p359
    %p361 = scmp.ne.s32.totalorder %s350, %s353
    %p362 = scmp.eq.s32.totalorder %s27, 1
    %p363 = por %p361, %p362
    %p364 = scmp.ne.s32.totalorder %s353, %s354
    %p365 = scmp.eq.s32.totalorder %s27, 0
    %p366 = por %p364, %p365
    %p367 = scmp.ne.s32.totalorder %s353, %s354
    %p368 = scmp.eq.s32.totalorder %s28, 1
    %p369 = por %p367, %p368
    %p371 = scmp.ne.s32.totalorder %s354, %s370
    %p372 = scmp.eq.s32.totalorder %s28, 0
    %p373 = por %p371, %p372
    %s374 = ssub.s32 %s22, %s29
    %p375 = scmp.eq.s32.totalorder %s374, 0
    %s377 = sadd.s32 %s376, 1
    %s378 = scalar_select %p375, %s376, %s377
    %p381 = pneg %p375
    %p382 = scmp.eq.s32.totalorder %s22, 1
    %p383 = por %p381, %p382
    %p384 = scmp.ne.s32.totalorder %s376, %s379
    %p385 = scmp.eq.s32.totalorder %s22, 0
    %p386 = por %p384, %p385
    %p387 = scmp.ne.s32.totalorder %s376, %s379
    %p388 = scmp.eq.s32.totalorder %s27, 1
    %p389 = por %p387, %p388
    %p390 = scmp.ne.s32.totalorder %s379, %s380
    %p391 = scmp.eq.s32.totalorder %s27, 0
    %p392 = por %p390, %p391
    %p393 = scmp.ne.s32.totalorder %s379, %s380
    %p394 = scmp.eq.s32.totalorder %s28, 1
    %p395 = por %p393, %p394
    %p397 = scmp.ne.s32.totalorder %s380, %s396
    %p398 = scmp.eq.s32.totalorder %s28, 0
    %p399 = por %p397, %p398
    %s400 = ssub.s32 %s22, %s29
    %p401 = scmp.eq.s32.totalorder %s400, 0
    %s403 = sadd.s32 %s402, 1
    %s404 = scalar_select %p401, %s402, %s403
    %p407 = pneg %p401
    %p408 = scmp.eq.s32.totalorder %s22, 1
    %p409 = por %p407, %p408
    %p410 = scmp.ne.s32.totalorder %s402, %s405
    %p411 = scmp.eq.s32.totalorder %s22, 0
    %p412 = por %p410, %p411
    %p413 = scmp.ne.s32.totalorder %s402, %s405
    %p414 = scmp.eq.s32.totalorder %s27, 1
    %p415 = por %p413, %p414
    %p416 = scmp.ne.s32.totalorder %s405, %s406
    %p417 = scmp.eq.s32.totalorder %s27, 0
    %p418 = por %p416, %p417
    %p419 = scmp.ne.s32.totalorder %s405, %s406
    %p420 = scmp.eq.s32.totalorder %s28, 1
    %p421 = por %p419, %p420
    %p423 = scmp.ne.s32.totalorder %s406, %s422
    %p424 = scmp.eq.s32.totalorder %s28, 0
    %p425 = por %p423, %p424
    %s427 = sadd.s32 %s426, 1
    %p430 = scmp.eq.s32.totalorder %s22, 1
    %p431 = scmp.ne.s32.totalorder %s426, %s428
    %p432 = scmp.eq.s32.totalorder %s22, 0
    %p433 = por %p431, %p432
    %p434 = scmp.ne.s32.totalorder %s426, %s428
    %p435 = scmp.eq.s32.totalorder %s27, 1
    %p436 = por %p434, %p435
    %p437 = scmp.ne.s32.totalorder %s428, %s429
    %p438 = scmp.eq.s32.totalorder %s27, 0
    %p439 = por %p437, %p438
    %p440 = scmp.ne.s32.totalorder %s428, %s429
    %p441 = scmp.eq.s32.totalorder %s28, 1
    %p442 = por %p440, %p441
    %p444 = scmp.ne.s32.totalorder %s429, %s443
    %p445 = scmp.eq.s32.totalorder %s28, 0
    %p446 = por %p444, %p445
    %p447 = scmp.le.s32.totalorder 1, %s22
    %p448 = scmp.lt.s32.totalorder %s22, 3
    %p449 = pnand %p447, %p448
    %p450 = pneg %p449
    // Predicated region
    $region9: #{bert_vit_forward.5} parent=5 // pred_check
      _
    $region10: #{bert_vit_forward.5} parent=5 // pred_check_branch
      %452 = sbr.rel (%p449) target = $region12
    $region11: #{bert_vit_forward.5} parent=5 // pred_region
      %s453 = ssub.s32 %s22, 1
      // Predicated region
      $region13: #{bert_vit_forward.5} parent=11 // pred_check
        %p454 = pneg %p43
      $region14: #{bert_vit_forward.5} parent=11 // pred_check_branch
        %456 = sbr.rel (%p454) target = $region16
      $region15: #{bert_vit_forward.5} parent=11 // pred_region
        _
      $region16: #{bert_vit_forward.5} parent=11 // pred_fallthru
        _
      // Predicated region
      $region17: #{bert_vit_forward.5} parent=11 // pred_check
        %p457 = pneg %p64
      $region18: #{bert_vit_forward.5} parent=11 // pred_check_branch
        %459 = sbr.rel (%p457) target = $region20
      $region19: #{bert_vit_forward.5} parent=11 // pred_region
        _
      $region20: #{bert_vit_forward.5} parent=11 // pred_fallthru
        _
      // Predicated region
      $region21: #{bert_vit_forward.5} parent=11 // pred_check
        %p460 = pneg %p85
      $region22: #{bert_vit_forward.5} parent=11 // pred_check_branch
        %462 = sbr.rel (%p460) target = $region24
      $region23: #{bert_vit_forward.5} parent=11 // pred_region
        _
      $region24: #{bert_vit_forward.5} parent=11 // pred_fallthru
        _
      // Predicated region
      $region25: #{bert_vit_forward.5} parent=11 // pred_check
        %p463 = pneg %p106
      $region26: #{bert_vit_forward.5} parent=11 // pred_check_branch
        %465 = sbr.rel (%p463) target = $region28
      $region27: #{bert_vit_forward.5} parent=11 // pred_region
        _
      $region28: #{bert_vit_forward.5} parent=11 // pred_fallthru
        _
    $region12: #{bert_vit_forward.5} parent=5 // pred_fallthru
      _
    %p466 = scmp.lt.s32.totalorder %s22, 2
    // Predicated region
    $region29: #{bert_vit_forward.5} parent=5 // pred_check
      %p467 = pneg %p466
    $region30: #{bert_vit_forward.5} parent=5 // pred_check_branch
      %469 = sbr.rel (%p467) target = $region32
    $region31: #{bert_vit_forward.5} parent=5 // pred_region
      // Predicated region
      $region33: #{bert_vit_forward.5} parent=31 // pred_check
        %p470 = pneg %p126
      $region34: #{bert_vit_forward.5} parent=31 // pred_check_branch
        %472 = sbr.rel (%p470) target = $region36
      $region35: #{bert_vit_forward.5} parent=31 // pred_region
        %p473 = scmp.lt.s32.totalorder %s22, 1
        %s474 = scalar_select %p473, %s22, 1
        %s475 = smul.addr %s474, 16
        %s476 = smul.addr %s475, 4
        %s477 = scalar_lea.vmem %s4, %s476
      $region36: #{bert_vit_forward.5} parent=31 // pred_fallthru
        _
      // Predicated region
      $region37: #{bert_vit_forward.5} parent=31 // pred_check
        %p478 = pneg %p152
      $region38: #{bert_vit_forward.5} parent=31 // pred_check_branch
        %480 = sbr.rel (%p478) target = $region40
      $region39: #{bert_vit_forward.5} parent=31 // pred_region
        %p481 = scmp.lt.s32.totalorder %s22, 1
        %s482 = scalar_select %p481, %s22, 1
        %s483 = smul.addr %s482, 2
        %s484 = scalar_lea.vmem %s5, %s483
      $region40: #{bert_vit_forward.5} parent=31 // pred_fallthru
        _
      // Predicated region
      $region41: #{bert_vit_forward.5} parent=31 // pred_check
        %p485 = pneg %p178
      $region42: #{bert_vit_forward.5} parent=31 // pred_check_branch
        %487 = sbr.rel (%p485) target = $region44
      $region43: #{bert_vit_forward.5} parent=31 // pred_region
        %p488 = scmp.lt.s32.totalorder %s22, 1
        %s489 = scalar_select %p488, %s22, 1
        %s490 = smul.addr %s489, 8
        %s491 = smul.addr %s490, 4
        %s492 = scalar_lea.vmem %s6, %s491
      $region44: #{bert_vit_forward.5} parent=31 // pred_fallthru
        _
      // Predicated region
      $region45: #{bert_vit_forward.5} parent=31 // pred_check
        %p493 = pneg %p204
      $region46: #{bert_vit_forward.5} parent=31 // pred_check_branch
        %495 = sbr.rel (%p493) target = $region48
      $region47: #{bert_vit_forward.5} parent=31 // pred_region
        %p496 = scmp.lt.s32.totalorder %s22, 1
        %s497 = scalar_select %p496, %s22, 1
        %s498 = scalar_lea.vmem %s7, %s497
      $region48: #{bert_vit_forward.5} parent=31 // pred_fallthru
        _
      // Predicated region
      $region49: #{bert_vit_forward.5} parent=31 // pred_check
        %p499 = pneg %p230
      $region50: #{bert_vit_forward.5} parent=31 // pred_check_branch
        %501 = sbr.rel (%p499) target = $region52
      $region51: #{bert_vit_forward.5} parent=31 // pred_region
        %p502 = scmp.lt.s32.totalorder %s22, 1
        %s503 = scalar_select %p502, %s22, 1
        %s504 = scalar_lea.vmem %s8, %s503
      $region52: #{bert_vit_forward.5} parent=31 // pred_fallthru
        _
      // Predicated region
      $region53: #{bert_vit_forward.5} parent=31 // pred_check
        %p505 = pneg %p256
      $region54: #{bert_vit_forward.5} parent=31 // pred_check_branch
        %507 = sbr.rel (%p505) target = $region56
      $region55: #{bert_vit_forward.5} parent=31 // pred_region
        %p508 = scmp.lt.s32.totalorder %s22, 1
        %s509 = scalar_select %p508, %s22, 1
        %s510 = scalar_lea.vmem %s9, %s509
      $region56: #{bert_vit_forward.5} parent=31 // pred_fallthru
        _
      // Predicated region
      $region57: #{bert_vit_forward.5} parent=31 // pred_check
        %p511 = pneg %p282
      $region58: #{bert_vit_forward.5} parent=31 // pred_check_branch
        %513 = sbr.rel (%p511) target = $region60
      $region59: #{bert_vit_forward.5} parent=31 // pred_region
        %p514 = scmp.lt.s32.totalorder %s22, 1
        %s515 = scalar_select %p514, %s22, 1
        %s516 = smul.addr %s515, 8
        %s517 = smul.addr %s516, 4
        %s518 = scalar_lea.vmem %s10, %s517
      $region60: #{bert_vit_forward.5} parent=31 // pred_fallthru
        _
      // Predicated region
      $region61: #{bert_vit_forward.5} parent=31 // pred_check
        %p519 = pneg %p308
      $region62: #{bert_vit_forward.5} parent=31 // pred_check_branch
        %521 = sbr.rel (%p519) target = $region64
      $region63: #{bert_vit_forward.5} parent=31 // pred_region
        %p522 = scmp.lt.s32.totalorder %s22, 1
        %s523 = scalar_select %p522, %s22, 1
        %s524 = scalar_lea.vmem %s11, %s523
      $region64: #{bert_vit_forward.5} parent=31 // pred_fallthru
        _
      // Predicated region
      $region65: #{bert_vit_forward.5} parent=31 // pred_check
        %p525 = pneg %p334
      $region66: #{bert_vit_forward.5} parent=31 // pred_check_branch
        %527 = sbr.rel (%p525) target = $region68
      $region67: #{bert_vit_forward.5} parent=31 // pred_region
        %p528 = scmp.lt.s32.totalorder %s22, 1
        %s529 = scalar_select %p528, %s22, 1
        %s530 = smul.addr %s529, 16
        %s531 = smul.addr %s530, 4
        %s532 = scalar_lea.vmem %s12, %s531
      $region68: #{bert_vit_forward.5} parent=31 // pred_fallthru
        _
      // Predicated region
      $region69: #{bert_vit_forward.5} parent=31 // pred_check
        %p533 = pneg %p360
      $region70: #{bert_vit_forward.5} parent=31 // pred_check_branch
        %535 = sbr.rel (%p533) target = $region72
      $region71: #{bert_vit_forward.5} parent=31 // pred_region
        %p536 = scmp.lt.s32.totalorder %s22, 1
        %s537 = scalar_select %p536, %s22, 1
        %s538 = scalar_lea.vmem %s13, %s537
      $region72: #{bert_vit_forward.5} parent=31 // pred_fallthru
        _
      // Predicated region
      $region73: #{bert_vit_forward.5} parent=31 // pred_check
        %p539 = pneg %p386
      $region74: #{bert_vit_forward.5} parent=31 // pred_check_branch
        %541 = sbr.rel (%p539) target = $region76
      $region75: #{bert_vit_forward.5} parent=31 // pred_region
        %p542 = scmp.lt.s32.totalorder %s22, 1
        %s543 = scalar_select %p542, %s22, 1
        %s544 = scalar_lea.vmem %s14, %s543
      $region76: #{bert_vit_forward.5} parent=31 // pred_fallthru
        _
      // Predicated region
      $region77: #{bert_vit_forward.5} parent=31 // pred_check
        %p545 = pneg %p412
      $region78: #{bert_vit_forward.5} parent=31 // pred_check_branch
        %547 = sbr.rel (%p545) target = $region80
      $region79: #{bert_vit_forward.5} parent=31 // pred_region
        %p548 = scmp.lt.s32.totalorder %s22, 1
        %s549 = scalar_select %p548, %s22, 1
        %s550 = scalar_lea.vmem %s15, %s549
      $region80: #{bert_vit_forward.5} parent=31 // pred_fallthru
        _
    $region32: #{bert_vit_forward.5} parent=5 // pred_fallthru
      _
    %p551 = scmp.le.s32.totalorder 1, %s22
    %p552 = scmp.lt.s32.totalorder %s22, 3
    %p553 = pnand %p551, %p552
    %p554 = pneg %p553
    // Predicated region
    $region81: #{bert_vit_forward.5} parent=5 // pred_check
      _
    $region82: #{bert_vit_forward.5} parent=5 // pred_check_branch
      %556 = sbr.rel (%p553) target = $region84
    $region83: #{bert_vit_forward.5} parent=5 // pred_region
      %s557 = ssub.s32 %s22, 1
      %p558 = pneg %p43
      %p559 = pneg %p40
      %p560 = pneg %p64
      %p561 = pneg %p61
      %p562 = pneg %p85
      %p563 = pneg %p82
      %p564 = pneg %p106
      %p565 = pneg %p103
      %p566 = scmp.lt.s32.totalorder %s27, 1
      %s567 = scalar_select %p566, %s27, 1
      %s568 = smul.addr %s567, 16
      %s569 = smul.addr %s568, 4
      %s570 = scalar_lea.vmem %s4, %s569
      %p571 = pneg %p132
      %p572 = pneg %p129
      %p573 = scmp.lt.s32.totalorder %s27, 1
      %s574 = scalar_select %p573, %s27, 1
      %s575 = smul.addr %s574, 2
      %s576 = scalar_lea.vmem %s5, %s575
      %p577 = pneg %p158
      %p578 = pneg %p155
      %p579 = scmp.lt.s32.totalorder %s27, 1
      %s580 = scalar_select %p579, %s27, 1
      %s581 = smul.addr %s580, 8
      %s582 = smul.addr %s581, 4
      %s583 = scalar_lea.vmem %s6, %s582
      %p584 = pneg %p184
      %p585 = pneg %p181
      %p586 = scmp.lt.s32.totalorder %s27, 1
      %s587 = scalar_select %p586, %s27, 1
      %s588 = scalar_lea.vmem %s7, %s587
      %p589 = pneg %p210
      %p590 = pneg %p207
      %p591 = scmp.lt.s32.totalorder %s27, 1
      %s592 = scalar_select %p591, %s27, 1
      %s593 = scalar_lea.vmem %s8, %s592
      %p594 = pneg %p236
      %p595 = pneg %p233
      %p596 = scmp.lt.s32.totalorder %s27, 1
      %s597 = scalar_select %p596, %s27, 1
      %s598 = scalar_lea.vmem %s9, %s597
      %p599 = pneg %p262
      %p600 = pneg %p259
      %p601 = scmp.lt.s32.totalorder %s27, 1
      %s602 = scalar_select %p601, %s27, 1
      %s603 = smul.addr %s602, 8
      %s604 = smul.addr %s603, 4
      %s605 = scalar_lea.vmem %s10, %s604
      %p606 = pneg %p288
      %p607 = pneg %p285
      %p608 = scmp.lt.s32.totalorder %s27, 1
      %s609 = scalar_select %p608, %s27, 1
      %s610 = scalar_lea.vmem %s11, %s609
      %p611 = pneg %p314
      %p612 = pneg %p311
      %p613 = scmp.lt.s32.totalorder %s27, 1
      %s614 = scalar_select %p613, %s27, 1
      %s615 = smul.addr %s614, 16
      %s616 = smul.addr %s615, 4
      %s617 = scalar_lea.vmem %s12, %s616
      %p618 = pneg %p340
      %p619 = pneg %p337
      %p620 = scmp.lt.s32.totalorder %s27, 1
      %s621 = scalar_select %p620, %s27, 1
      %s622 = scalar_lea.vmem %s13, %s621
      %p623 = pneg %p366
      %p624 = pneg %p363
      %p625 = scmp.lt.s32.totalorder %s27, 1
      %s626 = scalar_select %p625, %s27, 1
      %s627 = scalar_lea.vmem %s14, %s626
      %p628 = pneg %p392
      %p629 = pneg %p389
      %p630 = scmp.lt.s32.totalorder %s27, 1
      %s631 = scalar_select %p630, %s27, 1
      %s632 = scalar_lea.vmem %s15, %s631
      %p633 = pneg %p418
      %p634 = pneg %p415
      %p635 = pneg %p439
      %p636 = pneg %p436
      %p637 = scmp.lt.s32.totalorder %s27, 1
      %s638 = scalar_select %p637, %s27, 1
      %s639 = smul.addr %s638, 16
      %s640 = smul.addr %s639, 4
      %s641 = scalar_lea.vmem %s4, %s640
      %p642 = scmp.lt.s32.totalorder %s27, 1
      %s643 = scalar_select %p642, %s27, 1
      %s644 = smul.addr %s643, 2
      %s645 = scalar_lea.vmem %s5, %s644
      %p646 = scmp.lt.s32.totalorder %s27, 1
      %s647 = scalar_select %p646, %s27, 1
      %s648 = smul.addr %s647, 8
      %s649 = smul.addr %s648, 4
      %s650 = scalar_lea.vmem %s6, %s649
      %p651 = scmp.lt.s32.totalorder %s27, 1
      %s652 = scalar_select %p651, %s27, 1
      %s653 = scalar_lea.vmem %s7, %s652
      %p654 = scmp.lt.s32.totalorder %s27, 1
      %s655 = scalar_select %p654, %s27, 1
      %s656 = scalar_lea.vmem %s8, %s655
      %p657 = scmp.lt.s32.totalorder %s27, 1
      %s658 = scalar_select %p657, %s27, 1
      %s659 = scalar_lea.vmem %s9, %s658
      %p660 = scmp.lt.s32.totalorder %s27, 1
      %s661 = scalar_select %p660, %s27, 1
      %s662 = smul.addr %s661, 8
      %s663 = smul.addr %s662, 4
      %s664 = scalar_lea.vmem %s10, %s663
      %p665 = scmp.lt.s32.totalorder %s27, 1
      %s666 = scalar_select %p665, %s27, 1
      %s667 = scalar_lea.vmem %s11, %s666
      %p668 = scmp.lt.s32.totalorder %s27, 1
      %s669 = scalar_select %p668, %s27, 1
      %s670 = smul.addr %s669, 16
      %s671 = smul.addr %s670, 4
      %s672 = scalar_lea.vmem %s12, %s671
      %p673 = scmp.lt.s32.totalorder %s27, 1
      %s674 = scalar_select %p673, %s27, 1
      %s675 = scalar_lea.vmem %s13, %s674
      %p676 = scmp.lt.s32.totalorder %s27, 1
      %s677 = scalar_select %p676, %s27, 1
      %s678 = scalar_lea.vmem %s14, %s677
      %p679 = scmp.lt.s32.totalorder %s27, 1
      %s680 = scalar_select %p679, %s27, 1
      %s681 = scalar_lea.vmem %s15, %s680
      %p683 = scmp.eq.s32.totalorder %s27, 0
      // Predicated region
      $region85: #{bert_vit_forward.5} parent=83 // pred_check
        %p684 = pneg %p683
      $region86: #{bert_vit_forward.5} parent=83 // pred_check_branch
        %686 = sbr.rel (%p684) target = $region88
      $region87: #{bert_vit_forward.5} parent=83 // pred_region
        %v687 = vld [vmem:[%s1] sm:$0xff]
        %v688 = vld [vmem:[%s1 + $0x8] sm:$0xff]
        %v689 = vld [vmem:[%s2] sm:$0x1]
        %v690 = vld [vmem:[%s3] sm:$0x1]
        %vm691 = vcmask 523264
        %v692 = vsel %vm691, %v687, 0.0
        %693 = vadd.xlane.f32.xlu0 %v692
        %v694 = vpop.xlane.xlu0 %693
        %v695 = vsel %vm691, %v688, 0.0
        %696 = vadd.xlane.f32.xlu0 %v695
        %v697 = vpop.xlane.xlu0 %696
        %v698 = vrcp.pop 64.0
        %v699 = vmul.f32 %v694, %v698
        %v700 = vmul.f32 %v697, %v698
        %v701 = vsub.f32 %v687, %v699
        %v702 = vsub.f32 %v688, %v700
        %v703 = vmul.f32 %v701, %v701
        %v704 = vmul.f32 %v702, %v702
        %v705 = vsel %vm691, %v703, 0.0
        %706 = vadd.xlane.f32.xlu0 %v705
        %v707 = vpop.xlane.xlu0 %706
        %v708 = vsel %vm691, %v704, 0.0
        %709 = vadd.xlane.f32.xlu0 %v708
        %v710 = vpop.xlane.xlu0 %709
        %v711 = vmul.f32 %v707, %v698
        %v712 = vmul.f32 %v710, %v698
        %v713 = vadd.f32 %v711, 1e-12
        %v714 = vadd.f32 %v712, 1e-12
        %v715 = vrsqrt.pop %v713
        %v716 = vrsqrt.pop %v714
        %v717 = vmul.f32 %v701, %v715
        %v718 = vmul.f32 %v702, %v716
        %v720 = vlaneseq
        %v721 = vshrl.u32 %v720, 7
        %v722 = vsub.s32 0, %v721
        %v723 = vrot.slane %v689, %v722
        %v725 = vmul.f32 %v717, %v723
        %v726 = vmul.f32 %v718, %v723
        %v728 = vlaneseq
        %v729 = vshrl.u32 %v728, 7
        %v730 = vsub.s32 0, %v729
        %v731 = vrot.slane %v690, %v730
        %v733 = vadd.f32 %v725, %v731
        %v734 = vadd.f32 %v726, %v731
        %735 = vst.msk [vmem:[%s16] sm:$0xff] %vm691, %v733
        %736 = vst.msk [vmem:[%s16 + $0x8] sm:$0xff] %vm691, %v734
      $region88: #{bert_vit_forward.5} parent=83 // pred_fallthru
        _
      %v737 = vld [vmem:[%s16] sm:$0xff]
      %v738 = vld [vmem:[%s16 + $0x8] sm:$0xff]
      %v739 = vld [vmem:[%s0] sm:$0x3]
      %v740 = vld [vmem:[%s641] sm:$0xff]
      %v741 = vld [vmem:[%s641 + $0x8] sm:$0xff]
      %v742 = vld [vmem:[%s641 + $0x10] sm:$0xff]
      %v743 = vld [vmem:[%s641 + $0x18] sm:$0xff]
      %v744 = vld [vmem:[%s641 + $0x20] sm:$0xff]
      %v745 = vld [vmem:[%s641 + $0x28] sm:$0xff]
      %v746 = vld [vmem:[%s641 + $0x30] sm:$0xff]
      %v747 = vld [vmem:[%s641 + $0x38] sm:$0xff]
      %v748 = vpack.c.bf16 %v738, %v737
      %v749 = vld [vmem:[%s645] sm:$0x3]
      %v751 = vlaneseq
      %v752 = vshrl.u32 %v751, 7
      %v753 = vsub.s32 0, %v752
      %v754 = vrot.slane %v749, %v753
      %v755 = vlaneseq
      %v756 = vshrl.u32 %v755, 7
      %v757 = vsub.s32 1, %v756
      %v758 = vrot.slane %v749, %v757
      %v769 = vunpack.c.l.b16 %v740
      %v770 = vunpack.c.h.b16 %v740
      %v771 = vunpack.c.l.b16 %v741
      %v772 = vunpack.c.h.b16 %v741
      %v773 = vunpack.c.l.b16 %v742
      %v774 = vunpack.c.h.b16 %v742
      %v775 = vunpack.c.l.b16 %v743
      %v776 = vunpack.c.h.b16 %v743
      %v777 = vunpack.c.l.b16 %v744
      %v778 = vunpack.c.h.b16 %v744
      %v779 = vunpack.c.l.b16 %v745
      %v780 = vunpack.c.h.b16 %v745
      %v781 = vunpack.c.l.b16 %v746
      %v782 = vunpack.c.h.b16 %v746
      %v783 = vunpack.c.l.b16 %v747
      %v784 = vunpack.c.h.b16 %v747
      %v785 = vpack.c.b16 %v771, %v769
      %v786 = vpack.c.b16 %v772, %v770
      %v787 = vpack.c.b16 %v775, %v773
      %v788 = vpack.c.b16 %v776, %v774
      %v789 = vpack.c.b16 %v779, %v777
      %v790 = vpack.c.b16 %v780, %v778
      %v791 = vpack.c.b16 %v783, %v781
      %v792 = vpack.c.b16 %v784, %v782
      %vm801 = vcmask 523264
      %v803 = vsel %vm801, %v748, 0
      %805 = vmatprep.subr.bf16.mxu0 %v786
      %806 = vmatpush1.bf16.msra.mxu0 %v785
      %807 = vmatprep.subr.bf16.mxu0 %v788
      %808 = vmatpush1.bf16.msra.mxu0 %v787
      %809 = vmatprep.subr.bf16.mxu0 %v790
      %810 = vmatpush1.bf16.msra.mxu0 %v789
      %811 = vmatprep.subr.bf16.mxu0 %v792
      %812 = vmatpush1.bf16.msra.mxu0 %v791
      %813 = vmatprep.subr.bf16.mxu0 0
      %814 = vmatpush1.bf16.msra.mxu0 0
      %815 = vmatprep.subr.bf16.mxu0 0
      %816 = vmatpush1.bf16.msra.mxu0 0
      %817 = vmatprep.subr.bf16.mxu0 0
      %818 = vmatpush1.bf16.msra.mxu0 0
      %819 = vmatprep.subr.bf16.mxu0 0
      %820 = vmatpush1.bf16.msra.mxu0 0
      %821 = vmatprep.subr.bf16.mxu0 0
      %822 = vmatpush1.bf16.msra.mxu0 0
      %823 = vmatprep.subr.bf16.mxu0 0
      %824 = vmatpush1.bf16.msra.mxu0 0
      %825 = vmatprep.subr.bf16.mxu0 0
      %826 = vmatpush1.bf16.msra.mxu0 0
      %827 = vmatprep.subr.bf16.mxu0 0
      %828 = vmatpush1.bf16.msra.mxu0 0
      %829 = vmatprep.subr.bf16.mxu0 0
      %830 = vmatpush1.bf16.msra.mxu0 0
      %831 = vmatprep.subr.bf16.mxu0 0
      %832 = vmatpush1.bf16.msra.mxu0 0
      %833 = vmatprep.subr.bf16.mxu0 0
      %834 = vmatpush1.bf16.msra.mxu0 0
      %835 = vmatprep.subr.bf16.mxu0 0
      %836 = vmatpush1.bf16.msra.mxu0 0
      %837 = vmatprep.mubr.bf16.mxu0 0
      %838 = vmatmul.mubr.bf16.gmra.mrb[0].mxu0 %v803
      %v839 = vpop.f32.mrb[0].mxu0
      %v840 = vadd.f32 %v754, %v839
      %v841 = vpop.f32.mrb[0].mxu0
      %v842 = vadd.f32 %v758, %v841
      %v843 = vpop.f32.mrb[0].mxu0
      %v844 = vadd.f32 %v754, %v843
      %v845 = vpop.f32.mrb[0].mxu0
      %v846 = vadd.f32 %v758, %v845
      %847 = vdwg.mxu0
      %849 = vrot.lane.b32.xlu0 %v840, 64
      %v850 = vpop.permute.xlu0 %849
      %vm851 = vcmask 261120
      %v852 = vsel %vm851, %v840, 0
      %v854 = vsel %vm851, %v850, 0
      %856 = vmatprep.subr.mxu0 0.0
      %857 = vmatpush1.xpose.msra.mxu0 %v854
      %858 = vmatprep.subr.mxu0 0.0
      %859 = vmatpush1.xpose.msra.mxu0 0.0
      %860 = vmatprep.subr.mxu0 0.0
      %861 = vmatpush1.xpose.msra.mxu0 0.0
      %862 = vmatprep.subr.mxu0 0.0
      %863 = vmatpush1.xpose.msra.mxu0 0.0
      %864 = vmatprep.subr.mxu0 0.0
      %865 = vmatpush1.xpose.msra.mxu0 0.0
      %866 = vmatprep.subr.mxu0 0.0
      %867 = vmatpush1.xpose.msra.mxu0 0.0
      %868 = vmatprep.subr.mxu0 0.0
      %869 = vmatpush1.xpose.msra.mxu0 0.0
      %870 = vmatprep.subr.mxu0 0.0
      %871 = vmatpush1.xpose.msra.mxu0 0.0
      %872 = vmatprep.subr.mxu0 0.0
      %873 = vmatpush1.xpose.msra.mxu0 0.0
      %874 = vmatprep.subr.mxu0 0.0
      %875 = vmatpush1.xpose.msra.mxu0 0.0
      %876 = vmatprep.subr.mxu0 0.0
      %877 = vmatpush1.xpose.msra.mxu0 0.0
      %878 = vmatprep.subr.mxu0 0.0
      %879 = vmatpush1.xpose.msra.mxu0 0.0
      %880 = vmatprep.subr.mxu0 0.0
      %881 = vmatpush1.xpose.msra.mxu0 0.0
      %882 = vmatprep.subr.mxu0 0.0
      %883 = vmatpush1.xpose.msra.mxu0 0.0
      %884 = vmatprep.subr.mxu0 0.0
      %885 = vmatpush1.xpose.msra.mxu0 0.0
      %886 = vmatprep.subr.mxu0 0.0
      %887 = vmatpush1.xpose.msra.mxu0 0.0
      %888 = vmatprep.subr.mxu0 0.0
      %889 = vmatpush1.xpose.msra.mxu0 0.0
      %890 = vmatprep.subr.mxu0 0.0
      %891 = vmatpush1.xpose.msra.mxu0 0.0
      %892 = vmatprep.subr.mxu0 0.0
      %893 = vmatpush1.xpose.msra.mxu0 0.0
      %894 = vmatprep.subr.mxu0 0.0
      %895 = vmatpush1.xpose.msra.mxu0 0.0
      %896 = vmatprep.subr.mxu0 0.0
      %897 = vmatpush1.xpose.msra.mxu0 0.0
      %898 = vmatprep.subr.mxu0 0.0
      %899 = vmatpush1.xpose.msra.mxu0 0.0
      %900 = vmatprep.subr.mxu0 0.0
      %901 = vmatpush1.xpose.msra.mxu0 0.0
      %902 = vmatprep.subr.mxu0 0.0
      %903 = vmatpush1.xpose.msra.mxu0 0.0
      %904 = vmatprep.subr.mxu0 0.0
      %905 = vmatpush1.xpose.msra.mxu0 0.0
      %906 = vmatprep.subr.mxu0 0.0
      %907 = vmatpush1.xpose.msra.mxu0 0.0
      %908 = vmatprep.subr.mxu0 0.0
      %909 = vmatpush1.xpose.msra.mxu0 0.0
      %910 = vmatprep.subr.mxu0 0.0
      %911 = vmatpush1.xpose.msra.mxu0 0.0
      %912 = vmatprep.subr.mxu0 0.0
      %913 = vmatpush1.xpose.msra.mxu0 0.0
      %914 = vmatprep.subr.mxu0 0.0
      %915 = vmatpush1.xpose.msra.mxu0 0.0
      %916 = vmatprep.subr.mxu0 0.0
      %917 = vmatpush1.xpose.msra.mxu0 0.0
      %918 = vmatprep.subr.mxu0 0.0
      %919 = vmatpush1.xpose.msra.mxu0 0.0
      %920 = vmatprep.mubr.f32.mxu0 0.0
      %921 = vmatmul.mubr.f32.gmra.mrb[0].mxu0 %v852
      %v922 = vpop.f32.mrb[0].mxu0
      %v923 = vadd.f32 0.0, %v922
      %v924 = vpop.f32.mrb[0].mxu0
      %925 = vdwg.mxu0
      %v926 = vmul.f32 %v923, 0.17677669
      %v927 = vlaneseq
      %v928 = vshrl.u32 %v927, 7
      %v929 = vsub.s32 0, %v928
      %v930 = vrot.slane %v739, %v929
      %v931 = vadd.f32 %v926, %v930
      %vm932 = vcmask 64512
      %v933 = vsel %vm932, %v931, -inf
      %934 = vmax.xlane.f32.xlu0 %v933
      %v935 = vpop.xlane.xlu0 %934
      %v936 = vsub.f32 %v931, %v935
      %v937 = vmul.f32 %v936, 1.442695
      %v938 = vpow.pop %v937
      %v939 = vsel %vm932, %v938, 0.0
      %940 = vadd.xlane.f32.xlu0 %v939
      %v941 = vpop.xlane.xlu0 %940
      %v942 = vrcp.pop %v941
      %v943 = vmul.f32 %v938, %v942
      %v945 = vsel %vm932, %v943, 0
      %947 = vmatprep.subr.mxu0 0.0
      %948 = vmatpush1.msra.mxu0 %v842
      %949 = vmatprep.subr.mxu0 0.0
      %950 = vmatpush1.msra.mxu0 0.0
      %951 = vmatprep.subr.mxu0 0.0
      %952 = vmatpush1.msra.mxu0 0.0
      %953 = vmatprep.subr.mxu0 0.0
      %954 = vmatpush1.msra.mxu0 0.0
      %955 = vmatprep.subr.mxu0 0.0
      %956 = vmatpush1.msra.mxu0 0.0
      %957 = vmatprep.subr.mxu0 0.0
      %958 = vmatpush1.msra.mxu0 0.0
      %959 = vmatprep.subr.mxu0 0.0
      %960 = vmatpush1.msra.mxu0 0.0
      %961 = vmatprep.subr.mxu0 0.0
      %962 = vmatpush1.msra.mxu0 0.0
      %963 = vmatprep.subr.mxu0 0.0
      %964 = vmatpush1.msra.mxu0 0.0
      %965 = vmatprep.subr.mxu0 0.0
      %966 = vmatpush1.msra.mxu0 0.0
      %967 = vmatprep.subr.mxu0 0.0
      %968 = vmatpush1.msra.mxu0 0.0
      %969 = vmatprep.subr.mxu0 0.0
      %970 = vmatpush1.msra.mxu0 0.0
      %971 = vmatprep.subr.mxu0 0.0
      %972 = vmatpush1.msra.mxu0 0.0
      %973 = vmatprep.subr.mxu0 0.0
      %974 = vmatpush1.msra.mxu0 0.0
      %975 = vmatprep.subr.mxu0 0.0
      %976 = vmatpush1.msra.mxu0 0.0
      %977 = vmatprep.subr.mxu0 0.0
      %978 = vmatpush1.msra.mxu0 0.0
      %979 = vmatprep.subr.mxu0 0.0
      %980 = vmatpush1.msra.mxu0 0.0
      %981 = vmatprep.subr.mxu0 0.0
      %982 = vmatpush1.msra.mxu0 0.0
      %983 = vmatprep.subr.mxu0 0.0
      %984 = vmatpush1.msra.mxu0 0.0
      %985 = vmatprep.subr.mxu0 0.0
      %986 = vmatpush1.msra.mxu0 0.0
      %987 = vmatprep.subr.mxu0 0.0
      %988 = vmatpush1.msra.mxu0 0.0
      %989 = vmatprep.subr.mxu0 0.0
      %990 = vmatpush1.msra.mxu0 0.0
      %991 = vmatprep.subr.mxu0 0.0
      %992 = vmatpush1.msra.mxu0 0.0
      %993 = vmatprep.subr.mxu0 0.0
      %994 = vmatpush1.msra.mxu0 0.0
      %995 = vmatprep.subr.mxu0 0.0
      %996 = vmatpush1.msra.mxu0 0.0
      %997 = vmatprep.subr.mxu0 0.0
      %998 = vmatpush1.msra.mxu0 0.0
      %999 = vmatprep.subr.mxu0 0.0
      %1000 = vmatpush1.msra.mxu0 0.0
      %1001 = vmatprep.subr.mxu0 0.0
      %1002 = vmatpush1.msra.mxu0 0.0
      %1003 = vmatprep.subr.mxu0 0.0
      %1004 = vmatpush1.msra.mxu0 0.0
      %1005 = vmatprep.subr.mxu0 0.0
      %1006 = vmatpush1.msra.mxu0 0.0
      %1007 = vmatprep.subr.mxu0 0.0
      %1008 = vmatpush1.msra.mxu0 0.0
      %1009 = vmatprep.subr.mxu0 0.0
      %1010 = vmatpush1.msra.mxu0 0.0
      %1011 = vmatprep.mubr.f32.mxu0 0.0
      %1012 = vmatmul.mubr.f32.gmra.mrb[0].mxu0 %v945
      %v1013 = vpop.f32.mrb[0].mxu0
      %v1014 = vadd.f32 0.0, %v1013
      %v1015 = vpop.f32.mrb[0].mxu0
      %1016 = vdwg.mxu0
      %1018 = vrot.lane.b32.xlu0 %v844, 64
      %v1019 = vpop.permute.xlu0 %1018
      %v1020 = vsel %vm851, %v844, 0
      %v1022 = vsel %vm851, %v1019, 0
      %1024 = vmatprep.subr.mxu0 0.0
      %1025 = vmatpush1.xpose.msra.mxu0 %v1022
      %1026 = vmatprep.subr.mxu0 0.0
      %1027 = vmatpush1.xpose.msra.mxu0 0.0
      %1028 = vmatprep.subr.mxu0 0.0
      %1029 = vmatpush1.xpose.msra.mxu0 0.0
      %1030 = vmatprep.subr.mxu0 0.0
      %1031 = vmatpush1.xpose.msra.mxu0 0.0
      %1032 = vmatprep.subr.mxu0 0.0
      %1033 = vmatpush1.xpose.msra.mxu0 0.0
      %1034 = vmatprep.subr.mxu0 0.0
      %1035 = vmatpush1.xpose.msra.mxu0 0.0
      %1036 = vmatprep.subr.mxu0 0.0
      %1037 = vmatpush1.xpose.msra.mxu0 0.0
      %1038 = vmatprep.subr.mxu0 0.0
      %1039 = vmatpush1.xpose.msra.mxu0 0.0
      %1040 = vmatprep.subr.mxu0 0.0
      %1041 = vmatpush1.xpose.msra.mxu0 0.0
      %1042 = vmatprep.subr.mxu0 0.0
      %1043 = vmatpush1.xpose.msra.mxu0 0.0
      %1044 = vmatprep.subr.mxu0 0.0
      %1045 = vmatpush1.xpose.msra.mxu0 0.0
      %1046 = vmatprep.subr.mxu0 0.0
      %1047 = vmatpush1.xpose.msra.mxu0 0.0
      %1048 = vmatprep.subr.mxu0 0.0
      %1049 = vmatpush1.xpose.msra.mxu0 0.0
      %1050 = vmatprep.subr.mxu0 0.0
      %1051 = vmatpush1.xpose.msra.mxu0 0.0
      %1052 = vmatprep.subr.mxu0 0.0
      %1053 = vmatpush1.xpose.msra.mxu0 0.0
      %1054 = vmatprep.subr.mxu0 0.0
      %1055 = vmatpush1.xpose.msra.mxu0 0.0
      %1056 = vmatprep.subr.mxu0 0.0
      %1057 = vmatpush1.xpose.msra.mxu0 0.0
      %1058 = vmatprep.subr.mxu0 0.0
      %1059 = vmatpush1.xpose.msra.mxu0 0.0
      %1060 = vmatprep.subr.mxu0 0.0
      %1061 = vmatpush1.xpose.msra.mxu0 0.0
      %1062 = vmatprep.subr.mxu0 0.0
      %1063 = vmatpush1.xpose.msra.mxu0 0.0
      %1064 = vmatprep.subr.mxu0 0.0
      %1065 = vmatpush1.xpose.msra.mxu0 0.0
      %1066 = vmatprep.subr.mxu0 0.0
      %1067 = vmatpush1.xpose.msra.mxu0 0.0
      %1068 = vmatprep.subr.mxu0 0.0
      %1069 = vmatpush1.xpose.msra.mxu0 0.0
      %1070 = vmatprep.subr.mxu0 0.0
      %1071 = vmatpush1.xpose.msra.mxu0 0.0
      %1072 = vmatprep.subr.mxu0 0.0
      %1073 = vmatpush1.xpose.msra.mxu0 0.0
      %1074 = vmatprep.subr.mxu0 0.0
      %1075 = vmatpush1.xpose.msra.mxu0 0.0
      %1076 = vmatprep.subr.mxu0 0.0
      %1077 = vmatpush1.xpose.msra.mxu0 0.0
      %1078 = vmatprep.subr.mxu0 0.0
      %1079 = vmatpush1.xpose.msra.mxu0 0.0
      %1080 = vmatprep.subr.mxu0 0.0
      %1081 = vmatpush1.xpose.msra.mxu0 0.0
      %1082 = vmatprep.subr.mxu0 0.0
      %1083 = vmatpush1.xpose.msra.mxu0 0.0
      %1084 = vmatprep.subr.mxu0 0.0
      %1085 = vmatpush1.xpose.msra.mxu0 0.0
      %1086 = vmatprep.subr.mxu0 0.0
      %1087 = vmatpush1.xpose.msra.mxu0 0.0
      %1088 = vmatprep.mubr.f32.mxu0 0.0
      %1089 = vmatmul.mubr.f32.gmra.mrb[0].mxu0 %v1020
      %v1090 = vpop.f32.mrb[0].mxu0
      %v1091 = vadd.f32 0.0, %v1090
      %v1092 = vpop.f32.mrb[0].mxu0
      %1093 = vdwg.mxu0
      %v1094 = vmul.f32 %v1091, 0.17677669
      %v1095 = vlaneseq
      %v1096 = vshrl.u32 %v1095, 7
      %v1097 = vsub.s32 1, %v1096
      %v1098 = vrot.slane %v739, %v1097
      %v1099 = vadd.f32 %v1094, %v1098
      %v1100 = vsel %vm932, %v1099, -inf
      %1101 = vmax.xlane.f32.xlu0 %v1100
      %v1102 = vpop.xlane.xlu0 %1101
      %v1103 = vsub.f32 %v1099, %v1102
      %v1104 = vmul.f32 %v1103, 1.442695
      %v1105 = vpow.pop %v1104
      %v1106 = vsel %vm932, %v1105, 0.0
      %1107 = vadd.xlane.f32.xlu0 %v1106
      %v1108 = vpop.xlane.xlu0 %1107
      %v1109 = vrcp.pop %v1108
      %v1110 = vmul.f32 %v1105, %v1109
      %v1112 = vsel %vm932, %v1110, 0
      %1114 = vmatprep.subr.mxu0 0.0
      %1115 = vmatpush1.msra.mxu0 %v846
      %1116 = vmatprep.subr.mxu0 0.0
      %1117 = vmatpush1.msra.mxu0 0.0
      %1118 = vmatprep.subr.mxu0 0.0
      %1119 = vmatpush1.msra.mxu0 0.0
      %1120 = vmatprep.subr.mxu0 0.0
      %1121 = vmatpush1.msra.mxu0 0.0
      %1122 = vmatprep.subr.mxu0 0.0
      %1123 = vmatpush1.msra.mxu0 0.0
      %1124 = vmatprep.subr.mxu0 0.0
      %1125 = vmatpush1.msra.mxu0 0.0
      %1126 = vmatprep.subr.mxu0 0.0
      %1127 = vmatpush1.msra.mxu0 0.0
      %1128 = vmatprep.subr.mxu0 0.0
      %1129 = vmatpush1.msra.mxu0 0.0
      %1130 = vmatprep.subr.mxu0 0.0
      %1131 = vmatpush1.msra.mxu0 0.0
      %1132 = vmatprep.subr.mxu0 0.0
      %1133 = vmatpush1.msra.mxu0 0.0
      %1134 = vmatprep.subr.mxu0 0.0
      %1135 = vmatpush1.msra.mxu0 0.0
      %1136 = vmatprep.subr.mxu0 0.0
      %1137 = vmatpush1.msra.mxu0 0.0
      %1138 = vmatprep.subr.mxu0 0.0
      %1139 = vmatpush1.msra.mxu0 0.0
      %1140 = vmatprep.subr.mxu0 0.0
      %1141 = vmatpush1.msra.mxu0 0.0
      %1142 = vmatprep.subr.mxu0 0.0
      %1143 = vmatpush1.msra.mxu0 0.0
      %1144 = vmatprep.subr.mxu0 0.0
      %1145 = vmatpush1.msra.mxu0 0.0
      %1146 = vmatprep.subr.mxu0 0.0
      %1147 = vmatpush1.msra.mxu0 0.0
      %1148 = vmatprep.subr.mxu0 0.0
      %1149 = vmatpush1.msra.mxu0 0.0
      %1150 = vmatprep.subr.mxu0 0.0
      %1151 = vmatpush1.msra.mxu0 0.0
      %1152 = vmatprep.subr.mxu0 0.0
      %1153 = vmatpush1.msra.mxu0 0.0
      %1154 = vmatprep.subr.mxu0 0.0
      %1155 = vmatpush1.msra.mxu0 0.0
      %1156 = vmatprep.subr.mxu0 0.0
      %1157 = vmatpush1.msra.mxu0 0.0
      %1158 = vmatprep.subr.mxu0 0.0
      %1159 = vmatpush1.msra.mxu0 0.0
      %1160 = vmatprep.subr.mxu0 0.0
      %1161 = vmatpush1.msra.mxu0 0.0
      %1162 = vmatprep.subr.mxu0 0.0
      %1163 = vmatpush1.msra.mxu0 0.0
      %1164 = vmatprep.subr.mxu0 0.0
      %1165 = vmatpush1.msra.mxu0 0.0
      %1166 = vmatprep.subr.mxu0 0.0
      %1167 = vmatpush1.msra.mxu0 0.0
      %1168 = vmatprep.subr.mxu0 0.0
      %1169 = vmatpush1.msra.mxu0 0.0
      %1170 = vmatprep.subr.mxu0 0.0
      %1171 = vmatpush1.msra.mxu0 0.0
      %1172 = vmatprep.subr.mxu0 0.0
      %1173 = vmatpush1.msra.mxu0 0.0
      %1174 = vmatprep.subr.mxu0 0.0
      %1175 = vmatpush1.msra.mxu0 0.0
      %1176 = vmatprep.subr.mxu0 0.0
      %1177 = vmatpush1.msra.mxu0 0.0
      %1178 = vmatprep.mubr.f32.mxu0 0.0
      %1179 = vmatmul.mubr.f32.gmra.mrb[0].mxu0 %v1112
      %v1180 = vpop.f32.mrb[0].mxu0
      %v1181 = vadd.f32 0.0, %v1180
      %v1182 = vpop.f32.mrb[0].mxu0
      %1183 = vdwg.mxu0
      %1184 = vrot.lane.b32.xlu0 %v840, 96
      %v1185 = vpop.permute.xlu0 %1184
      %1186 = vrot.lane.b32.xlu0 %v840, 32
      %v1187 = vpop.permute.xlu0 %1186
      %v1188 = vsel %vm851, %v1185, 0
      %v1190 = vsel %vm851, %v1187, 0
      %1192 = vmatprep.subr.mxu0 0.0
      %1193 = vmatpush1.xpose.msra.mxu0 %v1190
      %1194 = vmatprep.subr.mxu0 0.0
      %1195 = vmatpush1.xpose.msra.mxu0 0.0
      %1196 = vmatprep.subr.mxu0 0.0
      %1197 = vmatpush1.xpose.msra.mxu0 0.0
      %1198 = vmatprep.subr.mxu0 0.0
      %1199 = vmatpush1.xpose.msra.mxu0 0.0
      %1200 = vmatprep.subr.mxu0 0.0
      %1201 = vmatpush1.xpose.msra.mxu0 0.0
      %1202 = vmatprep.subr.mxu0 0.0
      %1203 = vmatpush1.xpose.msra.mxu0 0.0
      %1204 = vmatprep.subr.mxu0 0.0
      %1205 = vmatpush1.xpose.msra.mxu0 0.0
      %1206 = vmatprep.subr.mxu0 0.0
      %1207 = vmatpush1.xpose.msra.mxu0 0.0
      %1208 = vmatprep.subr.mxu0 0.0
      %1209 = vmatpush1.xpose.msra.mxu0 0.0
      %1210 = vmatprep.subr.mxu0 0.0
      %1211 = vmatpush1.xpose.msra.mxu0 0.0
      %1212 = vmatprep.subr.mxu0 0.0
      %1213 = vmatpush1.xpose.msra.mxu0 0.0
      %1214 = vmatprep.subr.mxu0 0.0
      %1215 = vmatpush1.xpose.msra.mxu0 0.0
      %1216 = vmatprep.subr.mxu0 0.0
      %1217 = vmatpush1.xpose.msra.mxu0 0.0
      %1218 = vmatprep.subr.mxu0 0.0
      %1219 = vmatpush1.xpose.msra.mxu0 0.0
      %1220 = vmatprep.subr.mxu0 0.0
      %1221 = vmatpush1.xpose.msra.mxu0 0.0
      %1222 = vmatprep.subr.mxu0 0.0
      %1223 = vmatpush1.xpose.msra.mxu0 0.0
      %1224 = vmatprep.subr.mxu0 0.0
      %1225 = vmatpush1.xpose.msra.mxu0 0.0
      %1226 = vmatprep.subr.mxu0 0.0
      %1227 = vmatpush1.xpose.msra.mxu0 0.0
      %1228 = vmatprep.subr.mxu0 0.0
      %1229 = vmatpush1.xpose.msra.mxu0 0.0
      %1230 = vmatprep.subr.mxu0 0.0
      %1231 = vmatpush1.xpose.msra.mxu0 0.0
      %1232 = vmatprep.subr.mxu0 0.0
      %1233 = vmatpush1.xpose.msra.mxu0 0.0
      %1234 = vmatprep.subr.mxu0 0.0
      %1235 = vmatpush1.xpose.msra.mxu0 0.0
      %1236 = vmatprep.subr.mxu0 0.0
      %1237 = vmatpush1.xpose.msra.mxu0 0.0
      %1238 = vmatprep.subr.mxu0 0.0
      %1239 = vmatpush1.xpose.msra.mxu0 0.0
      %1240 = vmatprep.subr.mxu0 0.0
      %1241 = vmatpush1.xpose.msra.mxu0 0.0
      %1242 = vmatprep.subr.mxu0 0.0
      %1243 = vmatpush1.xpose.msra.mxu0 0.0
      %1244 = vmatprep.subr.mxu0 0.0
      %1245 = vmatpush1.xpose.msra.mxu0 0.0
      %1246 = vmatprep.subr.mxu0 0.0
      %1247 = vmatpush1.xpose.msra.mxu0 0.0
      %1248 = vmatprep.subr.mxu0 0.0
      %1249 = vmatpush1.xpose.msra.mxu0 0.0
      %1250 = vmatprep.subr.mxu0 0.0
      %1251 = vmatpush1.xpose.msra.mxu0 0.0
      %1252 = vmatprep.subr.mxu0 0.0
      %1253 = vmatpush1.xpose.msra.mxu0 0.0
      %1254 = vmatprep.subr.mxu0 0.0
      %1255 = vmatpush1.xpose.msra.mxu0 0.0
      %1256 = vmatprep.mubr.f32.mxu0 0.0
      %1257 = vmatmul.mubr.f32.gmra.mrb[0].mxu0 %v1188
      %v1258 = vpop.f32.mrb[0].mxu0
      %v1259 = vadd.f32 0.0, %v1258
      %v1260 = vpop.f32.mrb[0].mxu0
      %1261 = vdwg.mxu0
      %v1262 = vmul.f32 %v1259, 0.17677669
      %v1263 = vadd.f32 %v1262, %v930
      %v1264 = vsel %vm932, %v1263, -inf
      %1265 = vmax.xlane.f32.xlu0 %v1264
      %v1266 = vpop.xlane.xlu0 %1265
      %v1267 = vsub.f32 %v1263, %v1266
      %v1268 = vmul.f32 %v1267, 1.442695
      %v1269 = vpow.pop %v1268
      %v1270 = vsel %vm932, %v1269, 0.0
      %1271 = vadd.xlane.f32.xlu0 %v1270
      %v1272 = vpop.xlane.xlu0 %1271
      %v1273 = vrcp.pop %v1272
      %v1274 = vmul.f32 %v1269, %v1273
      %1276 = vrot.lane.b32.xlu0 %v842, 96
      %v1277 = vpop.permute.xlu0 %1276
      %v1280 = vsel %vm932, %v1274, 0
      %1282 = vmatprep.subr.mxu0 0.0
      %1283 = vmatpush1.msra.mxu0 %v1277
      %1284 = vmatprep.subr.mxu0 0.0
      %1285 = vmatpush1.msra.mxu0 0.0
      %1286 = vmatprep.subr.mxu0 0.0
      %1287 = vmatpush1.msra.mxu0 0.0
      %1288 = vmatprep.subr.mxu0 0.0
      %1289 = vmatpush1.msra.mxu0 0.0
      %1290 = vmatprep.subr.mxu0 0.0
      %1291 = vmatpush1.msra.mxu0 0.0
      %1292 = vmatprep.subr.mxu0 0.0
      %1293 = vmatpush1.msra.mxu0 0.0
      %1294 = vmatprep.subr.mxu0 0.0
      %1295 = vmatpush1.msra.mxu0 0.0
      %1296 = vmatprep.subr.mxu0 0.0
      %1297 = vmatpush1.msra.mxu0 0.0
      %1298 = vmatprep.subr.mxu0 0.0
      %1299 = vmatpush1.msra.mxu0 0.0
      %1300 = vmatprep.subr.mxu0 0.0
      %1301 = vmatpush1.msra.mxu0 0.0
      %1302 = vmatprep.subr.mxu0 0.0
      %1303 = vmatpush1.msra.mxu0 0.0
      %1304 = vmatprep.subr.mxu0 0.0
      %1305 = vmatpush1.msra.mxu0 0.0
      %1306 = vmatprep.subr.mxu0 0.0
      %1307 = vmatpush1.msra.mxu0 0.0
      %1308 = vmatprep.subr.mxu0 0.0
      %1309 = vmatpush1.msra.mxu0 0.0
      %1310 = vmatprep.subr.mxu0 0.0
      %1311 = vmatpush1.msra.mxu0 0.0
      %1312 = vmatprep.subr.mxu0 0.0
      %1313 = vmatpush1.msra.mxu0 0.0
      %1314 = vmatprep.subr.mxu0 0.0
      %1315 = vmatpush1.msra.mxu0 0.0
      %1316 = vmatprep.subr.mxu0 0.0
      %1317 = vmatpush1.msra.mxu0 0.0
      %1318 = vmatprep.subr.mxu0 0.0
      %1319 = vmatpush1.msra.mxu0 0.0
      %1320 = vmatprep.subr.mxu0 0.0
      %1321 = vmatpush1.msra.mxu0 0.0
      %1322 = vmatprep.subr.mxu0 0.0
      %1323 = vmatpush1.msra.mxu0 0.0
      %1324 = vmatprep.subr.mxu0 0.0
      %1325 = vmatpush1.msra.mxu0 0.0
      %1326 = vmatprep.subr.mxu0 0.0
      %1327 = vmatpush1.msra.mxu0 0.0
      %1328 = vmatprep.subr.mxu0 0.0
      %1329 = vmatpush1.msra.mxu0 0.0
      %1330 = vmatprep.subr.mxu0 0.0
      %1331 = vmatpush1.msra.mxu0 0.0
      %1332 = vmatprep.subr.mxu0 0.0
      %1333 = vmatpush1.msra.mxu0 0.0
      %1334 = vmatprep.subr.mxu0 0.0
      %1335 = vmatpush1.msra.mxu0 0.0
      %1336 = vmatprep.subr.mxu0 0.0
      %1337 = vmatpush1.msra.mxu0 0.0
      %1338 = vmatprep.subr.mxu0 0.0
      %1339 = vmatpush1.msra.mxu0 0.0
      %1340 = vmatprep.subr.mxu0 0.0
      %1341 = vmatpush1.msra.mxu0 0.0
      %1342 = vmatprep.subr.mxu0 0.0
      %1343 = vmatpush1.msra.mxu0 0.0
      %1344 = vmatprep.subr.mxu0 0.0
      %1345 = vmatpush1.msra.mxu0 0.0
      %1346 = vmatprep.mubr.f32.mxu0 0.0
      %1347 = vmatmul.mubr.f32.gmra.mrb[0].mxu0 %v1280
      %v1348 = vpop.f32.mrb[0].mxu0
      %v1349 = vadd.f32 0.0, %v1348
      %v1350 = vpop.f32.mrb[0].mxu0
      %1351 = vdwg.mxu0
      %1352 = vrot.lane.b32.xlu0 %v844, 96
      %v1353 = vpop.permute.xlu0 %1352
      %1354 = vrot.lane.b32.xlu0 %v844, 32
      %v1355 = vpop.permute.xlu0 %1354
      %v1356 = vsel %vm851, %v1353, 0
      %v1358 = vsel %vm851, %v1355, 0
      %1360 = vmatprep.subr.mxu0 0.0
      %1361 = vmatpush1.xpose.msra.mxu0 %v1358
      %1362 = vmatprep.subr.mxu0 0.0
      %1363 = vmatpush1.xpose.msra.mxu0 0.0
      %1364 = vmatprep.subr.mxu0 0.0
      %1365 = vmatpush1.xpose.msra.mxu0 0.0
      %1366 = vmatprep.subr.mxu0 0.0
      %1367 = vmatpush1.xpose.msra.mxu0 0.0
      %1368 = vmatprep.subr.mxu0 0.0
      %1369 = vmatpush1.xpose.msra.mxu0 0.0
      %1370 = vmatprep.subr.mxu0 0.0
      %1371 = vmatpush1.xpose.msra.mxu0 0.0
      %1372 = vmatprep.subr.mxu0 0.0
      %1373 = vmatpush1.xpose.msra.mxu0 0.0
      %1374 = vmatprep.subr.mxu0 0.0
      %1375 = vmatpush1.xpose.msra.mxu0 0.0
      %1376 = vmatprep.subr.mxu0 0.0
      %1377 = vmatpush1.xpose.msra.mxu0 0.0
      %1378 = vmatprep.subr.mxu0 0.0
      %1379 = vmatpush1.xpose.msra.mxu0 0.0
      %1380 = vmatprep.subr.mxu0 0.0
      %1381 = vmatpush1.xpose.msra.mxu0 0.0
      %1382 = vmatprep.subr.mxu0 0.0
      %1383 = vmatpush1.xpose.msra.mxu0 0.0
      %1384 = vmatprep.subr.mxu0 0.0
      %1385 = vmatpush1.xpose.msra.mxu0 0.0
      %1386 = vmatprep.subr.mxu0 0.0
      %1387 = vmatpush1.xpose.msra.mxu0 0.0
      %1388 = vmatprep.subr.mxu0 0.0
      %1389 = vmatpush1.xpose.msra.mxu0 0.0
      %1390 = vmatprep.subr.mxu0 0.0
      %1391 = vmatpush1.xpose.msra.mxu0 0.0
      %1392 = vmatprep.subr.mxu0 0.0
      %1393 = vmatpush1.xpose.msra.mxu0 0.0
      %1394 = vmatprep.subr.mxu0 0.0
      %1395 = vmatpush1.xpose.msra.mxu0 0.0
      %1396 = vmatprep.subr.mxu0 0.0
      %1397 = vmatpush1.xpose.msra.mxu0 0.0
      %1398 = vmatprep.subr.mxu0 0.0
      %1399 = vmatpush1.xpose.msra.mxu0 0.0
      %1400 = vmatprep.subr.mxu0 0.0
      %1401 = vmatpush1.xpose.msra.mxu0 0.0
      %1402 = vmatprep.subr.mxu0 0.0
      %1403 = vmatpush1.xpose.msra.mxu0 0.0
      %1404 = vmatprep.subr.mxu0 0.0
      %1405 = vmatpush1.xpose.msra.mxu0 0.0
      %1406 = vmatprep.subr.mxu0 0.0
      %1407 = vmatpush1.xpose.msra.mxu0 0.0
      %1408 = vmatprep.subr.mxu0 0.0
      %1409 = vmatpush1.xpose.msra.mxu0 0.0
      %1410 = vmatprep.subr.mxu0 0.0
      %1411 = vmatpush1.xpose.msra.mxu0 0.0
      %1412 = vmatprep.subr.mxu0 0.0
      %1413 = vmatpush1.xpose.msra.mxu0 0.0
      %1414 = vmatprep.subr.mxu0 0.0
      %1415 = vmatpush1.xpose.msra.mxu0 0.0
      %1416 = vmatprep.subr.mxu0 0.0
      %1417 = vmatpush1.xpose.msra.mxu0 0.0
      %1418 = vmatprep.subr.mxu0 0.0
      %1419 = vmatpush1.xpose.msra.mxu0 0.0
      %1420 = vmatprep.subr.mxu0 0.0
      %1421 = vmatpush1.xpose.msra.mxu0 0.0
      %1422 = vmatprep.subr.mxu0 0.0
      %1423 = vmatpush1.xpose.msra.mxu0 0.0
      %1424 = vmatprep.mubr.f32.mxu0 0.0
      %1425 = vmatmul.mubr.f32.gmra.mrb[0].mxu0 %v1356
      %v1426 = vpop.f32.mrb[0].mxu0
      %v1427 = vadd.f32 0.0, %v1426
      %v1428 = vpop.f32.mrb[0].mxu0
      %1429 = vdwg.mxu0
      %v1430 = vmul.f32 %v1427, 0.17677669
      %v1431 = vadd.f32 %v1430, %v1098
      %v1432 = vsel %vm932, %v1431, -inf
      %1433 = vmax.xlane.f32.xlu0 %v1432
      %v1434 = vpop.xlane.xlu0 %1433
      %v1435 = vsub.f32 %v1431, %v1434
      %v1436 = vmul.f32 %v1435, 1.442695
      %v1437 = vpow.pop %v1436
      %v1438 = vsel %vm932, %v1437, 0.0
      %1439 = vadd.xlane.f32.xlu0 %v1438
      %v1440 = vpop.xlane.xlu0 %1439
      %v1441 = vrcp.pop %v1440
      %v1442 = vmul.f32 %v1437, %v1441
      %1444 = vrot.lane.b32.xlu0 %v846, 96
      %v1445 = vpop.permute.xlu0 %1444
      %v1448 = vsel %vm932, %v1442, 0
      %1450 = vmatprep.subr.mxu0 0.0
      %1451 = vmatpush1.msra.mxu0 %v1445
      %1452 = vmatprep.subr.mxu0 0.0
      %1453 = vmatpush1.msra.mxu0 0.0
      %1454 = vmatprep.subr.mxu0 0.0
      %1455 = vmatpush1.msra.mxu0 0.0
      %1456 = vmatprep.subr.mxu0 0.0
      %1457 = vmatpush1.msra.mxu0 0.0
      %1458 = vmatprep.subr.mxu0 0.0
      %1459 = vmatpush1.msra.mxu0 0.0
      %1460 = vmatprep.subr.mxu0 0.0
      %1461 = vmatpush1.msra.mxu0 0.0
      %1462 = vmatprep.subr.mxu0 0.0
      %1463 = vmatpush1.msra.mxu0 0.0
      %1464 = vmatprep.subr.mxu0 0.0
      %1465 = vmatpush1.msra.mxu0 0.0
      %1466 = vmatprep.subr.mxu0 0.0
      %1467 = vmatpush1.msra.mxu0 0.0
      %1468 = vmatprep.subr.mxu0 0.0
      %1469 = vmatpush1.msra.mxu0 0.0
      %1470 = vmatprep.subr.mxu0 0.0
      %1471 = vmatpush1.msra.mxu0 0.0
      %1472 = vmatprep.subr.mxu0 0.0
      %1473 = vmatpush1.msra.mxu0 0.0
      %1474 = vmatprep.subr.mxu0 0.0
      %1475 = vmatpush1.msra.mxu0 0.0
      %1476 = vmatprep.subr.mxu0 0.0
      %1477 = vmatpush1.msra.mxu0 0.0
      %1478 = vmatprep.subr.mxu0 0.0
      %1479 = vmatpush1.msra.mxu0 0.0
      %1480 = vmatprep.subr.mxu0 0.0
      %1481 = vmatpush1.msra.mxu0 0.0
      %1482 = vmatprep.subr.mxu0 0.0
      %1483 = vmatpush1.msra.mxu0 0.0
      %1484 = vmatprep.subr.mxu0 0.0
      %1485 = vmatpush1.msra.mxu0 0.0
      %1486 = vmatprep.subr.mxu0 0.0
      %1487 = vmatpush1.msra.mxu0 0.0
      %1488 = vmatprep.subr.mxu0 0.0
      %1489 = vmatpush1.msra.mxu0 0.0
      %1490 = vmatprep.subr.mxu0 0.0
      %1491 = vmatpush1.msra.mxu0 0.0
      %1492 = vmatprep.subr.mxu0 0.0
      %1493 = vmatpush1.msra.mxu0 0.0
      %1494 = vmatprep.subr.mxu0 0.0
      %1495 = vmatpush1.msra.mxu0 0.0
      %1496 = vmatprep.subr.mxu0 0.0
      %1497 = vmatpush1.msra.mxu0 0.0
      %1498 = vmatprep.subr.mxu0 0.0
      %1499 = vmatpush1.msra.mxu0 0.0
      %1500 = vmatprep.subr.mxu0 0.0
      %1501 = vmatpush1.msra.mxu0 0.0
      %1502 = vmatprep.subr.mxu0 0.0
      %1503 = vmatpush1.msra.mxu0 0.0
      %1504 = vmatprep.subr.mxu0 0.0
      %1505 = vmatpush1.msra.mxu0 0.0
      %1506 = vmatprep.subr.mxu0 0.0
      %1507 = vmatpush1.msra.mxu0 0.0
      %1508 = vmatprep.subr.mxu0 0.0
      %1509 = vmatpush1.msra.mxu0 0.0
      %1510 = vmatprep.subr.mxu0 0.0
      %1511 = vmatpush1.msra.mxu0 0.0
      %1512 = vmatprep.subr.mxu0 0.0
      %1513 = vmatpush1.msra.mxu0 0.0
      %1514 = vmatprep.mubr.f32.mxu0 0.0
      %1515 = vmatmul.mubr.f32.gmra.mrb[0].mxu0 %v1448
      %v1516 = vpop.f32.mrb[0].mxu0
      %v1517 = vadd.f32 0.0, %v1516
      %v1518 = vpop.f32.mrb[0].mxu0
      %1519 = vdwg.mxu0
      %1522 = vrot.lane.b32.xlu0 %v1349, 32
      %v1523 = vpop.permute.xlu0 %1522
      %1524 = vrot.lane.b32.xlu0 %v1517, 32
      %v1525 = vpop.permute.xlu0 %1524
      %v1528 = vsel %vm851, %v1014, %v1523
      %v1529 = vsel %vm851, %v1181, %v1525
      %v1530 = vld [vmem:[%s650] sm:$0xf]
      %v1531 = vld [vmem:[%s650 + $0x4] sm:$0xf]
      %v1532 = vld [vmem:[%s650 + $0x8] sm:$0xf]
      %v1533 = vld [vmem:[%s650 + $0xc] sm:$0xf]
      %v1534 = vld [vmem:[%s650 + $0x10] sm:$0xf]
      %v1535 = vld [vmem:[%s650 + $0x14] sm:$0xf]
      %v1536 = vld [vmem:[%s650 + $0x18] sm:$0xf]
      %v1537 = vld [vmem:[%s650 + $0x1c] sm:$0xf]
      %v1538 = vpack.c.bf16 %v1529, %v1528
      %v1539 = vld [vmem:[%s653] sm:$0x1]
      %v1541 = vlaneseq
      %v1542 = vshrl.u32 %v1541, 7
      %v1543 = vsub.s32 0, %v1542
      %v1544 = vrot.slane %v1539, %v1543
      %v1554 = vunpack.c.l.b16 %v1530
      %v1555 = vunpack.c.l.b16 %v1531
      %v1556 = vunpack.c.l.b16 %v1532
      %v1557 = vunpack.c.l.b16 %v1533
      %v1558 = vunpack.c.l.b16 %v1534
      %v1559 = vunpack.c.l.b16 %v1535
      %v1560 = vunpack.c.l.b16 %v1536
      %v1561 = vunpack.c.l.b16 %v1537
      %v1562 = vpack.c.b16 %v1555, %v1554
      %v1563 = vpack.c.b16 %v1557, %v1556
      %v1564 = vpack.c.b16 %v1559, %v1558
      %v1565 = vpack.c.b16 %v1561, %v1560
      %v1571 = vsel %vm801, %v1538, 0
      %1573 = vmatprep.subr.bf16.mxu0 0
      %1574 = vmatpush1.bf16.msra.mxu0 %v1562
      %1575 = vmatprep.subr.bf16.mxu0 0
      %1576 = vmatpush1.bf16.msra.mxu0 %v1563
      %1577 = vmatprep.subr.bf16.mxu0 0
      %1578 = vmatpush1.bf16.msra.mxu0 %v1564
      %1579 = vmatprep.subr.bf16.mxu0 0
      %1580 = vmatpush1.bf16.msra.mxu0 %v1565
      %1581 = vmatprep.subr.bf16.mxu0 0
      %1582 = vmatpush1.bf16.msra.mxu0 0
      %1583 = vmatprep.subr.bf16.mxu0 0
      %1584 = vmatpush1.bf16.msra.mxu0 0
      %1585 = vmatprep.subr.bf16.mxu0 0
      %1586 = vmatpush1.bf16.msra.mxu0 0
      %1587 = vmatprep.subr.bf16.mxu0 0
      %1588 = vmatpush1.bf16.msra.mxu0 0
      %1589 = vmatprep.subr.bf16.mxu0 0
      %1590 = vmatpush1.bf16.msra.mxu0 0
      %1591 = vmatprep.subr.bf16.mxu0 0
      %1592 = vmatpush1.bf16.msra.mxu0 0
      %1593 = vmatprep.subr.bf16.mxu0 0
      %1594 = vmatpush1.bf16.msra.mxu0 0
      %1595 = vmatprep.subr.bf16.mxu0 0
      %1596 = vmatpush1.bf16.msra.mxu0 0
      %1597 = vmatprep.subr.bf16.mxu0 0
      %1598 = vmatpush1.bf16.msra.mxu0 0
      %1599 = vmatprep.subr.bf16.mxu0 0
      %1600 = vmatpush1.bf16.msra.mxu0 0
      %1601 = vmatprep.subr.bf16.mxu0 0
      %1602 = vmatpush1.bf16.msra.mxu0 0
      %1603 = vmatprep.subr.bf16.mxu0 0
      %1604 = vmatpush1.bf16.msra.mxu0 0
      %1605 = vmatprep.mubr.bf16.mxu0 0
      %1606 = vmatmul.mubr.bf16.gmra.mrb[0].mxu0 %v1571
      %v1607 = vpop.f32.mrb[0].mxu0
      %v1608 = vadd.f32 %v1544, %v1607
      %v1609 = vpop.f32.mrb[0].mxu0
      %v1610 = vpop.f32.mrb[0].mxu0
      %v1611 = vadd.f32 %v1544, %v1610
      %v1612 = vpop.f32.mrb[0].mxu0
      %1613 = vdwg.mxu0
      %v1614 = vadd.f32 %v737, %v1608
      %v1615 = vadd.f32 %v738, %v1611
      %v1616 = vld [vmem:[%s656] sm:$0x1]
      %v1617 = vld [vmem:[%s659] sm:$0x1]
      %v1618 = vsel %vm801, %v1614, 0.0
      %1619 = vadd.xlane.f32.xlu0 %v1618
      %v1620 = vpop.xlane.xlu0 %1619
      %v1621 = vsel %vm801, %v1615, 0.0
      %1622 = vadd.xlane.f32.xlu0 %v1621
      %v1623 = vpop.xlane.xlu0 %1622
      %v1624 = vrcp.pop 64.0
      %v1625 = vmul.f32 %v1620, %v1624
      %v1626 = vmul.f32 %v1623, %v1624
      %v1627 = vsub.f32 %v1614, %v1625
      %v1628 = vsub.f32 %v1615, %v1626
      %v1629 = vmul.f32 %v1627, %v1627
      %v1630 = vmul.f32 %v1628, %v1628
      %v1631 = vsel %vm801, %v1629, 0.0
      %1632 = vadd.xlane.f32.xlu0 %v1631
      %v1633 = vpop.xlane.xlu0 %1632
      %v1634 = vsel %vm801, %v1630, 0.0
      %1635 = vadd.xlane.f32.xlu0 %v1634
      %v1636 = vpop.xlane.xlu0 %1635
      %v1637 = vmul.f32 %v1633, %v1624
      %v1638 = vmul.f32 %v1636, %v1624
      %v1639 = vadd.f32 %v1637, 1e-12
      %v1640 = vadd.f32 %v1638, 1e-12
      %v1641 = vrsqrt.pop %v1639
      %v1642 = vrsqrt.pop %v1640
      %v1643 = vmul.f32 %v1627, %v1641
      %v1644 = vmul.f32 %v1628, %v1642
      %v1646 = vlaneseq
      %v1647 = vshrl.u32 %v1646, 7
      %v1648 = vsub.s32 0, %v1647
      %v1649 = vrot.slane %v1616, %v1648
      %v1651 = vmul.f32 %v1643, %v1649
      %v1652 = vmul.f32 %v1644, %v1649
      %v1654 = vlaneseq
      %v1655 = vshrl.u32 %v1654, 7
      %v1656 = vsub.s32 0, %v1655
      %v1657 = vrot.slane %v1617, %v1656
      %v1659 = vadd.f32 %v1651, %v1657
      %v1660 = vadd.f32 %v1652, %v1657
      %v1661 = vld [vmem:[%s664] sm:$0xf]
      %v1662 = vld [vmem:[%s664 + $0x4] sm:$0xf]
      %v1663 = vld [vmem:[%s664 + $0x8] sm:$0xf]
      %v1664 = vld [vmem:[%s664 + $0xc] sm:$0xf]
      %v1665 = vld [vmem:[%s664 + $0x10] sm:$0xf]
      %v1666 = vld [vmem:[%s664 + $0x14] sm:$0xf]
      %v1667 = vld [vmem:[%s664 + $0x18] sm:$0xf]
      %v1668 = vld [vmem:[%s664 + $0x1c] sm:$0xf]
      %v1669 = vpack.c.bf16 %v1660, %v1659
      %v1670 = vld [vmem:[%s667] sm:$0x1]
      %v1672 = vlaneseq
      %v1673 = vshrl.u32 %v1672, 7
      %v1674 = vsub.s32 0, %v1673
      %v1675 = vrot.slane %v1670, %v1674
      %v1685 = vunpack.c.l.b16 %v1661
      %v1686 = vunpack.c.l.b16 %v1662
      %v1687 = vunpack.c.l.b16 %v1663
      %v1688 = vunpack.c.l.b16 %v1664
      %v1689 = vunpack.c.l.b16 %v1665
      %v1690 = vunpack.c.l.b16 %v1666
      %v1691 = vunpack.c.l.b16 %v1667
      %v1692 = vunpack.c.l.b16 %v1668
      %v1693 = vpack.c.b16 %v1686, %v1685
      %v1694 = vpack.c.b16 %v1688, %v1687
      %v1695 = vpack.c.b16 %v1690, %v1689
      %v1696 = vpack.c.b16 %v1692, %v1691
      %v1702 = vsel %vm801, %v1669, 0
      %1704 = vmatprep.subr.bf16.mxu0 0
      %1705 = vmatpush1.bf16.msra.mxu0 %v1693
      %1706 = vmatprep.subr.bf16.mxu0 0
      %1707 = vmatpush1.bf16.msra.mxu0 %v1694
      %1708 = vmatprep.subr.bf16.mxu0 0
      %1709 = vmatpush1.bf16.msra.mxu0 %v1695
      %1710 = vmatprep.subr.bf16.mxu0 0
      %1711 = vmatpush1.bf16.msra.mxu0 %v1696
      %1712 = vmatprep.subr.bf16.mxu0 0
      %1713 = vmatpush1.bf16.msra.mxu0 0
      %1714 = vmatprep.subr.bf16.mxu0 0
      %1715 = vmatpush1.bf16.msra.mxu0 0
      %1716 = vmatprep.subr.bf16.mxu0 0
      %1717 = vmatpush1.bf16.msra.mxu0 0
      %1718 = vmatprep.subr.bf16.mxu0 0
      %1719 = vmatpush1.bf16.msra.mxu0 0
      %1720 = vmatprep.subr.bf16.mxu0 0
      %1721 = vmatpush1.bf16.msra.mxu0 0
      %1722 = vmatprep.subr.bf16.mxu0 0
      %1723 = vmatpush1.bf16.msra.mxu0 0
      %1724 = vmatprep.subr.bf16.mxu0 0
      %1725 = vmatpush1.bf16.msra.mxu0 0
      %1726 = vmatprep.subr.bf16.mxu0 0
      %1727 = vmatpush1.bf16.msra.mxu0 0
      %1728 = vmatprep.subr.bf16.mxu0 0
      %1729 = vmatpush1.bf16.msra.mxu0 0
      %1730 = vmatprep.subr.bf16.mxu0 0
      %1731 = vmatpush1.bf16.msra.mxu0 0
      %1732 = vmatprep.subr.bf16.mxu0 0
      %1733 = vmatpush1.bf16.msra.mxu0 0
      %1734 = vmatprep.subr.bf16.mxu0 0
      %1735 = vmatpush1.bf16.msra.mxu0 0
      %1736 = vmatprep.mubr.bf16.mxu0 0
      %1737 = vmatmul.mubr.bf16.gmra.mrb[0].mxu0 %v1702
      %v1738 = vpop.f32.mrb[0].mxu0
      %v1739 = vadd.f32 %v1675, %v1738
      %v1740 = vpop.f32.mrb[0].mxu0
      %v1741 = vpop.f32.mrb[0].mxu0
      %v1742 = vadd.f32 %v1675, %v1741
      %v1743 = vpop.f32.mrb[0].mxu0
      %1744 = vdwg.mxu0
      %v1745 = vmul.f32 %v1739, %v1739
      %v1746 = vmul.f32 %v1742, %v1742
      %v1747 = vmul.f32 %v1739, %v1745
      %v1748 = vmul.f32 %v1742, %v1746
      %v1749 = vmul.f32 %v1747, 0.044715
      %v1750 = vmul.f32 %v1748, 0.044715
      %v1751 = vadd.f32 %v1739, %v1749
      %v1752 = vadd.f32 %v1742, %v1750
      %v1753 = vmul.f32 %v1751, 0.7978846
      %v1754 = vmul.f32 %v1752, 0.7978846
      %v1755 = vtanh.pop %v1753
      %v1756 = vtanh.pop %v1754
      %v1757 = vadd.f32 %v1755, 1.0
      %v1758 = vadd.f32 %v1756, 1.0
      %v1759 = vmul.f32 %v1757, 0.5
      %v1760 = vmul.f32 %v1758, 0.5
      %v1761 = vmul.f32 %v1739, %v1759
      %v1762 = vmul.f32 %v1742, %v1760
      %v1763 = vld [vmem:[%s672] sm:$0xf]
      %v1764 = vld [vmem:[%s672 + $0x4] sm:$0xf]
      %v1765 = vld [vmem:[%s672 + $0x8] sm:$0xf]
      %v1766 = vld [vmem:[%s672 + $0xc] sm:$0xf]
      %v1767 = vld [vmem:[%s672 + $0x10] sm:$0xf]
      %v1768 = vld [vmem:[%s672 + $0x14] sm:$0xf]
      %v1769 = vld [vmem:[%s672 + $0x18] sm:$0xf]
      %v1770 = vld [vmem:[%s672 + $0x1c] sm:$0xf]
      %v1771 = vld [vmem:[%s672 + $0x20] sm:$0xf]
      %v1772 = vld [vmem:[%s672 + $0x24] sm:$0xf]
      %v1773 = vld [vmem:[%s672 + $0x28] sm:$0xf]
      %v1774 = vld [vmem:[%s672 + $0x2c] sm:$0xf]
      %v1775 = vld [vmem:[%s672 + $0x30] sm:$0xf]
      %v1776 = vld [vmem:[%s672 + $0x34] sm:$0xf]
      %v1777 = vld [vmem:[%s672 + $0x38] sm:$0xf]
      %v1778 = vld [vmem:[%s672 + $0x3c] sm:$0xf]
      %v1779 = vpack.c.bf16 %v1762, %v1761
      %v1780 = vld [vmem:[%s675] sm:$0x1]
      %v1782 = vlaneseq
      %v1783 = vshrl.u32 %v1782, 7
      %v1784 = vsub.s32 0, %v1783
      %v1785 = vrot.slane %v1780, %v1784
      %v1803 = vunpack.c.l.b16 %v1763
      %v1804 = vunpack.c.l.b16 %v1764
      %v1805 = vunpack.c.l.b16 %v1765
      %v1806 = vunpack.c.l.b16 %v1766
      %v1807 = vunpack.c.l.b16 %v1767
      %v1808 = vunpack.c.l.b16 %v1768
      %v1809 = vunpack.c.l.b16 %v1769
      %v1810 = vunpack.c.l.b16 %v1770
      %v1811 = vunpack.c.l.b16 %v1771
      %v1812 = vunpack.c.l.b16 %v1772
      %v1813 = vunpack.c.l.b16 %v1773
      %v1814 = vunpack.c.l.b16 %v1774
      %v1815 = vunpack.c.l.b16 %v1775
      %v1816 = vunpack.c.l.b16 %v1776
      %v1817 = vunpack.c.l.b16 %v1777
      %v1818 = vunpack.c.l.b16 %v1778
      %v1819 = vpack.c.b16 %v1804, %v1803
      %v1820 = vpack.c.b16 %v1806, %v1805
      %v1821 = vpack.c.b16 %v1808, %v1807
      %v1822 = vpack.c.b16 %v1810, %v1809
      %v1823 = vpack.c.b16 %v1812, %v1811
      %v1824 = vpack.c.b16 %v1814, %v1813
      %v1825 = vpack.c.b16 %v1816, %v1815
      %v1826 = vpack.c.b16 %v1818, %v1817
      %1835 = vmatprep.subr.bf16.mxu0 0
      %1836 = vmatpush1.bf16.msra.mxu0 %v1819
      %1837 = vmatprep.subr.bf16.mxu0 0
      %1838 = vmatpush1.bf16.msra.mxu0 %v1820
      %1839 = vmatprep.subr.bf16.mxu0 0
      %1840 = vmatpush1.bf16.msra.mxu0 %v1821
      %1841 = vmatprep.subr.bf16.mxu0 0
      %1842 = vmatpush1.bf16.msra.mxu0 %v1822
      %1843 = vmatprep.subr.bf16.mxu0 0
      %1844 = vmatpush1.bf16.msra.mxu0 %v1823
      %1845 = vmatprep.subr.bf16.mxu0 0
      %1846 = vmatpush1.bf16.msra.mxu0 %v1824
      %1847 = vmatprep.subr.bf16.mxu0 0
      %1848 = vmatpush1.bf16.msra.mxu0 %v1825
      %1849 = vmatprep.subr.bf16.mxu0 0
      %1850 = vmatpush1.bf16.msra.mxu0 %v1826
      %1851 = vmatprep.subr.bf16.mxu0 0
      %1852 = vmatpush1.bf16.msra.mxu0 0
      %1853 = vmatprep.subr.bf16.mxu0 0
      %1854 = vmatpush1.bf16.msra.mxu0 0
      %1855 = vmatprep.subr.bf16.mxu0 0
      %1856 = vmatpush1.bf16.msra.mxu0 0
      %1857 = vmatprep.subr.bf16.mxu0 0
      %1858 = vmatpush1.bf16.msra.mxu0 0
      %1859 = vmatprep.subr.bf16.mxu0 0
      %1860 = vmatpush1.bf16.msra.mxu0 0
      %1861 = vmatprep.subr.bf16.mxu0 0
      %1862 = vmatpush1.bf16.msra.mxu0 0
      %1863 = vmatprep.subr.bf16.mxu0 0
      %1864 = vmatpush1.bf16.msra.mxu0 0
      %1865 = vmatprep.subr.bf16.mxu0 0
      %1866 = vmatpush1.bf16.msra.mxu0 0
      %1867 = vmatprep.mubr.bf16.mxu0 0
      %1868 = vmatmul.mubr.bf16.gmra.mrb[0].mxu0 %v1779
      %v1869 = vpop.f32.mrb[0].mxu0
      %v1870 = vadd.f32 %v1785, %v1869
      %v1871 = vpop.f32.mrb[0].mxu0
      %v1872 = vpop.f32.mrb[0].mxu0
      %v1873 = vadd.f32 %v1785, %v1872
      %v1874 = vpop.f32.mrb[0].mxu0
      %1875 = vdwg.mxu0
      %v1876 = vadd.f32 %v1659, %v1870
      %v1877 = vadd.f32 %v1660, %v1873
      %v1878 = vld [vmem:[%s678] sm:$0x1]
      %v1879 = vld [vmem:[%s681] sm:$0x1]
      %v1880 = vsel %vm801, %v1876, 0.0
      %1881 = vadd.xlane.f32.xlu0 %v1880
      %v1882 = vpop.xlane.xlu0 %1881
      %v1883 = vsel %vm801, %v1877, 0.0
      %1884 = vadd.xlane.f32.xlu0 %v1883
      %v1885 = vpop.xlane.xlu0 %1884
      %v1886 = vmul.f32 %v1882, %v1624
      %v1887 = vmul.f32 %v1885, %v1624
      %v1888 = vsub.f32 %v1876, %v1886
      %v1889 = vsub.f32 %v1877, %v1887
      %v1890 = vmul.f32 %v1888, %v1888
      %v1891 = vmul.f32 %v1889, %v1889
      %v1892 = vsel %vm801, %v1890, 0.0
      %1893 = vadd.xlane.f32.xlu0 %v1892
      %v1894 = vpop.xlane.xlu0 %1893
      %v1895 = vsel %vm801, %v1891, 0.0
      %1896 = vadd.xlane.f32.xlu0 %v1895
      %v1897 = vpop.xlane.xlu0 %1896
      %v1898 = vmul.f32 %v1894, %v1624
      %v1899 = vmul.f32 %v1897, %v1624
      %v1900 = vadd.f32 %v1898, 1e-12
      %v1901 = vadd.f32 %v1899, 1e-12
      %v1902 = vrsqrt.pop %v1900
      %v1903 = vrsqrt.pop %v1901
      %v1904 = vmul.f32 %v1888, %v1902
      %v1905 = vmul.f32 %v1889, %v1903
      %v1907 = vlaneseq
      %v1908 = vshrl.u32 %v1907, 7
      %v1909 = vsub.s32 0, %v1908
      %v1910 = vrot.slane %v1878, %v1909
      %v1912 = vmul.f32 %v1904, %v1910
      %v1913 = vmul.f32 %v1905, %v1910
      %v1915 = vlaneseq
      %v1916 = vshrl.u32 %v1915, 7
      %v1917 = vsub.s32 0, %v1916
      %v1918 = vrot.slane %v1879, %v1917
      %v1920 = vadd.f32 %v1912, %v1918
      %v1921 = vadd.f32 %v1913, %v1918
      %1922 = vst.msk [vmem:[%s16] sm:$0xff] %vm801, %v1920
      %1923 = vst.msk [vmem:[%s16 + $0x8] sm:$0xff] %vm801, %v1921
      // Predicated region
      $region89: #{bert_vit_forward.5} parent=83 // pred_check
        %p1924 = pneg %p436
      $region90: #{bert_vit_forward.5} parent=83 // pred_check_branch
        %1926 = sbr.rel (%p1924) target = $region92
      $region91: #{bert_vit_forward.5} parent=83 // pred_region
        _
      $region92: #{bert_vit_forward.5} parent=83 // pred_fallthru
        _
      // Predicated region
      $region93: #{bert_vit_forward.5} parent=83 // pred_check
        %p1927 = pneg %p436
      $region94: #{bert_vit_forward.5} parent=83 // pred_check_branch
        %1929 = sbr.rel (%p1927) target = $region96
      $region95: #{bert_vit_forward.5} parent=83 // pred_region
        _
      $region96: #{bert_vit_forward.5} parent=83 // pred_fallthru
        _
    $region84: #{bert_vit_forward.5} parent=5 // pred_fallthru
      _
    %p1930 = scmp.le.s32.totalorder 2, %s22
    // Predicated region
    $region97: #{bert_vit_forward.5} parent=5 // pred_check
      %p1931 = pneg %p1930
    $region98: #{bert_vit_forward.5} parent=5 // pred_check_branch
      %1933 = sbr.rel (%p1931) target = $region100
    $region99: #{bert_vit_forward.5} parent=5 // pred_region
      %s1934 = ssub.s32 %s22, 2
    $region100: #{bert_vit_forward.5} parent=5 // pred_fallthru
      _
  $region6: #{bert_vit_forward.5} parent=0 // loop_footer
    %s26 = sadd.s32 1, %s22
  $region7: #{bert_vit_forward.5} parent=0 // loop_footer_branch
    %21 = sbr.rel target = $region3
  $region8: #{bert_vit_forward.5} parent=0 // loop_exit
    _

</llo_original>
